<compile_context>
chip_gen: v5e
topology: v5e:2x2
jax: 0.10.0
libtpu: 0.0.40
codegen_flags: <defaults>
</compile_context>

<pallas_src>
import functools
import numpy as np

import jax
import jax.numpy as jnp
from jax import lax
from jax.experimental import pallas as pl
from jax.experimental.pallas import tpu as pltpu

EPS = 1e-3  # matches BatchNorm2d(..., eps=0.001)


def _round_up(x, m):
    return (x + m - 1) // m * m


# --------------------------------------------------------------------------
# Fused kernel: conv1x1 -> BN1+ReLU -> depthwise 3x3 s2 -> BN2+ReLU
# --------------------------------------------------------------------------
def _fused_kernel(x_ref, m_ref, w1_ref, w2_ref, g1_ref, b1_ref, g2_ref, b2_ref,
                  o_ref, *, n, a, b, ho, wo, m1, m2):
    # ---- 1x1 conv (pointwise) on the MXU: bf16 operands, f32 accumulation ----
    y1 = jnp.dot(x_ref[...], w1_ref[...],
                 preferred_element_type=jnp.float32)            # (R, CP) f32
    mask = m_ref[...]                                           # (R, 1): 1.0 = real pixel

    # ---- BatchNorm1 (training-mode batch stats) + ReLU, folded --------------
    # Zero-padded pixels produce y1 == 0 exactly (no conv bias), so the raw sum
    # over all rows equals the sum over the m1 real pixels.
    mean1 = jnp.sum(y1, axis=0, keepdims=True) / m1
    d1 = (y1 - mean1) * mask                                    # two-pass variance
    var1 = jnp.sum(d1 * d1, axis=0, keepdims=True) / m1         # biased (PyTorch BN)
    scale1 = g1_ref[...] * lax.rsqrt(var1 + EPS)                # EUP
    bias1 = b1_ref[...] - mean1 * scale1
    z1 = jnp.maximum(y1 * scale1 + bias1, 0.0) * mask           # re-zero padding pixels
    cp = z1.shape[-1]

    # ---- depthwise 3x3, stride 2, pad 1 --------------------------------------
    # Rows are ordered (phase, n, a, b) with phase = 2*(i%2) + (j%2) over the
    # zero-padded spatial grid (i, j) = (2a + i%2, 2b + j%2).  Tap (kh, kw) of
    # output pixel (oh, ow) is phase 2*(kh%2)+(kw%2) at (a, b) = (oh+kh//2, ow+kw//2),
    # i.e. a contiguous (n, ho, wo) window per tap.
    z1 = z1.reshape(4 * n, a, b, cp)                            # layout-preserving
    w2 = w2_ref[...]                                            # (3, 3, CP)
    acc = jnp.zeros((n, ho, wo, cp), jnp.float32)
    for kh in range(3):
        for kw in range(3):
            p = 2 * (kh % 2) + (kw % 2)
            r0, c0 = kh // 2, kw // 2
            win = z1[p * n:(p + 1) * n, r0:r0 + ho, c0:c0 + wo, :]
            acc = acc + win * w2[kh, kw, :].reshape(1, 1, 1, cp)
    y2 = acc.reshape(n * ho * wo, cp)

    # ---- BatchNorm2 + ReLU ----------------------------------------------------
    mean2 = jnp.sum(y2, axis=0, keepdims=True) / m2
    d2 = y2 - mean2
    var2 = jnp.sum(d2 * d2, axis=0, keepdims=True) / m2
    scale2 = g2_ref[...] * lax.rsqrt(var2 + EPS)
    bias2 = b2_ref[...] - mean2 * scale2
    o_ref[...] = jnp.maximum(y2 * scale2 + bias2, 0.0)


# --------------------------------------------------------------------------
# Full forward pass (wrapper does only layout plumbing on the small input)
# --------------------------------------------------------------------------
def forward(x_nchw, params):
    x = jnp.transpose(x_nchw, (0, 2, 3, 1)).astype(jnp.float32)   # NHWC
    N, H, W, Cin = x.shape
    C = params["w1"].shape[1]                                     # 96
    CP = _round_up(C, 128)                                        # lane-dense channels
    HO = (H + 2 - 3) // 2 + 1
    WO = (W + 2 - 3) // 2 + 1
    A = (H + 2 + 1) // 2                          # rows per row-phase
    B = _round_up((W + 2 + 1) // 2, 8)            # cols per col-phase (8-sublane aligned)

    # Zero-pad spatially (conv pad=1 + alignment) and split into the 4 stride-2
    # phases; flatten to rows ordered (phase, n, a, b).
    def phase_layout(t):
        c = t.shape[-1]
        tp = jnp.pad(t, ((0, 0), (1, 2 * A - H - 1), (1, 2 * B - W - 1), (0, 0)))
        tp = tp.reshape(N, A, 2, B, 2, c).transpose(2, 4, 0, 1, 3, 5)
        return tp.reshape(4 * N * A * B, c)

    xph = phase_layout(x).astype(jnp.bfloat16)                    # MXU operand
    mask = phase_layout(jnp.ones((N, H, W, 1), jnp.float32))      # real-pixel mask

    w1 = jnp.pad(params["w1"], ((0, 0), (0, CP - C))).astype(jnp.bfloat16)
    w2 = jnp.pad(params["w2"], ((0, 0), (0, 0), (0, CP - C)))
    g1 = jnp.pad(params["gamma1"], (0, CP - C)).reshape(1, CP)
    b1 = jnp.pad(params["beta1"], (0, CP - C)).reshape(1, CP)
    g2 = jnp.pad(params["gamma2"], (0, CP - C)).reshape(1, CP)
    b2 = jnp.pad(params["beta2"], (0, CP - C)).reshape(1, CP)

    R = 4 * N * A * B
    MO = N * HO * WO

    kernel = functools.partial(
        _fused_kernel, n=N, a=A, b=B, ho=HO, wo=WO,
        m1=float(N * H * W), m2=float(MO))

    out = pl.pallas_call(
        kernel,
        out_shape=jax.ShapeDtypeStruct((MO, CP), jnp.float32),
        grid=(1,),
        in_specs=[
            pl.BlockSpec((R, Cin), lambda i: (0, 0)),       # phase-layout input (bf16)
            pl.BlockSpec((R, 1), lambda i: (0, 0)),         # real-pixel mask
            pl.BlockSpec((Cin, CP), lambda i: (0, 0)),      # w1 (bf16)
            pl.BlockSpec((3, 3, CP), lambda i: (0, 0, 0)),  # w2
            pl.BlockSpec((1, CP), lambda i: (0, 0)),        # gamma1
            pl.BlockSpec((1, CP), lambda i: (0, 0)),        # beta1
            pl.BlockSpec((1, CP), lambda i: (0, 0)),        # gamma2
            pl.BlockSpec((1, CP), lambda i: (0, 0)),        # beta2
        ],
        out_specs=pl.BlockSpec((MO, CP), lambda i: (0, 0)),
        compiler_params=pltpu.CompilerParams(
            dimension_semantics=("arbitrary",)),
    )(xph, mask, w1, w2, g1, b1, g2, b2)

    out = out[:, :C].reshape(N, HO, WO, C)
    return jnp.transpose(out, (0, 3, 1, 2))                       # back to NCHW


# --------------------------------------------------------------------------
# Pure-JAX reference (same math; the 1x1-conv operands are bf16-rounded to
# mirror the kernel's native-bf16 MXU matmul, accumulation in f32).
# --------------------------------------------------------------------------
def forward_ref(x_nchw, params):
    xr = x_nchw.astype(jnp.float32).astype(jnp.bfloat16).astype(jnp.float32)
    w1r = params["w1"].astype(jnp.bfloat16).astype(jnp.float32)
    w1_oihw = w1r.T[:, :, None, None]                             # [96,16,1,1]
    y1 = lax.conv_general_dilated(
        xr, w1_oihw, (1, 1), "VALID",
        dimension_numbers=("NCHW", "OIHW", "NCHW"),
        precision=lax.Precision.HIGHEST)
    m1 = jnp.mean(y1, axis=(0, 2, 3))
    v1 = jnp.var(y1, axis=(0, 2, 3))
    z1 = (y1 - m1[None, :, None, None]) / jnp.sqrt(v1 + EPS)[None, :, None, None]
    z1 = jnp.maximum(z1 * params["gamma1"][None, :, None, None]
                     + params["beta1"][None, :, None, None], 0.0)

    C = params["w2"].shape[-1]
    w2_oihw = jnp.transpose(params["w2"], (2, 0, 1))[:, None, :, :]  # [96,1,3,3]
    y2 = lax.conv_general_dilated(
        z1, w2_oihw, (2, 2), ((1, 1), (1, 1)),
        dimension_numbers=("NCHW", "OIHW", "NCHW"),
        feature_group_count=C,
        precision=lax.Precision.HIGHEST)
    m2 = jnp.mean(y2, axis=(0, 2, 3))
    v2 = jnp.var(y2, axis=(0, 2, 3))
    z2 = (y2 - m2[None, :, None, None]) / jnp.sqrt(v2 + EPS)[None, :, None, None]
    z2 = jnp.maximum(z2 * params["gamma2"][None, :, None, None]
                     + params["beta2"][None, :, None, None], 0.0)
    return z2


if __name__ == "__main__":
    key = jax.random.PRNGKey(0)
    kx, k1, k2, k3, k4, k5, k6 = jax.random.split(key, 7)

    # small shapes consistent with the module: N=2, Cin=16, H=W=16 (NCHW)
    x = jax.random.normal(kx, (2, 16, 16, 16), jnp.float32)

    params = {
        "w1": jax.random.normal(k1, (16, 96), jnp.float32) * (1.0 / np.sqrt(16.0)),
        "w2": jax.random.normal(k2, (3, 3, 96), jnp.float32) * (1.0 / 3.0),
        "gamma1": 1.0 + 0.1 * jax.random.normal(k3, (96,), jnp.float32),
        "beta1": 0.1 * jax.random.normal(k4, (96,), jnp.float32),
        "gamma2": 1.0 + 0.1 * jax.random.normal(k5, (96,), jnp.float32),
        "beta2": 0.1 * jax.random.normal(k6, (96,), jnp.float32),
    }

    out = jax.block_until_ready(jax.jit(forward)(x, params))
    ref = jax.block_until_ready(forward_ref(x, params))

    assert out.shape == (2, 96, 8, 8), out.shape
    np.testing.assert_allclose(np.asarray(out), np.asarray(ref),
                               rtol=5e-3, atol=5e-3)
    print("KERNEL_OK")
</pallas_src>

<mosaic_0001>
module attributes {stable_mosaic.version = 11 : i64} {
  func.func @_fused_kernel(%arg0: i32, %arg1: memref<1152x16xbf16, #tpu.memory_space<vmem>>, %arg2: memref<1152x1xf32, #tpu.memory_space<vmem>>, %arg3: memref<16x128xbf16, #tpu.memory_space<vmem>>, %arg4: memref<3x3x128xf32, #tpu.memory_space<vmem>>, %arg5: memref<1x128xf32, #tpu.memory_space<vmem>>, %arg6: memref<1x128xf32, #tpu.memory_space<vmem>>, %arg7: memref<1x128xf32, #tpu.memory_space<vmem>>, %arg8: memref<1x128xf32, #tpu.memory_space<vmem>>, %arg9: memref<128x128xf32, #tpu.memory_space<vmem>>) attributes {dimension_semantics = [#tpu.dimension_semantics<arbitrary>], iteration_bounds = array<i64: 1>, scalar_prefetch = 0 : i64, scratch_operands = 0 : i64, tpu.core_type = #tpu.core_type<tc>, window_params = [{pipeline_mode = #tpu.pipeline_mode<synchronous>, transform_indices = @transform_0, window_bounds = array<i64: 1152, 16>}, {pipeline_mode = #tpu.pipeline_mode<synchronous>, transform_indices = @transform_1, window_bounds = array<i64: 1152, 1>}, {pipeline_mode = #tpu.pipeline_mode<synchronous>, transform_indices = @transform_2, window_bounds = array<i64: 16, 128>}, {pipeline_mode = #tpu.pipeline_mode<synchronous>, transform_indices = @transform_3, window_bounds = array<i64: 3, 3, 128>}, {pipeline_mode = #tpu.pipeline_mode<synchronous>, transform_indices = @transform_4, window_bounds = array<i64: 1, 128>}, {pipeline_mode = #tpu.pipeline_mode<synchronous>, transform_indices = @transform_5, window_bounds = array<i64: 1, 128>}, {pipeline_mode = #tpu.pipeline_mode<synchronous>, transform_indices = @transform_6, window_bounds = array<i64: 1, 128>}, {pipeline_mode = #tpu.pipeline_mode<synchronous>, transform_indices = @transform_7, window_bounds = array<i64: 1, 128>}, {pipeline_mode = #tpu.pipeline_mode<synchronous>, transform_indices = @transform_8, window_bounds = array<i64: 128, 128>}]} {
    %c0 = arith.constant 0 : index
    %c0_0 = arith.constant 0 : index
    %0 = vector.load %arg1[%c0, %c0_0] : memref<1152x16xbf16, #tpu.memory_space<vmem>>, vector<1152x16xbf16>
    %c0_1 = arith.constant 0 : index
    %c0_2 = arith.constant 0 : index
    %1 = vector.load %arg3[%c0_1, %c0_2] : memref<16x128xbf16, #tpu.memory_space<vmem>>, vector<16x128xbf16>
    %cst = arith.constant dense<0.000000e+00> : vector<1152x128xf32>
    %2 = tpu.matmul %0, %1, %cst {dimension_numbers = #tpu.dot_dimension_numbers<[1], [0], [0], [1], [0, 0, 1, 1], [], []>} : vector<1152x16xbf16>, vector<16x128xbf16>, vector<1152x128xf32> -> vector<1152x128xf32>
    %c0_3 = arith.constant 0 : index
    %c0_4 = arith.constant 0 : index
    %3 = vector.load %arg2[%c0_3, %c0_4] : memref<1152x1xf32, #tpu.memory_space<vmem>>, vector<1152x1xf32>
    %cst_5 = arith.constant dense<0.000000e+00> : vector<128xf32>
    %4 = vector.multi_reduction <add>, %2, %cst_5 [0] : vector<1152x128xf32> to vector<128xf32>
    %5 = vector.shape_cast %4 : vector<128xf32> to vector<1x128xf32>
    %cst_6 = arith.constant 5.120000e+02 : f32
    %6 = vector.broadcast %cst_6 : f32 to vector<1x128xf32>
    %7 = arith.divf %5, %6 : vector<1x128xf32>
    %8 = vector.broadcast %7 : vector<1x128xf32> to vector<1152x128xf32>
    %9 = arith.subf %2, %8 : vector<1152x128xf32>
    %10 = vector.broadcast %3 : vector<1152x1xf32> to vector<1152x128xf32>
    %11 = arith.mulf %9, %10 : vector<1152x128xf32>
    %12 = arith.mulf %11, %11 : vector<1152x128xf32>
    %cst_7 = arith.constant dense<0.000000e+00> : vector<128xf32>
    %13 = vector.multi_reduction <add>, %12, %cst_7 [0] : vector<1152x128xf32> to vector<128xf32>
    %14 = vector.shape_cast %13 : vector<128xf32> to vector<1x128xf32>
    %cst_8 = arith.constant 5.120000e+02 : f32
    %15 = vector.broadcast %cst_8 : f32 to vector<1x128xf32>
    %16 = arith.divf %14, %15 : vector<1x128xf32>
    %c0_9 = arith.constant 0 : index
    %c0_10 = arith.constant 0 : index
    %17 = vector.load %arg5[%c0_9, %c0_10] : memref<1x128xf32, #tpu.memory_space<vmem>>, vector<1x128xf32>
    %cst_11 = arith.constant 1.000000e-03 : f32
    %18 = vector.broadcast %cst_11 : f32 to vector<1x128xf32>
    %19 = arith.addf %16, %18 : vector<1x128xf32>
    %20 = math.rsqrt %19 : vector<1x128xf32>
    %21 = arith.mulf %17, %20 : vector<1x128xf32>
    %c0_12 = arith.constant 0 : index
    %c0_13 = arith.constant 0 : index
    %22 = vector.load %arg6[%c0_12, %c0_13] : memref<1x128xf32, #tpu.memory_space<vmem>>, vector<1x128xf32>
    %23 = arith.mulf %7, %21 : vector<1x128xf32>
    %24 = arith.subf %22, %23 : vector<1x128xf32>
    %25 = vector.broadcast %21 : vector<1x128xf32> to vector<1152x128xf32>
    %26 = arith.mulf %2, %25 : vector<1152x128xf32>
    %27 = vector.broadcast %24 : vector<1x128xf32> to vector<1152x128xf32>
    %28 = arith.addf %26, %27 : vector<1152x128xf32>
    %cst_14 = arith.constant 0.000000e+00 : f32
    %29 = vector.broadcast %cst_14 : f32 to vector<1152x128xf32>
    %30 = arith.maximumf %28, %29 : vector<1152x128xf32>
    %31 = vector.broadcast %3 : vector<1152x1xf32> to vector<1152x128xf32>
    %32 = arith.mulf %30, %31 : vector<1152x128xf32>
    %33 = vector.shape_cast %32 : vector<1152x128xf32> to vector<8x9x16x128xf32>
    %c0_15 = arith.constant 0 : index
    %c0_16 = arith.constant 0 : index
    %c0_17 = arith.constant 0 : index
    %34 = vector.load %arg4[%c0_15, %c0_16, %c0_17] : memref<3x3x128xf32, #tpu.memory_space<vmem>>, vector<3x3x128xf32>
    %cst_18 = arith.constant 0.000000e+00 : f32
    %35 = vector.broadcast %cst_18 : f32 to vector<2x8x8x128xf32>
    %36 = vector.extract_strided_slice %33 {offsets = [0, 0, 0, 0], sizes = [2, 8, 8, 128], strides = [1, 1, 1, 1]} : vector<8x9x16x128xf32> to vector<2x8x8x128xf32>
    %37 = vector.extract_strided_slice %34 {offsets = [0, 0, 0], sizes = [1, 1, 128], strides = [1, 1, 1]} : vector<3x3x128xf32> to vector<1x1x128xf32>
    %38 = vector.shape_cast %37 : vector<1x1x128xf32> to vector<128xf32>
    %39 = vector.shape_cast %38 : vector<128xf32> to vector<1x1x1x128xf32>
    %40 = vector.broadcast %39 : vector<1x1x1x128xf32> to vector<2x8x8x128xf32>
    %41 = arith.mulf %36, %40 : vector<2x8x8x128xf32>
    %42 = arith.addf %35, %41 : vector<2x8x8x128xf32>
    %43 = vector.extract_strided_slice %33 {offsets = [2, 0, 0, 0], sizes = [2, 8, 8, 128], strides = [1, 1, 1, 1]} : vector<8x9x16x128xf32> to vector<2x8x8x128xf32>
    %44 = vector.extract_strided_slice %34 {offsets = [0, 1, 0], sizes = [1, 1, 128], strides = [1, 1, 1]} : vector<3x3x128xf32> to vector<1x1x128xf32>
    %45 = vector.shape_cast %44 : vector<1x1x128xf32> to vector<128xf32>
    %46 = vector.shape_cast %45 : vector<128xf32> to vector<1x1x1x128xf32>
    %47 = vector.broadcast %46 : vector<1x1x1x128xf32> to vector<2x8x8x128xf32>
    %48 = arith.mulf %43, %47 : vector<2x8x8x128xf32>
    %49 = arith.addf %42, %48 : vector<2x8x8x128xf32>
    %50 = vector.extract_strided_slice %33 {offsets = [0, 0, 1, 0], sizes = [2, 8, 8, 128], strides = [1, 1, 1, 1]} : vector<8x9x16x128xf32> to vector<2x8x8x128xf32>
    %51 = vector.extract_strided_slice %34 {offsets = [0, 2, 0], sizes = [1, 1, 128], strides = [1, 1, 1]} : vector<3x3x128xf32> to vector<1x1x128xf32>
    %52 = vector.shape_cast %51 : vector<1x1x128xf32> to vector<128xf32>
    %53 = vector.shape_cast %52 : vector<128xf32> to vector<1x1x1x128xf32>
    %54 = vector.broadcast %53 : vector<1x1x1x128xf32> to vector<2x8x8x128xf32>
    %55 = arith.mulf %50, %54 : vector<2x8x8x128xf32>
    %56 = arith.addf %49, %55 : vector<2x8x8x128xf32>
    %57 = vector.extract_strided_slice %33 {offsets = [4, 0, 0, 0], sizes = [2, 8, 8, 128], strides = [1, 1, 1, 1]} : vector<8x9x16x128xf32> to vector<2x8x8x128xf32>
    %58 = vector.extract_strided_slice %34 {offsets = [1, 0, 0], sizes = [1, 1, 128], strides = [1, 1, 1]} : vector<3x3x128xf32> to vector<1x1x128xf32>
    %59 = vector.shape_cast %58 : vector<1x1x128xf32> to vector<128xf32>
    %60 = vector.shape_cast %59 : vector<128xf32> to vector<1x1x1x128xf32>
    %61 = vector.broadcast %60 : vector<1x1x1x128xf32> to vector<2x8x8x128xf32>
    %62 = arith.mulf %57, %61 : vector<2x8x8x128xf32>
    %63 = arith.addf %56, %62 : vector<2x8x8x128xf32>
    %64 = vector.extract_strided_slice %33 {offsets = [6, 0, 0, 0], sizes = [2, 8, 8, 128], strides = [1, 1, 1, 1]} : vector<8x9x16x128xf32> to vector<2x8x8x128xf32>
    %65 = vector.extract_strided_slice %34 {offsets = [1, 1, 0], sizes = [1, 1, 128], strides = [1, 1, 1]} : vector<3x3x128xf32> to vector<1x1x128xf32>
    %66 = vector.shape_cast %65 : vector<1x1x128xf32> to vector<128xf32>
    %67 = vector.shape_cast %66 : vector<128xf32> to vector<1x1x1x128xf32>
    %68 = vector.broadcast %67 : vector<1x1x1x128xf32> to vector<2x8x8x128xf32>
    %69 = arith.mulf %64, %68 : vector<2x8x8x128xf32>
    %70 = arith.addf %63, %69 : vector<2x8x8x128xf32>
    %71 = vector.extract_strided_slice %33 {offsets = [4, 0, 1, 0], sizes = [2, 8, 8, 128], strides = [1, 1, 1, 1]} : vector<8x9x16x128xf32> to vector<2x8x8x128xf32>
    %72 = vector.extract_strided_slice %34 {offsets = [1, 2, 0], sizes = [1, 1, 128], strides = [1, 1, 1]} : vector<3x3x128xf32> to vector<1x1x128xf32>
    %73 = vector.shape_cast %72 : vector<1x1x128xf32> to vector<128xf32>
    %74 = vector.shape_cast %73 : vector<128xf32> to vector<1x1x1x128xf32>
    %75 = vector.broadcast %74 : vector<1x1x1x128xf32> to vector<2x8x8x128xf32>
    %76 = arith.mulf %71, %75 : vector<2x8x8x128xf32>
    %77 = arith.addf %70, %76 : vector<2x8x8x128xf32>
    %78 = vector.extract_strided_slice %33 {offsets = [0, 1, 0, 0], sizes = [2, 8, 8, 128], strides = [1, 1, 1, 1]} : vector<8x9x16x128xf32> to vector<2x8x8x128xf32>
    %79 = vector.extract_strided_slice %34 {offsets = [2, 0, 0], sizes = [1, 1, 128], strides = [1, 1, 1]} : vector<3x3x128xf32> to vector<1x1x128xf32>
    %80 = vector.shape_cast %79 : vector<1x1x128xf32> to vector<128xf32>
    %81 = vector.shape_cast %80 : vector<128xf32> to vector<1x1x1x128xf32>
    %82 = vector.broadcast %81 : vector<1x1x1x128xf32> to vector<2x8x8x128xf32>
    %83 = arith.mulf %78, %82 : vector<2x8x8x128xf32>
    %84 = arith.addf %77, %83 : vector<2x8x8x128xf32>
    %85 = vector.extract_strided_slice %33 {offsets = [2, 1, 0, 0], sizes = [2, 8, 8, 128], strides = [1, 1, 1, 1]} : vector<8x9x16x128xf32> to vector<2x8x8x128xf32>
    %86 = vector.extract_strided_slice %34 {offsets = [2, 1, 0], sizes = [1, 1, 128], strides = [1, 1, 1]} : vector<3x3x128xf32> to vector<1x1x128xf32>
    %87 = vector.shape_cast %86 : vector<1x1x128xf32> to vector<128xf32>
    %88 = vector.shape_cast %87 : vector<128xf32> to vector<1x1x1x128xf32>
    %89 = vector.broadcast %88 : vector<1x1x1x128xf32> to vector<2x8x8x128xf32>
    %90 = arith.mulf %85, %89 : vector<2x8x8x128xf32>
    %91 = arith.addf %84, %90 : vector<2x8x8x128xf32>
    %92 = vector.extract_strided_slice %33 {offsets = [0, 1, 1, 0], sizes = [2, 8, 8, 128], strides = [1, 1, 1, 1]} : vector<8x9x16x128xf32> to vector<2x8x8x128xf32>
    %93 = vector.extract_strided_slice %34 {offsets = [2, 2, 0], sizes = [1, 1, 128], strides = [1, 1, 1]} : vector<3x3x128xf32> to vector<1x1x128xf32>
    %94 = vector.shape_cast %93 : vector<1x1x128xf32> to vector<128xf32>
    %95 = vector.shape_cast %94 : vector<128xf32> to vector<1x1x1x128xf32>
    %96 = vector.broadcast %95 : vector<1x1x1x128xf32> to vector<2x8x8x128xf32>
    %97 = arith.mulf %92, %96 : vector<2x8x8x128xf32>
    %98 = arith.addf %91, %97 : vector<2x8x8x128xf32>
    %99 = vector.shape_cast %98 : vector<2x8x8x128xf32> to vector<128x128xf32>
    %cst_19 = arith.constant dense<0.000000e+00> : vector<128xf32>
    %100 = vector.multi_reduction <add>, %99, %cst_19 [0] : vector<128x128xf32> to vector<128xf32>
    %101 = vector.shape_cast %100 : vector<128xf32> to vector<1x128xf32>
    %cst_20 = arith.constant 1.280000e+02 : f32
    %102 = vector.broadcast %cst_20 : f32 to vector<1x128xf32>
    %103 = arith.divf %101, %102 : vector<1x128xf32>
    %104 = vector.broadcast %103 : vector<1x128xf32> to vector<128x128xf32>
    %105 = arith.subf %99, %104 : vector<128x128xf32>
    %106 = arith.mulf %105, %105 : vector<128x128xf32>
    %cst_21 = arith.constant dense<0.000000e+00> : vector<128xf32>
    %107 = vector.multi_reduction <add>, %106, %cst_21 [0] : vector<128x128xf32> to vector<128xf32>
    %108 = vector.shape_cast %107 : vector<128xf32> to vector<1x128xf32>
    %cst_22 = arith.constant 1.280000e+02 : f32
    %109 = vector.broadcast %cst_22 : f32 to vector<1x128xf32>
    %110 = arith.divf %108, %109 : vector<1x128xf32>
    %c0_23 = arith.constant 0 : index
    %c0_24 = arith.constant 0 : index
    %111 = vector.load %arg7[%c0_23, %c0_24] : memref<1x128xf32, #tpu.memory_space<vmem>>, vector<1x128xf32>
    %cst_25 = arith.constant 1.000000e-03 : f32
    %112 = vector.broadcast %cst_25 : f32 to vector<1x128xf32>
    %113 = arith.addf %110, %112 : vector<1x128xf32>
    %114 = math.rsqrt %113 : vector<1x128xf32>
    %115 = arith.mulf %111, %114 : vector<1x128xf32>
    %c0_26 = arith.constant 0 : index
    %c0_27 = arith.constant 0 : index
    %116 = vector.load %arg8[%c0_26, %c0_27] : memref<1x128xf32, #tpu.memory_space<vmem>>, vector<1x128xf32>
    %117 = arith.mulf %103, %115 : vector<1x128xf32>
    %118 = arith.subf %116, %117 : vector<1x128xf32>
    %119 = vector.broadcast %115 : vector<1x128xf32> to vector<128x128xf32>
    %120 = arith.mulf %99, %119 : vector<128x128xf32>
    %121 = vector.broadcast %118 : vector<1x128xf32> to vector<128x128xf32>
    %122 = arith.addf %120, %121 : vector<128x128xf32>
    %cst_28 = arith.constant 0.000000e+00 : f32
    %123 = vector.broadcast %cst_28 : f32 to vector<128x128xf32>
    %124 = arith.maximumf %122, %123 : vector<128x128xf32>
    %c0_29 = arith.constant 0 : index
    %c0_30 = arith.constant 0 : index
    %125 = vector.load %arg9[%c0_29, %c0_30] : memref<128x128xf32, #tpu.memory_space<vmem>>, vector<128x128xf32>
    tpu.vector_store %arg9[%c0_29, %c0_30], %124 {strides = array<i32>} : memref<128x128xf32, #tpu.memory_space<vmem>>, vector<128x128xf32>,
    return
  }
  func.func @transform_0(%arg0: i32) -> (i32, i32) {
    %c0_i32 = arith.constant 0 : i32
    %c0_i32_0 = arith.constant 0 : i32
    %c0_i32_1 = arith.constant 0 : i32
    return %c0_i32, %c0_i32_0 : i32, i32
  }
  func.func @transform_1(%arg0: i32) -> (i32, i32) {
    %c0_i32 = arith.constant 0 : i32
    %c0_i32_0 = arith.constant 0 : i32
    %c0_i32_1 = arith.constant 0 : i32
    return %c0_i32, %c0_i32_0 : i32, i32
  }
  func.func @transform_2(%arg0: i32) -> (i32, i32) {
    %c0_i32 = arith.constant 0 : i32
    %c0_i32_0 = arith.constant 0 : i32
    %c0_i32_1 = arith.constant 0 : i32
    return %c0_i32, %c0_i32_0 : i32, i32
  }
  func.func @transform_3(%arg0: i32) -> (i32, i32, i32) {
    %c0_i32 = arith.constant 0 : i32
    %c0_i32_0 = arith.constant 0 : i32
    %c0_i32_1 = arith.constant 0 : i32
    %c0_i32_2 = arith.constant 0 : i32
    return %c0_i32, %c0_i32_0, %c0_i32_1 : i32, i32, i32
  }
  func.func @transform_4(%arg0: i32) -> (i32, i32) {
    %c0_i32 = arith.constant 0 : i32
    %c0_i32_0 = arith.constant 0 : i32
    %c0_i32_1 = arith.constant 0 : i32
    return %c0_i32, %c0_i32_0 : i32, i32
  }
  func.func @transform_5(%arg0: i32) -> (i32, i32) {
    %c0_i32 = arith.constant 0 : i32
    %c0_i32_0 = arith.constant 0 : i32
    %c0_i32_1 = arith.constant 0 : i32
    return %c0_i32, %c0_i32_0 : i32, i32
  }
  func.func @transform_6(%arg0: i32) -> (i32, i32) {
    %c0_i32 = arith.constant 0 : i32
    %c0_i32_0 = arith.constant 0 : i32
    %c0_i32_1 = arith.constant 0 : i32
    return %c0_i32, %c0_i32_0 : i32, i32
  }
  func.func @transform_7(%arg0: i32) -> (i32, i32) {
    %c0_i32 = arith.constant 0 : i32
    %c0_i32_0 = arith.constant 0 : i32
    %c0_i32_1 = arith.constant 0 : i32
    return %c0_i32, %c0_i32_0 : i32, i32
  }
  func.func @transform_8(%arg0: i32) -> (i32, i32) {
    %c0_i32 = arith.constant 0 : i32
    %c0_i32_0 = arith.constant 0 : i32
    %c0_i32_1 = arith.constant 0 : i32
    return %c0_i32, %c0_i32_0 : i32, i32
  }
}

</mosaic_0001>

<llo_original>
// kernel: forward.1
$region0: #{forward.1}
  #allocation0 [shape = 'u32[]', space=smem, size = 0x4, offset = 0x4, fixed_abs, tag = 'smem constant byte address 0x4 - core index']
  #allocation1 [shape = 'u32[72,128]{1,0:T(1,128)}', space=vmem, size = 0x9000, scoped, tag = 'internal scratch']
  %s0 = inlined_call_operand.vmem [shape: bf16[1152,16], index: 0, kind: input, shape index: {}]
  %s1 = inlined_call_operand.vmem [shape: f32[1152,1], index: 1, kind: input, shape index: {}]
  %s2 = inlined_call_operand.vmem [shape: bf16[16,128], index: 2, kind: input, shape index: {}]
  %s3 = inlined_call_operand.vmem [shape: f32[3,3,128], index: 3, kind: input, shape index: {}]
  %s4 = inlined_call_operand.vmem [shape: f32[1,128], index: 4, kind: input, shape index: {}]
  %s5 = inlined_call_operand.vmem [shape: f32[1,128], index: 5, kind: input, shape index: {}]
  %s6 = inlined_call_operand.vmem [shape: f32[1,128], index: 6, kind: input, shape index: {}]
  %s7 = inlined_call_operand.vmem [shape: f32[1,128], index: 7, kind: input, shape index: {}]
  %s8 = inlined_call_operand.hbm [shape: f32[128,128], index: 8, kind: output, shape index: {}]
  %s9 = sld [smem:[#allocation0]]
  $region42: #{forward.1} parent=0
    _
  %s11 = ssub.s32 1, %s9
  %s12 = scalar_select 0, %s11, %s9
  $region1: #{forward.1} parent=0
    #allocation2 [shape = 'u8[65536]{0}', space=vmem, size = 0x10000, scoped, tag = 'output window, operand 0, single buffered']
    #allocation3 [shape = 's32[1]{0}', space=sflag, size = 0x4, scoped, tag = 'scoped memory for forward.1']
    %13 = vsyncpa [#allocation3], 0
    // Predicated region
    $region2: #{forward.1} parent=1 // pred_check
      _
    $region3: #{forward.1} parent=1 // pred_check_branch
      %15 = sbr.rel (0) target = $region5
    $region4: #{forward.1} parent=1 // pred_region
      _
    $region5: #{forward.1} parent=1 // pred_fallthru
      _
    // Predicated region
    $region6: #{forward.1} parent=1 // pred_check
      _
    $region7: #{forward.1} parent=1 // pred_check_branch
      %17 = sbr.rel (0) target = $region9
    $region8: #{forward.1} parent=1 // pred_region
      _
    $region9: #{forward.1} parent=1 // pred_fallthru
      _
    // Predicated region
    $region10: #{forward.1} parent=1 // pred_check
      _
    $region11: #{forward.1} parent=1 // pred_check_branch
      %19 = sbr.rel (0) target = $region13
    $region12: #{forward.1} parent=1 // pred_region
      _
    $region13: #{forward.1} parent=1 // pred_fallthru
      _
    // Predicated region
    $region14: #{forward.1} parent=1 // pred_check
      _
    $region15: #{forward.1} parent=1 // pred_check_branch
      %21 = sbr.rel (0) target = $region17
    $region16: #{forward.1} parent=1 // pred_region
      _
    $region17: #{forward.1} parent=1 // pred_fallthru
      _
    // Predicated region
    $region18: #{forward.1} parent=1 // pred_check
      _
    $region19: #{forward.1} parent=1 // pred_check_branch
      %23 = sbr.rel (0) target = $region21
    $region20: #{forward.1} parent=1 // pred_region
      _
    $region21: #{forward.1} parent=1 // pred_fallthru
      _
    // Predicated region
    $region22: #{forward.1} parent=1 // pred_check
      _
    $region23: #{forward.1} parent=1 // pred_check_branch
      %25 = sbr.rel (0) target = $region25
    $region24: #{forward.1} parent=1 // pred_region
      _
    $region25: #{forward.1} parent=1 // pred_fallthru
      _
    // Predicated region
    $region26: #{forward.1} parent=1 // pred_check
      _
    $region27: #{forward.1} parent=1 // pred_check_branch
      %27 = sbr.rel (0) target = $region29
    $region28: #{forward.1} parent=1 // pred_region
      _
    $region29: #{forward.1} parent=1 // pred_fallthru
      _
    // Predicated region
    $region30: #{forward.1} parent=1 // pred_check
      _
    $region31: #{forward.1} parent=1 // pred_check_branch
      %29 = sbr.rel (0) target = $region33
    $region32: #{forward.1} parent=1 // pred_region
      _
    $region33: #{forward.1} parent=1 // pred_fallthru
      _
    %v31 = vld [vmem:[%s0] sm:$0xf]
    %v32 = vld [vmem:[%s0 + $0x4] sm:$0xf]
    %v33 = vld [vmem:[%s0 + $0x8] sm:$0xf]
    %v34 = vld [vmem:[%s0 + $0xc] sm:$0xf]
    %v35 = vld [vmem:[%s0 + $0x10] sm:$0xf]
    %v36 = vld [vmem:[%s0 + $0x14] sm:$0xf]
    %v37 = vld [vmem:[%s0 + $0x18] sm:$0xf]
    %v38 = vld [vmem:[%s0 + $0x1c] sm:$0xf]
    %v39 = vld [vmem:[%s0 + $0x20] sm:$0xf]
    %v40 = vld [vmem:[%s0 + $0x24] sm:$0xf]
    %v41 = vld [vmem:[%s0 + $0x28] sm:$0xf]
    %v42 = vld [vmem:[%s0 + $0x2c] sm:$0xf]
    %v43 = vld [vmem:[%s0 + $0x30] sm:$0xf]
    %v44 = vld [vmem:[%s0 + $0x34] sm:$0xf]
    %v45 = vld [vmem:[%s0 + $0x38] sm:$0xf]
    %v46 = vld [vmem:[%s0 + $0x3c] sm:$0xf]
    %v47 = vld [vmem:[%s0 + $0x40] sm:$0xf]
    %v48 = vld [vmem:[%s0 + $0x44] sm:$0xf]
    %v49 = vld [vmem:[%s0 + $0x48] sm:$0xf]
    %v50 = vld [vmem:[%s0 + $0x4c] sm:$0xf]
    %v51 = vld [vmem:[%s0 + $0x50] sm:$0xf]
    %v52 = vld [vmem:[%s0 + $0x54] sm:$0xf]
    %v53 = vld [vmem:[%s0 + $0x58] sm:$0xf]
    %v54 = vld [vmem:[%s0 + $0x5c] sm:$0xf]
    %v55 = vld [vmem:[%s0 + $0x60] sm:$0xf]
    %v56 = vld [vmem:[%s0 + $0x64] sm:$0xf]
    %v57 = vld [vmem:[%s0 + $0x68] sm:$0xf]
    %v58 = vld [vmem:[%s0 + $0x6c] sm:$0xf]
    %v59 = vld [vmem:[%s0 + $0x70] sm:$0xf]
    %v60 = vld [vmem:[%s0 + $0x74] sm:$0xf]
    %v61 = vld [vmem:[%s0 + $0x78] sm:$0xf]
    %v62 = vld [vmem:[%s0 + $0x7c] sm:$0xf]
    %v63 = vld [vmem:[%s0 + $0x80] sm:$0xf]
    %v64 = vld [vmem:[%s0 + $0x84] sm:$0xf]
    %v65 = vld [vmem:[%s0 + $0x88] sm:$0xf]
    %v66 = vld [vmem:[%s0 + $0x8c] sm:$0xf]
    %v67 = vld [vmem:[%s0 + $0x90] sm:$0xf]
    %v68 = vld [vmem:[%s0 + $0x94] sm:$0xf]
    %v69 = vld [vmem:[%s0 + $0x98] sm:$0xf]
    %v70 = vld [vmem:[%s0 + $0x9c] sm:$0xf]
    %v71 = vld [vmem:[%s0 + $0xa0] sm:$0xf]
    %v72 = vld [vmem:[%s0 + $0xa4] sm:$0xf]
    %v73 = vld [vmem:[%s0 + $0xa8] sm:$0xf]
    %v74 = vld [vmem:[%s0 + $0xac] sm:$0xf]
    %v75 = vld [vmem:[%s0 + $0xb0] sm:$0xf]
    %v76 = vld [vmem:[%s0 + $0xb4] sm:$0xf]
    %v77 = vld [vmem:[%s0 + $0xb8] sm:$0xf]
    %v78 = vld [vmem:[%s0 + $0xbc] sm:$0xf]
    %v79 = vld [vmem:[%s0 + $0xc0] sm:$0xf]
    %v80 = vld [vmem:[%s0 + $0xc4] sm:$0xf]
    %v81 = vld [vmem:[%s0 + $0xc8] sm:$0xf]
    %v82 = vld [vmem:[%s0 + $0xcc] sm:$0xf]
    %v83 = vld [vmem:[%s0 + $0xd0] sm:$0xf]
    %v84 = vld [vmem:[%s0 + $0xd4] sm:$0xf]
    %v85 = vld [vmem:[%s0 + $0xd8] sm:$0xf]
    %v86 = vld [vmem:[%s0 + $0xdc] sm:$0xf]
    %v87 = vld [vmem:[%s0 + $0xe0] sm:$0xf]
    %v88 = vld [vmem:[%s0 + $0xe4] sm:$0xf]
    %v89 = vld [vmem:[%s0 + $0xe8] sm:$0xf]
    %v90 = vld [vmem:[%s0 + $0xec] sm:$0xf]
    %v91 = vld [vmem:[%s0 + $0xf0] sm:$0xf]
    %v92 = vld [vmem:[%s0 + $0xf4] sm:$0xf]
    %v93 = vld [vmem:[%s0 + $0xf8] sm:$0xf]
    %v94 = vld [vmem:[%s0 + $0xfc] sm:$0xf]
    %v95 = vld [vmem:[%s0 + $0x100] sm:$0xf]
    %v96 = vld [vmem:[%s0 + $0x104] sm:$0xf]
    %v97 = vld [vmem:[%s0 + $0x108] sm:$0xf]
    %v98 = vld [vmem:[%s0 + $0x10c] sm:$0xf]
    %v99 = vld [vmem:[%s0 + $0x110] sm:$0xf]
    %v100 = vld [vmem:[%s0 + $0x114] sm:$0xf]
    %v101 = vld [vmem:[%s0 + $0x118] sm:$0xf]
    %v102 = vld [vmem:[%s0 + $0x11c] sm:$0xf]
    %v103 = vld [vmem:[%s0 + $0x120] sm:$0xf]
    %v104 = vld [vmem:[%s0 + $0x124] sm:$0xf]
    %v105 = vld [vmem:[%s0 + $0x128] sm:$0xf]
    %v106 = vld [vmem:[%s0 + $0x12c] sm:$0xf]
    %v107 = vld [vmem:[%s0 + $0x130] sm:$0xf]
    %v108 = vld [vmem:[%s0 + $0x134] sm:$0xf]
    %v109 = vld [vmem:[%s0 + $0x138] sm:$0xf]
    %v110 = vld [vmem:[%s0 + $0x13c] sm:$0xf]
    %v111 = vld [vmem:[%s0 + $0x140] sm:$0xf]
    %v112 = vld [vmem:[%s0 + $0x144] sm:$0xf]
    %v113 = vld [vmem:[%s0 + $0x148] sm:$0xf]
    %v114 = vld [vmem:[%s0 + $0x14c] sm:$0xf]
    %v115 = vld [vmem:[%s0 + $0x150] sm:$0xf]
    %v116 = vld [vmem:[%s0 + $0x154] sm:$0xf]
    %v117 = vld [vmem:[%s0 + $0x158] sm:$0xf]
    %v118 = vld [vmem:[%s0 + $0x15c] sm:$0xf]
    %v119 = vld [vmem:[%s0 + $0x160] sm:$0xf]
    %v120 = vld [vmem:[%s0 + $0x164] sm:$0xf]
    %v121 = vld [vmem:[%s0 + $0x168] sm:$0xf]
    %v122 = vld [vmem:[%s0 + $0x16c] sm:$0xf]
    %v123 = vld [vmem:[%s0 + $0x170] sm:$0xf]
    %v124 = vld [vmem:[%s0 + $0x174] sm:$0xf]
    %v125 = vld [vmem:[%s0 + $0x178] sm:$0xf]
    %v126 = vld [vmem:[%s0 + $0x17c] sm:$0xf]
    %v127 = vld [vmem:[%s0 + $0x180] sm:$0xf]
    %v128 = vld [vmem:[%s0 + $0x184] sm:$0xf]
    %v129 = vld [vmem:[%s0 + $0x188] sm:$0xf]
    %v130 = vld [vmem:[%s0 + $0x18c] sm:$0xf]
    %v131 = vld [vmem:[%s0 + $0x190] sm:$0xf]
    %v132 = vld [vmem:[%s0 + $0x194] sm:$0xf]
    %v133 = vld [vmem:[%s0 + $0x198] sm:$0xf]
    %v134 = vld [vmem:[%s0 + $0x19c] sm:$0xf]
    %v135 = vld [vmem:[%s0 + $0x1a0] sm:$0xf]
    %v136 = vld [vmem:[%s0 + $0x1a4] sm:$0xf]
    %v137 = vld [vmem:[%s0 + $0x1a8] sm:$0xf]
    %v138 = vld [vmem:[%s0 + $0x1ac] sm:$0xf]
    %v139 = vld [vmem:[%s0 + $0x1b0] sm:$0xf]
    %v140 = vld [vmem:[%s0 + $0x1b4] sm:$0xf]
    %v141 = vld [vmem:[%s0 + $0x1b8] sm:$0xf]
    %v142 = vld [vmem:[%s0 + $0x1bc] sm:$0xf]
    %v143 = vld [vmem:[%s0 + $0x1c0] sm:$0xf]
    %v144 = vld [vmem:[%s0 + $0x1c4] sm:$0xf]
    %v145 = vld [vmem:[%s0 + $0x1c8] sm:$0xf]
    %v146 = vld [vmem:[%s0 + $0x1cc] sm:$0xf]
    %v147 = vld [vmem:[%s0 + $0x1d0] sm:$0xf]
    %v148 = vld [vmem:[%s0 + $0x1d4] sm:$0xf]
    %v149 = vld [vmem:[%s0 + $0x1d8] sm:$0xf]
    %v150 = vld [vmem:[%s0 + $0x1dc] sm:$0xf]
    %v151 = vld [vmem:[%s0 + $0x1e0] sm:$0xf]
    %v152 = vld [vmem:[%s0 + $0x1e4] sm:$0xf]
    %v153 = vld [vmem:[%s0 + $0x1e8] sm:$0xf]
    %v154 = vld [vmem:[%s0 + $0x1ec] sm:$0xf]
    %v155 = vld [vmem:[%s0 + $0x1f0] sm:$0xf]
    %v156 = vld [vmem:[%s0 + $0x1f4] sm:$0xf]
    %v157 = vld [vmem:[%s0 + $0x1f8] sm:$0xf]
    %v158 = vld [vmem:[%s0 + $0x1fc] sm:$0xf]
    %v159 = vld [vmem:[%s0 + $0x200] sm:$0xf]
    %v160 = vld [vmem:[%s0 + $0x204] sm:$0xf]
    %v161 = vld [vmem:[%s0 + $0x208] sm:$0xf]
    %v162 = vld [vmem:[%s0 + $0x20c] sm:$0xf]
    %v163 = vld [vmem:[%s0 + $0x210] sm:$0xf]
    %v164 = vld [vmem:[%s0 + $0x214] sm:$0xf]
    %v165 = vld [vmem:[%s0 + $0x218] sm:$0xf]
    %v166 = vld [vmem:[%s0 + $0x21c] sm:$0xf]
    %v167 = vld [vmem:[%s0 + $0x220] sm:$0xf]
    %v168 = vld [vmem:[%s0 + $0x224] sm:$0xf]
    %v169 = vld [vmem:[%s0 + $0x228] sm:$0xf]
    %v170 = vld [vmem:[%s0 + $0x22c] sm:$0xf]
    %v171 = vld [vmem:[%s0 + $0x230] sm:$0xf]
    %v172 = vld [vmem:[%s0 + $0x234] sm:$0xf]
    %v173 = vld [vmem:[%s0 + $0x238] sm:$0xf]
    %v174 = vld [vmem:[%s0 + $0x23c] sm:$0xf]
    %v175 = vld [vmem:[%s2] sm:$0xf]
    %v176 = vld [vmem:[%s2 + $0x4] sm:$0xf]
    %v321 = vunpack.c.l.b16 %v31
    %v322 = vunpack.c.l.b16 %v32
    %v323 = vunpack.c.l.b16 %v33
    %v324 = vunpack.c.l.b16 %v34
    %v325 = vunpack.c.l.b16 %v35
    %v326 = vunpack.c.l.b16 %v36
    %v327 = vunpack.c.l.b16 %v37
    %v328 = vunpack.c.l.b16 %v38
    %v329 = vunpack.c.l.b16 %v39
    %v330 = vunpack.c.l.b16 %v40
    %v331 = vunpack.c.l.b16 %v41
    %v332 = vunpack.c.l.b16 %v42
    %v333 = vunpack.c.l.b16 %v43
    %v334 = vunpack.c.l.b16 %v44
    %v335 = vunpack.c.l.b16 %v45
    %v336 = vunpack.c.l.b16 %v46
    %v337 = vunpack.c.l.b16 %v47
    %v338 = vunpack.c.l.b16 %v48
    %v339 = vunpack.c.l.b16 %v49
    %v340 = vunpack.c.l.b16 %v50
    %v341 = vunpack.c.l.b16 %v51
    %v342 = vunpack.c.l.b16 %v52
    %v343 = vunpack.c.l.b16 %v53
    %v344 = vunpack.c.l.b16 %v54
    %v345 = vunpack.c.l.b16 %v55
    %v346 = vunpack.c.l.b16 %v56
    %v347 = vunpack.c.l.b16 %v57
    %v348 = vunpack.c.l.b16 %v58
    %v349 = vunpack.c.l.b16 %v59
    %v350 = vunpack.c.l.b16 %v60
    %v351 = vunpack.c.l.b16 %v61
    %v352 = vunpack.c.l.b16 %v62
    %v353 = vunpack.c.l.b16 %v63
    %v354 = vunpack.c.l.b16 %v64
    %v355 = vunpack.c.l.b16 %v65
    %v356 = vunpack.c.l.b16 %v66
    %v357 = vunpack.c.l.b16 %v67
    %v358 = vunpack.c.l.b16 %v68
    %v359 = vunpack.c.l.b16 %v69
    %v360 = vunpack.c.l.b16 %v70
    %v361 = vunpack.c.l.b16 %v71
    %v362 = vunpack.c.l.b16 %v72
    %v363 = vunpack.c.l.b16 %v73
    %v364 = vunpack.c.l.b16 %v74
    %v365 = vunpack.c.l.b16 %v75
    %v366 = vunpack.c.l.b16 %v76
    %v367 = vunpack.c.l.b16 %v77
    %v368 = vunpack.c.l.b16 %v78
    %v369 = vunpack.c.l.b16 %v79
    %v370 = vunpack.c.l.b16 %v80
    %v371 = vunpack.c.l.b16 %v81
    %v372 = vunpack.c.l.b16 %v82
    %v373 = vunpack.c.l.b16 %v83
    %v374 = vunpack.c.l.b16 %v84
    %v375 = vunpack.c.l.b16 %v85
    %v376 = vunpack.c.l.b16 %v86
    %v377 = vunpack.c.l.b16 %v87
    %v378 = vunpack.c.l.b16 %v88
    %v379 = vunpack.c.l.b16 %v89
    %v380 = vunpack.c.l.b16 %v90
    %v381 = vunpack.c.l.b16 %v91
    %v382 = vunpack.c.l.b16 %v92
    %v383 = vunpack.c.l.b16 %v93
    %v384 = vunpack.c.l.b16 %v94
    %v385 = vunpack.c.l.b16 %v95
    %v386 = vunpack.c.l.b16 %v96
    %v387 = vunpack.c.l.b16 %v97
    %v388 = vunpack.c.l.b16 %v98
    %v389 = vunpack.c.l.b16 %v99
    %v390 = vunpack.c.l.b16 %v100
    %v391 = vunpack.c.l.b16 %v101
    %v392 = vunpack.c.l.b16 %v102
    %v393 = vunpack.c.l.b16 %v103
    %v394 = vunpack.c.l.b16 %v104
    %v395 = vunpack.c.l.b16 %v105
    %v396 = vunpack.c.l.b16 %v106
    %v397 = vunpack.c.l.b16 %v107
    %v398 = vunpack.c.l.b16 %v108
    %v399 = vunpack.c.l.b16 %v109
    %v400 = vunpack.c.l.b16 %v110
    %v401 = vunpack.c.l.b16 %v111
    %v402 = vunpack.c.l.b16 %v112
    %v403 = vunpack.c.l.b16 %v113
    %v404 = vunpack.c.l.b16 %v114
    %v405 = vunpack.c.l.b16 %v115
    %v406 = vunpack.c.l.b16 %v116
    %v407 = vunpack.c.l.b16 %v117
    %v408 = vunpack.c.l.b16 %v118
    %v409 = vunpack.c.l.b16 %v119
    %v410 = vunpack.c.l.b16 %v120
    %v411 = vunpack.c.l.b16 %v121
    %v412 = vunpack.c.l.b16 %v122
    %v413 = vunpack.c.l.b16 %v123
    %v414 = vunpack.c.l.b16 %v124
    %v415 = vunpack.c.l.b16 %v125
    %v416 = vunpack.c.l.b16 %v126
    %v417 = vunpack.c.l.b16 %v127
    %v418 = vunpack.c.l.b16 %v128
    %v419 = vunpack.c.l.b16 %v129
    %v420 = vunpack.c.l.b16 %v130
    %v421 = vunpack.c.l.b16 %v131
    %v422 = vunpack.c.l.b16 %v132
    %v423 = vunpack.c.l.b16 %v133
    %v424 = vunpack.c.l.b16 %v134
    %v425 = vunpack.c.l.b16 %v135
    %v426 = vunpack.c.l.b16 %v136
    %v427 = vunpack.c.l.b16 %v137
    %v428 = vunpack.c.l.b16 %v138
    %v429 = vunpack.c.l.b16 %v139
    %v430 = vunpack.c.l.b16 %v140
    %v431 = vunpack.c.l.b16 %v141
    %v432 = vunpack.c.l.b16 %v142
    %v433 = vunpack.c.l.b16 %v143
    %v434 = vunpack.c.l.b16 %v144
    %v435 = vunpack.c.l.b16 %v145
    %v436 = vunpack.c.l.b16 %v146
    %v437 = vunpack.c.l.b16 %v147
    %v438 = vunpack.c.l.b16 %v148
    %v439 = vunpack.c.l.b16 %v149
    %v440 = vunpack.c.l.b16 %v150
    %v441 = vunpack.c.l.b16 %v151
    %v442 = vunpack.c.l.b16 %v152
    %v443 = vunpack.c.l.b16 %v153
    %v444 = vunpack.c.l.b16 %v154
    %v445 = vunpack.c.l.b16 %v155
    %v446 = vunpack.c.l.b16 %v156
    %v447 = vunpack.c.l.b16 %v157
    %v448 = vunpack.c.l.b16 %v158
    %v449 = vunpack.c.l.b16 %v159
    %v450 = vunpack.c.l.b16 %v160
    %v451 = vunpack.c.l.b16 %v161
    %v452 = vunpack.c.l.b16 %v162
    %v453 = vunpack.c.l.b16 %v163
    %v454 = vunpack.c.l.b16 %v164
    %v455 = vunpack.c.l.b16 %v165
    %v456 = vunpack.c.l.b16 %v166
    %v457 = vunpack.c.l.b16 %v167
    %v458 = vunpack.c.l.b16 %v168
    %v459 = vunpack.c.l.b16 %v169
    %v460 = vunpack.c.l.b16 %v170
    %v461 = vunpack.c.l.b16 %v171
    %v462 = vunpack.c.l.b16 %v172
    %v463 = vunpack.c.l.b16 %v173
    %v464 = vunpack.c.l.b16 %v174
    %v465 = vpack.c.b16 %v322, %v321
    %v466 = vpack.c.b16 %v324, %v323
    %v467 = vpack.c.b16 %v326, %v325
    %v468 = vpack.c.b16 %v328, %v327
    %v469 = vpack.c.b16 %v330, %v329
    %v470 = vpack.c.b16 %v332, %v331
    %v471 = vpack.c.b16 %v334, %v333
    %v472 = vpack.c.b16 %v336, %v335
    %v473 = vpack.c.b16 %v338, %v337
    %v474 = vpack.c.b16 %v340, %v339
    %v475 = vpack.c.b16 %v342, %v341
    %v476 = vpack.c.b16 %v344, %v343
    %v477 = vpack.c.b16 %v346, %v345
    %v478 = vpack.c.b16 %v348, %v347
    %v479 = vpack.c.b16 %v350, %v349
    %v480 = vpack.c.b16 %v352, %v351
    %v481 = vpack.c.b16 %v354, %v353
    %v482 = vpack.c.b16 %v356, %v355
    %v483 = vpack.c.b16 %v358, %v357
    %v484 = vpack.c.b16 %v360, %v359
    %v485 = vpack.c.b16 %v362, %v361
    %v486 = vpack.c.b16 %v364, %v363
    %v487 = vpack.c.b16 %v366, %v365
    %v488 = vpack.c.b16 %v368, %v367
    %v489 = vpack.c.b16 %v370, %v369
    %v490 = vpack.c.b16 %v372, %v371
    %v491 = vpack.c.b16 %v374, %v373
    %v492 = vpack.c.b16 %v376, %v375
    %v493 = vpack.c.b16 %v378, %v377
    %v494 = vpack.c.b16 %v380, %v379
    %v495 = vpack.c.b16 %v382, %v381
    %v496 = vpack.c.b16 %v384, %v383
    %v497 = vpack.c.b16 %v386, %v385
    %v498 = vpack.c.b16 %v388, %v387
    %v499 = vpack.c.b16 %v390, %v389
    %v500 = vpack.c.b16 %v392, %v391
    %v501 = vpack.c.b16 %v394, %v393
    %v502 = vpack.c.b16 %v396, %v395
    %v503 = vpack.c.b16 %v398, %v397
    %v504 = vpack.c.b16 %v400, %v399
    %v505 = vpack.c.b16 %v402, %v401
    %v506 = vpack.c.b16 %v404, %v403
    %v507 = vpack.c.b16 %v406, %v405
    %v508 = vpack.c.b16 %v408, %v407
    %v509 = vpack.c.b16 %v410, %v409
    %v510 = vpack.c.b16 %v412, %v411
    %v511 = vpack.c.b16 %v414, %v413
    %v512 = vpack.c.b16 %v416, %v415
    %v513 = vpack.c.b16 %v418, %v417
    %v514 = vpack.c.b16 %v420, %v419
    %v515 = vpack.c.b16 %v422, %v421
    %v516 = vpack.c.b16 %v424, %v423
    %v517 = vpack.c.b16 %v426, %v425
    %v518 = vpack.c.b16 %v428, %v427
    %v519 = vpack.c.b16 %v430, %v429
    %v520 = vpack.c.b16 %v432, %v431
    %v521 = vpack.c.b16 %v434, %v433
    %v522 = vpack.c.b16 %v436, %v435
    %v523 = vpack.c.b16 %v438, %v437
    %v524 = vpack.c.b16 %v440, %v439
    %v525 = vpack.c.b16 %v442, %v441
    %v526 = vpack.c.b16 %v444, %v443
    %v527 = vpack.c.b16 %v446, %v445
    %v528 = vpack.c.b16 %v448, %v447
    %v529 = vpack.c.b16 %v450, %v449
    %v530 = vpack.c.b16 %v452, %v451
    %v531 = vpack.c.b16 %v454, %v453
    %v532 = vpack.c.b16 %v456, %v455
    %v533 = vpack.c.b16 %v458, %v457
    %v534 = vpack.c.b16 %v460, %v459
    %v535 = vpack.c.b16 %v462, %v461
    %v536 = vpack.c.b16 %v464, %v463
    %v539 = vunpack.c.l.b16 %v175
    %v540 = vunpack.c.l.b16 %v176
    %v541 = vpack.c.b16 %v540, %v539
    %vm543 = vcmask 130048
    %v545 = vsel %vm543, %v465, 0
    %v548 = vsel %vm543, %v466, 0
    %v551 = vsel %vm543, %v467, 0
    %v554 = vsel %vm543, %v468, 0
    %v557 = vsel %vm543, %v469, 0
    %v560 = vsel %vm543, %v470, 0
    %v563 = vsel %vm543, %v471, 0
    %v566 = vsel %vm543, %v472, 0
    %v569 = vsel %vm543, %v473, 0
    %v572 = vsel %vm543, %v474, 0
    %v575 = vsel %vm543, %v475, 0
    %v578 = vsel %vm543, %v476, 0
    %v581 = vsel %vm543, %v477, 0
    %v584 = vsel %vm543, %v478, 0
    %v587 = vsel %vm543, %v479, 0
    %v590 = vsel %vm543, %v480, 0
    %v593 = vsel %vm543, %v481, 0
    %v596 = vsel %vm543, %v482, 0
    %v599 = vsel %vm543, %v483, 0
    %v602 = vsel %vm543, %v484, 0
    %v605 = vsel %vm543, %v485, 0
    %v608 = vsel %vm543, %v486, 0
    %v611 = vsel %vm543, %v487, 0
    %v614 = vsel %vm543, %v488, 0
    %v617 = vsel %vm543, %v489, 0
    %v620 = vsel %vm543, %v490, 0
    %v623 = vsel %vm543, %v491, 0
    %v626 = vsel %vm543, %v492, 0
    %v629 = vsel %vm543, %v493, 0
    %v632 = vsel %vm543, %v494, 0
    %v635 = vsel %vm543, %v495, 0
    %v638 = vsel %vm543, %v496, 0
    %v641 = vsel %vm543, %v497, 0
    %v644 = vsel %vm543, %v498, 0
    %v647 = vsel %vm543, %v499, 0
    %v650 = vsel %vm543, %v500, 0
    %v653 = vsel %vm543, %v501, 0
    %v656 = vsel %vm543, %v502, 0
    %v659 = vsel %vm543, %v503, 0
    %v662 = vsel %vm543, %v504, 0
    %v665 = vsel %vm543, %v505, 0
    %v668 = vsel %vm543, %v506, 0
    %v671 = vsel %vm543, %v507, 0
    %v674 = vsel %vm543, %v508, 0
    %v677 = vsel %vm543, %v509, 0
    %v680 = vsel %vm543, %v510, 0
    %v683 = vsel %vm543, %v511, 0
    %v686 = vsel %vm543, %v512, 0
    %v689 = vsel %vm543, %v513, 0
    %v692 = vsel %vm543, %v514, 0
    %v695 = vsel %vm543, %v515, 0
    %v698 = vsel %vm543, %v516, 0
    %v701 = vsel %vm543, %v517, 0
    %v704 = vsel %vm543, %v518, 0
    %v707 = vsel %vm543, %v519, 0
    %v710 = vsel %vm543, %v520, 0
    %v713 = vsel %vm543, %v521, 0
    %v716 = vsel %vm543, %v522, 0
    %v719 = vsel %vm543, %v523, 0
    %v722 = vsel %vm543, %v524, 0
    %v725 = vsel %vm543, %v525, 0
    %v728 = vsel %vm543, %v526, 0
    %v731 = vsel %vm543, %v527, 0
    %v734 = vsel %vm543, %v528, 0
    %v737 = vsel %vm543, %v529, 0
    %v740 = vsel %vm543, %v530, 0
    %v743 = vsel %vm543, %v531, 0
    %v746 = vsel %vm543, %v532, 0
    %v749 = vsel %vm543, %v533, 0
    %v752 = vsel %vm543, %v534, 0
    %v755 = vsel %vm543, %v535, 0
    %v758 = vsel %vm543, %v536, 0
    %760 = vmatpush.bf16.msra.mxu0 0
    %761 = vmatpush.bf16.msra.mxu0 0
    %762 = vmatpush.bf16.msra.mxu0 0
    %763 = vmatpush.bf16.msra.mxu0 0
    %764 = vmatpush.bf16.msra.mxu0 0
    %765 = vmatpush.bf16.msra.mxu0 0
    %766 = vmatpush.bf16.msra.mxu0 0
    %767 = vmatpush.bf16.msra.mxu0 %v541
    %768 = vmatmul.bf16.gmra.mxu0 %v545
    %v769 = vpop.f32.mrf.mxu0
    %v770 = vadd.f32 0.0, %v769
    %v771 = vpop.f32.mrf.mxu0
    %v772 = vadd.f32 0.0, %v771
    %773 = vmatmul.bf16.gmra.mxu0 %v548
    %v774 = vpop.f32.mrf.mxu0
    %v775 = vadd.f32 0.0, %v774
    %v776 = vpop.f32.mrf.mxu0
    %v777 = vadd.f32 0.0, %v776
    %778 = vmatmul.bf16.gmra.mxu0 %v551
    %v779 = vpop.f32.mrf.mxu0
    %v780 = vadd.f32 0.0, %v779
    %v781 = vpop.f32.mrf.mxu0
    %v782 = vadd.f32 0.0, %v781
    %783 = vmatmul.bf16.gmra.mxu0 %v554
    %v784 = vpop.f32.mrf.mxu0
    %v785 = vadd.f32 0.0, %v784
    %v786 = vpop.f32.mrf.mxu0
    %v787 = vadd.f32 0.0, %v786
    %788 = vmatmul.bf16.gmra.mxu0 %v557
    %v789 = vpop.f32.mrf.mxu0
    %v790 = vadd.f32 0.0, %v789
    %v791 = vpop.f32.mrf.mxu0
    %v792 = vadd.f32 0.0, %v791
    %793 = vmatmul.bf16.gmra.mxu0 %v560
    %v794 = vpop.f32.mrf.mxu0
    %v795 = vadd.f32 0.0, %v794
    %v796 = vpop.f32.mrf.mxu0
    %v797 = vadd.f32 0.0, %v796
    %798 = vmatmul.bf16.gmra.mxu0 %v563
    %v799 = vpop.f32.mrf.mxu0
    %v800 = vadd.f32 0.0, %v799
    %v801 = vpop.f32.mrf.mxu0
    %v802 = vadd.f32 0.0, %v801
    %803 = vmatmul.bf16.gmra.mxu0 %v566
    %v804 = vpop.f32.mrf.mxu0
    %v805 = vadd.f32 0.0, %v804
    %v806 = vpop.f32.mrf.mxu0
    %v807 = vadd.f32 0.0, %v806
    %808 = vmatmul.bf16.gmra.mxu0 %v569
    %v809 = vpop.f32.mrf.mxu0
    %v810 = vadd.f32 0.0, %v809
    %v811 = vpop.f32.mrf.mxu0
    %v812 = vadd.f32 0.0, %v811
    %813 = vmatmul.bf16.gmra.mxu0 %v572
    %v814 = vpop.f32.mrf.mxu0
    %v815 = vadd.f32 0.0, %v814
    %v816 = vpop.f32.mrf.mxu0
    %v817 = vadd.f32 0.0, %v816
    %818 = vmatmul.bf16.gmra.mxu0 %v575
    %v819 = vpop.f32.mrf.mxu0
    %v820 = vadd.f32 0.0, %v819
    %v821 = vpop.f32.mrf.mxu0
    %v822 = vadd.f32 0.0, %v821
    %823 = vmatmul.bf16.gmra.mxu0 %v578
    %v824 = vpop.f32.mrf.mxu0
    %v825 = vadd.f32 0.0, %v824
    %v826 = vpop.f32.mrf.mxu0
    %v827 = vadd.f32 0.0, %v826
    %828 = vmatmul.bf16.gmra.mxu0 %v581
    %v829 = vpop.f32.mrf.mxu0
    %v830 = vadd.f32 0.0, %v829
    %v831 = vpop.f32.mrf.mxu0
    %v832 = vadd.f32 0.0, %v831
    %833 = vmatmul.bf16.gmra.mxu0 %v584
    %v834 = vpop.f32.mrf.mxu0
    %v835 = vadd.f32 0.0, %v834
    %v836 = vpop.f32.mrf.mxu0
    %v837 = vadd.f32 0.0, %v836
    %838 = vmatmul.bf16.gmra.mxu0 %v587
    %v839 = vpop.f32.mrf.mxu0
    %v840 = vadd.f32 0.0, %v839
    %v841 = vpop.f32.mrf.mxu0
    %v842 = vadd.f32 0.0, %v841
    %843 = vmatmul.bf16.gmra.mxu0 %v590
    %v844 = vpop.f32.mrf.mxu0
    %v845 = vadd.f32 0.0, %v844
    %v846 = vpop.f32.mrf.mxu0
    %v847 = vadd.f32 0.0, %v846
    %848 = vmatmul.bf16.gmra.mxu0 %v593
    %v849 = vpop.f32.mrf.mxu0
    %v850 = vadd.f32 0.0, %v849
    %v851 = vpop.f32.mrf.mxu0
    %v852 = vadd.f32 0.0, %v851
    %853 = vmatmul.bf16.gmra.mxu0 %v596
    %v854 = vpop.f32.mrf.mxu0
    %v855 = vadd.f32 0.0, %v854
    %v856 = vpop.f32.mrf.mxu0
    %v857 = vadd.f32 0.0, %v856
    %858 = vmatmul.bf16.gmra.mxu0 %v599
    %v859 = vpop.f32.mrf.mxu0
    %v860 = vadd.f32 0.0, %v859
    %v861 = vpop.f32.mrf.mxu0
    %v862 = vadd.f32 0.0, %v861
    %863 = vmatmul.bf16.gmra.mxu0 %v602
    %v864 = vpop.f32.mrf.mxu0
    %v865 = vadd.f32 0.0, %v864
    %v866 = vpop.f32.mrf.mxu0
    %v867 = vadd.f32 0.0, %v866
    %868 = vmatmul.bf16.gmra.mxu0 %v605
    %v869 = vpop.f32.mrf.mxu0
    %v870 = vadd.f32 0.0, %v869
    %v871 = vpop.f32.mrf.mxu0
    %v872 = vadd.f32 0.0, %v871
    %873 = vmatmul.bf16.gmra.mxu0 %v608
    %v874 = vpop.f32.mrf.mxu0
    %v875 = vadd.f32 0.0, %v874
    %v876 = vpop.f32.mrf.mxu0
    %v877 = vadd.f32 0.0, %v876
    %878 = vmatmul.bf16.gmra.mxu0 %v611
    %v879 = vpop.f32.mrf.mxu0
    %v880 = vadd.f32 0.0, %v879
    %v881 = vpop.f32.mrf.mxu0
    %v882 = vadd.f32 0.0, %v881
    %883 = vmatmul.bf16.gmra.mxu0 %v614
    %v884 = vpop.f32.mrf.mxu0
    %v885 = vadd.f32 0.0, %v884
    %v886 = vpop.f32.mrf.mxu0
    %v887 = vadd.f32 0.0, %v886
    %888 = vmatmul.bf16.gmra.mxu0 %v617
    %v889 = vpop.f32.mrf.mxu0
    %v890 = vadd.f32 0.0, %v889
    %v891 = vpop.f32.mrf.mxu0
    %v892 = vadd.f32 0.0, %v891
    %893 = vmatmul.bf16.gmra.mxu0 %v620
    %v894 = vpop.f32.mrf.mxu0
    %v895 = vadd.f32 0.0, %v894
    %v896 = vpop.f32.mrf.mxu0
    %v897 = vadd.f32 0.0, %v896
    %898 = vmatmul.bf16.gmra.mxu0 %v623
    %v899 = vpop.f32.mrf.mxu0
    %v900 = vadd.f32 0.0, %v899
    %v901 = vpop.f32.mrf.mxu0
    %v902 = vadd.f32 0.0, %v901
    %903 = vmatmul.bf16.gmra.mxu0 %v626
    %v904 = vpop.f32.mrf.mxu0
    %v905 = vadd.f32 0.0, %v904
    %v906 = vpop.f32.mrf.mxu0
    %v907 = vadd.f32 0.0, %v906
    %908 = vmatmul.bf16.gmra.mxu0 %v629
    %v909 = vpop.f32.mrf.mxu0
    %v910 = vadd.f32 0.0, %v909
    %v911 = vpop.f32.mrf.mxu0
    %v912 = vadd.f32 0.0, %v911
    %913 = vmatmul.bf16.gmra.mxu0 %v632
    %v914 = vpop.f32.mrf.mxu0
    %v915 = vadd.f32 0.0, %v914
    %v916 = vpop.f32.mrf.mxu0
    %v917 = vadd.f32 0.0, %v916
    %918 = vmatmul.bf16.gmra.mxu0 %v635
    %v919 = vpop.f32.mrf.mxu0
    %v920 = vadd.f32 0.0, %v919
    %v921 = vpop.f32.mrf.mxu0
    %v922 = vadd.f32 0.0, %v921
    %923 = vmatmul.bf16.gmra.mxu0 %v638
    %v924 = vpop.f32.mrf.mxu0
    %v925 = vadd.f32 0.0, %v924
    %v926 = vpop.f32.mrf.mxu0
    %v927 = vadd.f32 0.0, %v926
    %928 = vmatmul.bf16.gmra.mxu0 %v641
    %v929 = vpop.f32.mrf.mxu0
    %v930 = vadd.f32 0.0, %v929
    %v931 = vpop.f32.mrf.mxu0
    %v932 = vadd.f32 0.0, %v931
    %933 = vmatmul.bf16.gmra.mxu0 %v644
    %v934 = vpop.f32.mrf.mxu0
    %v935 = vadd.f32 0.0, %v934
    %v936 = vpop.f32.mrf.mxu0
    %v937 = vadd.f32 0.0, %v936
    %938 = vmatmul.bf16.gmra.mxu0 %v647
    %v939 = vpop.f32.mrf.mxu0
    %v940 = vadd.f32 0.0, %v939
    %v941 = vpop.f32.mrf.mxu0
    %v942 = vadd.f32 0.0, %v941
    %943 = vmatmul.bf16.gmra.mxu0 %v650
    %v944 = vpop.f32.mrf.mxu0
    %v945 = vadd.f32 0.0, %v944
    %v946 = vpop.f32.mrf.mxu0
    %v947 = vadd.f32 0.0, %v946
    %948 = vmatmul.bf16.gmra.mxu0 %v653
    %v949 = vpop.f32.mrf.mxu0
    %v950 = vadd.f32 0.0, %v949
    %v951 = vpop.f32.mrf.mxu0
    %v952 = vadd.f32 0.0, %v951
    %953 = vmatmul.bf16.gmra.mxu0 %v656
    %v954 = vpop.f32.mrf.mxu0
    %v955 = vadd.f32 0.0, %v954
    %v956 = vpop.f32.mrf.mxu0
    %v957 = vadd.f32 0.0, %v956
    %958 = vmatmul.bf16.gmra.mxu0 %v659
    %v959 = vpop.f32.mrf.mxu0
    %v960 = vadd.f32 0.0, %v959
    %v961 = vpop.f32.mrf.mxu0
    %v962 = vadd.f32 0.0, %v961
    %963 = vmatmul.bf16.gmra.mxu0 %v662
    %v964 = vpop.f32.mrf.mxu0
    %v965 = vadd.f32 0.0, %v964
    %v966 = vpop.f32.mrf.mxu0
    %v967 = vadd.f32 0.0, %v966
    %968 = vmatmul.bf16.gmra.mxu0 %v665
    %v969 = vpop.f32.mrf.mxu0
    %v970 = vadd.f32 0.0, %v969
    %v971 = vpop.f32.mrf.mxu0
    %v972 = vadd.f32 0.0, %v971
    %973 = vmatmul.bf16.gmra.mxu0 %v668
    %v974 = vpop.f32.mrf.mxu0
    %v975 = vadd.f32 0.0, %v974
    %v976 = vpop.f32.mrf.mxu0
    %v977 = vadd.f32 0.0, %v976
    %978 = vmatmul.bf16.gmra.mxu0 %v671
    %v979 = vpop.f32.mrf.mxu0
    %v980 = vadd.f32 0.0, %v979
    %v981 = vpop.f32.mrf.mxu0
    %v982 = vadd.f32 0.0, %v981
    %983 = vmatmul.bf16.gmra.mxu0 %v674
    %v984 = vpop.f32.mrf.mxu0
    %v985 = vadd.f32 0.0, %v984
    %v986 = vpop.f32.mrf.mxu0
    %v987 = vadd.f32 0.0, %v986
    %988 = vmatmul.bf16.gmra.mxu0 %v677
    %v989 = vpop.f32.mrf.mxu0
    %v990 = vadd.f32 0.0, %v989
    %v991 = vpop.f32.mrf.mxu0
    %v992 = vadd.f32 0.0, %v991
    %993 = vmatmul.bf16.gmra.mxu0 %v680
    %v994 = vpop.f32.mrf.mxu0
    %v995 = vadd.f32 0.0, %v994
    %v996 = vpop.f32.mrf.mxu0
    %v997 = vadd.f32 0.0, %v996
    %998 = vmatmul.bf16.gmra.mxu0 %v683
    %v999 = vpop.f32.mrf.mxu0
    %v1000 = vadd.f32 0.0, %v999
    %v1001 = vpop.f32.mrf.mxu0
    %v1002 = vadd.f32 0.0, %v1001
    %1003 = vmatmul.bf16.gmra.mxu0 %v686
    %v1004 = vpop.f32.mrf.mxu0
    %v1005 = vadd.f32 0.0, %v1004
    %v1006 = vpop.f32.mrf.mxu0
    %v1007 = vadd.f32 0.0, %v1006
    %1008 = vmatmul.bf16.gmra.mxu0 %v689
    %v1009 = vpop.f32.mrf.mxu0
    %v1010 = vadd.f32 0.0, %v1009
    %v1011 = vpop.f32.mrf.mxu0
    %v1012 = vadd.f32 0.0, %v1011
    %1013 = vmatmul.bf16.gmra.mxu0 %v692
    %v1014 = vpop.f32.mrf.mxu0
    %v1015 = vadd.f32 0.0, %v1014
    %v1016 = vpop.f32.mrf.mxu0
    %v1017 = vadd.f32 0.0, %v1016
    %1018 = vmatmul.bf16.gmra.mxu0 %v695
    %v1019 = vpop.f32.mrf.mxu0
    %v1020 = vadd.f32 0.0, %v1019
    %v1021 = vpop.f32.mrf.mxu0
    %v1022 = vadd.f32 0.0, %v1021
    %1023 = vmatmul.bf16.gmra.mxu0 %v698
    %v1024 = vpop.f32.mrf.mxu0
    %v1025 = vadd.f32 0.0, %v1024
    %v1026 = vpop.f32.mrf.mxu0
    %v1027 = vadd.f32 0.0, %v1026
    %1028 = vmatmul.bf16.gmra.mxu0 %v701
    %v1029 = vpop.f32.mrf.mxu0
    %v1030 = vadd.f32 0.0, %v1029
    %v1031 = vpop.f32.mrf.mxu0
    %v1032 = vadd.f32 0.0, %v1031
    %1033 = vmatmul.bf16.gmra.mxu0 %v704
    %v1034 = vpop.f32.mrf.mxu0
    %v1035 = vadd.f32 0.0, %v1034
    %v1036 = vpop.f32.mrf.mxu0
    %v1037 = vadd.f32 0.0, %v1036
    %1038 = vmatmul.bf16.gmra.mxu0 %v707
    %v1039 = vpop.f32.mrf.mxu0
    %v1040 = vadd.f32 0.0, %v1039
    %v1041 = vpop.f32.mrf.mxu0
    %v1042 = vadd.f32 0.0, %v1041
    %1043 = vmatmul.bf16.gmra.mxu0 %v710
    %v1044 = vpop.f32.mrf.mxu0
    %v1045 = vadd.f32 0.0, %v1044
    %v1046 = vpop.f32.mrf.mxu0
    %v1047 = vadd.f32 0.0, %v1046
    %1048 = vmatmul.bf16.gmra.mxu0 %v713
    %v1049 = vpop.f32.mrf.mxu0
    %v1050 = vadd.f32 0.0, %v1049
    %v1051 = vpop.f32.mrf.mxu0
    %v1052 = vadd.f32 0.0, %v1051
    %1053 = vmatmul.bf16.gmra.mxu0 %v716
    %v1054 = vpop.f32.mrf.mxu0
    %v1055 = vadd.f32 0.0, %v1054
    %v1056 = vpop.f32.mrf.mxu0
    %v1057 = vadd.f32 0.0, %v1056
    %1058 = vmatmul.bf16.gmra.mxu0 %v719
    %v1059 = vpop.f32.mrf.mxu0
    %v1060 = vadd.f32 0.0, %v1059
    %v1061 = vpop.f32.mrf.mxu0
    %v1062 = vadd.f32 0.0, %v1061
    %1063 = vmatmul.bf16.gmra.mxu0 %v722
    %v1064 = vpop.f32.mrf.mxu0
    %v1065 = vadd.f32 0.0, %v1064
    %v1066 = vpop.f32.mrf.mxu0
    %v1067 = vadd.f32 0.0, %v1066
    %1068 = vmatmul.bf16.gmra.mxu0 %v725
    %v1069 = vpop.f32.mrf.mxu0
    %v1070 = vadd.f32 0.0, %v1069
    %v1071 = vpop.f32.mrf.mxu0
    %v1072 = vadd.f32 0.0, %v1071
    %1073 = vmatmul.bf16.gmra.mxu0 %v728
    %v1074 = vpop.f32.mrf.mxu0
    %v1075 = vadd.f32 0.0, %v1074
    %v1076 = vpop.f32.mrf.mxu0
    %v1077 = vadd.f32 0.0, %v1076
    %1078 = vmatmul.bf16.gmra.mxu0 %v731
    %v1079 = vpop.f32.mrf.mxu0
    %v1080 = vadd.f32 0.0, %v1079
    %v1081 = vpop.f32.mrf.mxu0
    %v1082 = vadd.f32 0.0, %v1081
    %1083 = vmatmul.bf16.gmra.mxu0 %v734
    %v1084 = vpop.f32.mrf.mxu0
    %v1085 = vadd.f32 0.0, %v1084
    %v1086 = vpop.f32.mrf.mxu0
    %v1087 = vadd.f32 0.0, %v1086
    %1088 = vmatmul.bf16.gmra.mxu0 %v737
    %v1089 = vpop.f32.mrf.mxu0
    %v1090 = vadd.f32 0.0, %v1089
    %v1091 = vpop.f32.mrf.mxu0
    %v1092 = vadd.f32 0.0, %v1091
    %1093 = vmatmul.bf16.gmra.mxu0 %v740
    %v1094 = vpop.f32.mrf.mxu0
    %v1095 = vadd.f32 0.0, %v1094
    %v1096 = vpop.f32.mrf.mxu0
    %v1097 = vadd.f32 0.0, %v1096
    %1098 = vmatmul.bf16.gmra.mxu0 %v743
    %v1099 = vpop.f32.mrf.mxu0
    %v1100 = vadd.f32 0.0, %v1099
    %v1101 = vpop.f32.mrf.mxu0
    %v1102 = vadd.f32 0.0, %v1101
    %1103 = vmatmul.bf16.gmra.mxu0 %v746
    %v1104 = vpop.f32.mrf.mxu0
    %v1105 = vadd.f32 0.0, %v1104
    %v1106 = vpop.f32.mrf.mxu0
    %v1107 = vadd.f32 0.0, %v1106
    %1108 = vmatmul.bf16.gmra.mxu0 %v749
    %v1109 = vpop.f32.mrf.mxu0
    %v1110 = vadd.f32 0.0, %v1109
    %v1111 = vpop.f32.mrf.mxu0
    %v1112 = vadd.f32 0.0, %v1111
    %1113 = vmatmul.bf16.gmra.mxu0 %v752
    %v1114 = vpop.f32.mrf.mxu0
    %v1115 = vadd.f32 0.0, %v1114
    %v1116 = vpop.f32.mrf.mxu0
    %v1117 = vadd.f32 0.0, %v1116
    %1118 = vmatmul.bf16.gmra.mxu0 %v755
    %v1119 = vpop.f32.mrf.mxu0
    %v1120 = vadd.f32 0.0, %v1119
    %v1121 = vpop.f32.mrf.mxu0
    %v1122 = vadd.f32 0.0, %v1121
    %1123 = vmatmul.bf16.gmra.mxu0 %v758
    %v1124 = vpop.f32.mrf.mxu0
    %v1125 = vadd.f32 0.0, %v1124
    %v1126 = vpop.f32.mrf.mxu0
    %v1127 = vadd.f32 0.0, %v1126
    %1128 = vdwg.mxu0
    %v1129 = vld [vmem:[%s1] sm:$0xff]
    %v1130 = vld [vmem:[%s1 + $0x8] sm:$0xff]
    %v1131 = vld [vmem:[%s1 + $0x10] sm:$0xff]
    %v1132 = vld [vmem:[%s1 + $0x18] sm:$0xff]
    %v1133 = vld [vmem:[%s1 + $0x20] sm:$0xff]
    %v1134 = vld [vmem:[%s1 + $0x28] sm:$0xff]
    %v1135 = vld [vmem:[%s1 + $0x30] sm:$0xff]
    %v1136 = vld [vmem:[%s1 + $0x38] sm:$0xff]
    %v1137 = vld [vmem:[%s1 + $0x40] sm:$0xff]
    %v1138 = vld [vmem:[%s1 + $0x48] sm:$0xff]
    %v1139 = vld [vmem:[%s1 + $0x50] sm:$0xff]
    %v1140 = vld [vmem:[%s1 + $0x58] sm:$0xff]
    %v1141 = vld [vmem:[%s1 + $0x60] sm:$0xff]
    %v1142 = vld [vmem:[%s1 + $0x68] sm:$0xff]
    %v1143 = vld [vmem:[%s1 + $0x70] sm:$0xff]
    %v1144 = vld [vmem:[%s1 + $0x78] sm:$0xff]
    %v1145 = vld [vmem:[%s1 + $0x80] sm:$0xff]
    %v1146 = vld [vmem:[%s1 + $0x88] sm:$0xff]
    %v1147 = vld [vmem:[%s1 + $0x90] sm:$0xff]
    %v1148 = vld [vmem:[%s1 + $0x98] sm:$0xff]
    %v1149 = vld [vmem:[%s1 + $0xa0] sm:$0xff]
    %v1150 = vld [vmem:[%s1 + $0xa8] sm:$0xff]
    %v1151 = vld [vmem:[%s1 + $0xb0] sm:$0xff]
    %v1152 = vld [vmem:[%s1 + $0xb8] sm:$0xff]
    %v1153 = vld [vmem:[%s1 + $0xc0] sm:$0xff]
    %v1154 = vld [vmem:[%s1 + $0xc8] sm:$0xff]
    %v1155 = vld [vmem:[%s1 + $0xd0] sm:$0xff]
    %v1156 = vld [vmem:[%s1 + $0xd8] sm:$0xff]
    %v1157 = vld [vmem:[%s1 + $0xe0] sm:$0xff]
    %v1158 = vld [vmem:[%s1 + $0xe8] sm:$0xff]
    %v1159 = vld [vmem:[%s1 + $0xf0] sm:$0xff]
    %v1160 = vld [vmem:[%s1 + $0xf8] sm:$0xff]
    %v1161 = vld [vmem:[%s1 + $0x100] sm:$0xff]
    %v1162 = vld [vmem:[%s1 + $0x108] sm:$0xff]
    %v1163 = vld [vmem:[%s1 + $0x110] sm:$0xff]
    %v1164 = vld [vmem:[%s1 + $0x118] sm:$0xff]
    %v1165 = vld [vmem:[%s1 + $0x120] sm:$0xff]
    %v1166 = vld [vmem:[%s1 + $0x128] sm:$0xff]
    %v1167 = vld [vmem:[%s1 + $0x130] sm:$0xff]
    %v1168 = vld [vmem:[%s1 + $0x138] sm:$0xff]
    %v1169 = vld [vmem:[%s1 + $0x140] sm:$0xff]
    %v1170 = vld [vmem:[%s1 + $0x148] sm:$0xff]
    %v1171 = vld [vmem:[%s1 + $0x150] sm:$0xff]
    %v1172 = vld [vmem:[%s1 + $0x158] sm:$0xff]
    %v1173 = vld [vmem:[%s1 + $0x160] sm:$0xff]
    %v1174 = vld [vmem:[%s1 + $0x168] sm:$0xff]
    %v1175 = vld [vmem:[%s1 + $0x170] sm:$0xff]
    %v1176 = vld [vmem:[%s1 + $0x178] sm:$0xff]
    %v1177 = vld [vmem:[%s1 + $0x180] sm:$0xff]
    %v1178 = vld [vmem:[%s1 + $0x188] sm:$0xff]
    %v1179 = vld [vmem:[%s1 + $0x190] sm:$0xff]
    %v1180 = vld [vmem:[%s1 + $0x198] sm:$0xff]
    %v1181 = vld [vmem:[%s1 + $0x1a0] sm:$0xff]
    %v1182 = vld [vmem:[%s1 + $0x1a8] sm:$0xff]
    %v1183 = vld [vmem:[%s1 + $0x1b0] sm:$0xff]
    %v1184 = vld [vmem:[%s1 + $0x1b8] sm:$0xff]
    %v1185 = vld [vmem:[%s1 + $0x1c0] sm:$0xff]
    %v1186 = vld [vmem:[%s1 + $0x1c8] sm:$0xff]
    %v1187 = vld [vmem:[%s1 + $0x1d0] sm:$0xff]
    %v1188 = vld [vmem:[%s1 + $0x1d8] sm:$0xff]
    %v1189 = vld [vmem:[%s1 + $0x1e0] sm:$0xff]
    %v1190 = vld [vmem:[%s1 + $0x1e8] sm:$0xff]
    %v1191 = vld [vmem:[%s1 + $0x1f0] sm:$0xff]
    %v1192 = vld [vmem:[%s1 + $0x1f8] sm:$0xff]
    %v1193 = vld [vmem:[%s1 + $0x200] sm:$0xff]
    %v1194 = vld [vmem:[%s1 + $0x208] sm:$0xff]
    %v1195 = vld [vmem:[%s1 + $0x210] sm:$0xff]
    %v1196 = vld [vmem:[%s1 + $0x218] sm:$0xff]
    %v1197 = vld [vmem:[%s1 + $0x220] sm:$0xff]
    %v1198 = vld [vmem:[%s1 + $0x228] sm:$0xff]
    %v1199 = vld [vmem:[%s1 + $0x230] sm:$0xff]
    %v1200 = vld [vmem:[%s1 + $0x238] sm:$0xff]
    %v1201 = vld [vmem:[%s1 + $0x240] sm:$0xff]
    %v1202 = vld [vmem:[%s1 + $0x248] sm:$0xff]
    %v1203 = vld [vmem:[%s1 + $0x250] sm:$0xff]
    %v1204 = vld [vmem:[%s1 + $0x258] sm:$0xff]
    %v1205 = vld [vmem:[%s1 + $0x260] sm:$0xff]
    %v1206 = vld [vmem:[%s1 + $0x268] sm:$0xff]
    %v1207 = vld [vmem:[%s1 + $0x270] sm:$0xff]
    %v1208 = vld [vmem:[%s1 + $0x278] sm:$0xff]
    %v1209 = vld [vmem:[%s1 + $0x280] sm:$0xff]
    %v1210 = vld [vmem:[%s1 + $0x288] sm:$0xff]
    %v1211 = vld [vmem:[%s1 + $0x290] sm:$0xff]
    %v1212 = vld [vmem:[%s1 + $0x298] sm:$0xff]
    %v1213 = vld [vmem:[%s1 + $0x2a0] sm:$0xff]
    %v1214 = vld [vmem:[%s1 + $0x2a8] sm:$0xff]
    %v1215 = vld [vmem:[%s1 + $0x2b0] sm:$0xff]
    %v1216 = vld [vmem:[%s1 + $0x2b8] sm:$0xff]
    %v1217 = vld [vmem:[%s1 + $0x2c0] sm:$0xff]
    %v1218 = vld [vmem:[%s1 + $0x2c8] sm:$0xff]
    %v1219 = vld [vmem:[%s1 + $0x2d0] sm:$0xff]
    %v1220 = vld [vmem:[%s1 + $0x2d8] sm:$0xff]
    %v1221 = vld [vmem:[%s1 + $0x2e0] sm:$0xff]
    %v1222 = vld [vmem:[%s1 + $0x2e8] sm:$0xff]
    %v1223 = vld [vmem:[%s1 + $0x2f0] sm:$0xff]
    %v1224 = vld [vmem:[%s1 + $0x2f8] sm:$0xff]
    %v1225 = vld [vmem:[%s1 + $0x300] sm:$0xff]
    %v1226 = vld [vmem:[%s1 + $0x308] sm:$0xff]
    %v1227 = vld [vmem:[%s1 + $0x310] sm:$0xff]
    %v1228 = vld [vmem:[%s1 + $0x318] sm:$0xff]
    %v1229 = vld [vmem:[%s1 + $0x320] sm:$0xff]
    %v1230 = vld [vmem:[%s1 + $0x328] sm:$0xff]
    %v1231 = vld [vmem:[%s1 + $0x330] sm:$0xff]
    %v1232 = vld [vmem:[%s1 + $0x338] sm:$0xff]
    %v1233 = vld [vmem:[%s1 + $0x340] sm:$0xff]
    %v1234 = vld [vmem:[%s1 + $0x348] sm:$0xff]
    %v1235 = vld [vmem:[%s1 + $0x350] sm:$0xff]
    %v1236 = vld [vmem:[%s1 + $0x358] sm:$0xff]
    %v1237 = vld [vmem:[%s1 + $0x360] sm:$0xff]
    %v1238 = vld [vmem:[%s1 + $0x368] sm:$0xff]
    %v1239 = vld [vmem:[%s1 + $0x370] sm:$0xff]
    %v1240 = vld [vmem:[%s1 + $0x378] sm:$0xff]
    %v1241 = vld [vmem:[%s1 + $0x380] sm:$0xff]
    %v1242 = vld [vmem:[%s1 + $0x388] sm:$0xff]
    %v1243 = vld [vmem:[%s1 + $0x390] sm:$0xff]
    %v1244 = vld [vmem:[%s1 + $0x398] sm:$0xff]
    %v1245 = vld [vmem:[%s1 + $0x3a0] sm:$0xff]
    %v1246 = vld [vmem:[%s1 + $0x3a8] sm:$0xff]
    %v1247 = vld [vmem:[%s1 + $0x3b0] sm:$0xff]
    %v1248 = vld [vmem:[%s1 + $0x3b8] sm:$0xff]
    %v1249 = vld [vmem:[%s1 + $0x3c0] sm:$0xff]
    %v1250 = vld [vmem:[%s1 + $0x3c8] sm:$0xff]
    %v1251 = vld [vmem:[%s1 + $0x3d0] sm:$0xff]
    %v1252 = vld [vmem:[%s1 + $0x3d8] sm:$0xff]
    %v1253 = vld [vmem:[%s1 + $0x3e0] sm:$0xff]
    %v1254 = vld [vmem:[%s1 + $0x3e8] sm:$0xff]
    %v1255 = vld [vmem:[%s1 + $0x3f0] sm:$0xff]
    %v1256 = vld [vmem:[%s1 + $0x3f8] sm:$0xff]
    %v1257 = vld [vmem:[%s1 + $0x400] sm:$0xff]
    %v1258 = vld [vmem:[%s1 + $0x408] sm:$0xff]
    %v1259 = vld [vmem:[%s1 + $0x410] sm:$0xff]
    %v1260 = vld [vmem:[%s1 + $0x418] sm:$0xff]
    %v1261 = vld [vmem:[%s1 + $0x420] sm:$0xff]
    %v1262 = vld [vmem:[%s1 + $0x428] sm:$0xff]
    %v1263 = vld [vmem:[%s1 + $0x430] sm:$0xff]
    %v1264 = vld [vmem:[%s1 + $0x438] sm:$0xff]
    %v1265 = vld [vmem:[%s1 + $0x440] sm:$0xff]
    %v1266 = vld [vmem:[%s1 + $0x448] sm:$0xff]
    %v1267 = vld [vmem:[%s1 + $0x450] sm:$0xff]
    %v1268 = vld [vmem:[%s1 + $0x458] sm:$0xff]
    %v1269 = vld [vmem:[%s1 + $0x460] sm:$0xff]
    %v1270 = vld [vmem:[%s1 + $0x468] sm:$0xff]
    %v1271 = vld [vmem:[%s1 + $0x470] sm:$0xff]
    %v1272 = vld [vmem:[%s1 + $0x478] sm:$0xff]
    %v1273 = vadd.f32 %v770, %v772
    %v1274 = vadd.f32 %v1273, %v775
    %v1275 = vadd.f32 %v1274, %v777
    %v1276 = vadd.f32 %v1275, %v780
    %v1277 = vadd.f32 %v1276, %v782
    %v1278 = vadd.f32 %v1277, %v785
    %v1279 = vadd.f32 %v1278, %v787
    %v1280 = vadd.f32 %v1279, %v790
    %v1281 = vadd.f32 %v1280, %v792
    %v1282 = vadd.f32 %v1281, %v795
    %v1283 = vadd.f32 %v1282, %v797
    %v1284 = vadd.f32 %v1283, %v800
    %v1285 = vadd.f32 %v1284, %v802
    %v1286 = vadd.f32 %v1285, %v805
    %v1287 = vadd.f32 %v1286, %v807
    %v1288 = vadd.f32 %v1287, %v810
    %v1289 = vadd.f32 %v1288, %v812
    %v1290 = vadd.f32 %v1289, %v815
    %v1291 = vadd.f32 %v1290, %v817
    %v1292 = vadd.f32 %v1291, %v820
    %v1293 = vadd.f32 %v1292, %v822
    %v1294 = vadd.f32 %v1293, %v825
    %v1295 = vadd.f32 %v1294, %v827
    %v1296 = vadd.f32 %v1295, %v830
    %v1297 = vadd.f32 %v1296, %v832
    %v1298 = vadd.f32 %v1297, %v835
    %v1299 = vadd.f32 %v1298, %v837
    %v1300 = vadd.f32 %v1299, %v840
    %v1301 = vadd.f32 %v1300, %v842
    %v1302 = vadd.f32 %v1301, %v845
    %v1303 = vadd.f32 %v1302, %v847
    %v1304 = vadd.f32 %v1303, %v850
    %v1305 = vadd.f32 %v1304, %v852
    %v1306 = vadd.f32 %v1305, %v855
    %v1307 = vadd.f32 %v1306, %v857
    %v1308 = vadd.f32 %v1307, %v860
    %v1309 = vadd.f32 %v1308, %v862
    %v1310 = vadd.f32 %v1309, %v865
    %v1311 = vadd.f32 %v1310, %v867
    %v1312 = vadd.f32 %v1311, %v870
    %v1313 = vadd.f32 %v1312, %v872
    %v1314 = vadd.f32 %v1313, %v875
    %v1315 = vadd.f32 %v1314, %v877
    %v1316 = vadd.f32 %v1315, %v880
    %v1317 = vadd.f32 %v1316, %v882
    %v1318 = vadd.f32 %v1317, %v885
    %v1319 = vadd.f32 %v1318, %v887
    %v1320 = vadd.f32 %v1319, %v890
    %v1321 = vadd.f32 %v1320, %v892
    %v1322 = vadd.f32 %v1321, %v895
    %v1323 = vadd.f32 %v1322, %v897
    %v1324 = vadd.f32 %v1323, %v900
    %v1325 = vadd.f32 %v1324, %v902
    %v1326 = vadd.f32 %v1325, %v905
    %v1327 = vadd.f32 %v1326, %v907
    %v1328 = vadd.f32 %v1327, %v910
    %v1329 = vadd.f32 %v1328, %v912
    %v1330 = vadd.f32 %v1329, %v915
    %v1331 = vadd.f32 %v1330, %v917
    %v1332 = vadd.f32 %v1331, %v920
    %v1333 = vadd.f32 %v1332, %v922
    %v1334 = vadd.f32 %v1333, %v925
    %v1335 = vadd.f32 %v1334, %v927
    %v1336 = vadd.f32 %v1335, %v930
    %v1337 = vadd.f32 %v1336, %v932
    %v1338 = vadd.f32 %v1337, %v935
    %v1339 = vadd.f32 %v1338, %v937
    %v1340 = vadd.f32 %v1339, %v940
    %v1341 = vadd.f32 %v1340, %v942
    %v1342 = vadd.f32 %v1341, %v945
    %v1343 = vadd.f32 %v1342, %v947
    %v1344 = vadd.f32 %v1343, %v950
    %v1345 = vadd.f32 %v1344, %v952
    %v1346 = vadd.f32 %v1345, %v955
    %v1347 = vadd.f32 %v1346, %v957
    %v1348 = vadd.f32 %v1347, %v960
    %v1349 = vadd.f32 %v1348, %v962
    %v1350 = vadd.f32 %v1349, %v965
    %v1351 = vadd.f32 %v1350, %v967
    %v1352 = vadd.f32 %v1351, %v970
    %v1353 = vadd.f32 %v1352, %v972
    %v1354 = vadd.f32 %v1353, %v975
    %v1355 = vadd.f32 %v1354, %v977
    %v1356 = vadd.f32 %v1355, %v980
    %v1357 = vadd.f32 %v1356, %v982
    %v1358 = vadd.f32 %v1357, %v985
    %v1359 = vadd.f32 %v1358, %v987
    %v1360 = vadd.f32 %v1359, %v990
    %v1361 = vadd.f32 %v1360, %v992
    %v1362 = vadd.f32 %v1361, %v995
    %v1363 = vadd.f32 %v1362, %v997
    %v1364 = vadd.f32 %v1363, %v1000
    %v1365 = vadd.f32 %v1364, %v1002
    %v1366 = vadd.f32 %v1365, %v1005
    %v1367 = vadd.f32 %v1366, %v1007
    %v1368 = vadd.f32 %v1367, %v1010
    %v1369 = vadd.f32 %v1368, %v1012
    %v1370 = vadd.f32 %v1369, %v1015
    %v1371 = vadd.f32 %v1370, %v1017
    %v1372 = vadd.f32 %v1371, %v1020
    %v1373 = vadd.f32 %v1372, %v1022
    %v1374 = vadd.f32 %v1373, %v1025
    %v1375 = vadd.f32 %v1374, %v1027
    %v1376 = vadd.f32 %v1375, %v1030
    %v1377 = vadd.f32 %v1376, %v1032
    %v1378 = vadd.f32 %v1377, %v1035
    %v1379 = vadd.f32 %v1378, %v1037
    %v1380 = vadd.f32 %v1379, %v1040
    %v1381 = vadd.f32 %v1380, %v1042
    %v1382 = vadd.f32 %v1381, %v1045
    %v1383 = vadd.f32 %v1382, %v1047
    %v1384 = vadd.f32 %v1383, %v1050
    %v1385 = vadd.f32 %v1384, %v1052
    %v1386 = vadd.f32 %v1385, %v1055
    %v1387 = vadd.f32 %v1386, %v1057
    %v1388 = vadd.f32 %v1387, %v1060
    %v1389 = vadd.f32 %v1388, %v1062
    %v1390 = vadd.f32 %v1389, %v1065
    %v1391 = vadd.f32 %v1390, %v1067
    %v1392 = vadd.f32 %v1391, %v1070
    %v1393 = vadd.f32 %v1392, %v1072
    %v1394 = vadd.f32 %v1393, %v1075
    %v1395 = vadd.f32 %v1394, %v1077
    %v1396 = vadd.f32 %v1395, %v1080
    %v1397 = vadd.f32 %v1396, %v1082
    %v1398 = vadd.f32 %v1397, %v1085
    %v1399 = vadd.f32 %v1398, %v1087
    %v1400 = vadd.f32 %v1399, %v1090
    %v1401 = vadd.f32 %v1400, %v1092
    %v1402 = vadd.f32 %v1401, %v1095
    %v1403 = vadd.f32 %v1402, %v1097
    %v1404 = vadd.f32 %v1403, %v1100
    %v1405 = vadd.f32 %v1404, %v1102
    %v1406 = vadd.f32 %v1405, %v1105
    %v1407 = vadd.f32 %v1406, %v1107
    %v1408 = vadd.f32 %v1407, %v1110
    %v1409 = vadd.f32 %v1408, %v1112
    %v1410 = vadd.f32 %v1409, %v1115
    %v1411 = vadd.f32 %v1410, %v1117
    %v1412 = vadd.f32 %v1411, %v1120
    %v1413 = vadd.f32 %v1412, %v1122
    %v1414 = vadd.f32 %v1413, %v1125
    %v1415 = vadd.f32 %v1414, %v1127
    %v1416 = vrot.slane %v1415, 4
    %v1417 = vadd.f32 %v1415, %v1416
    %v1418 = vrot.slane %v1417, 2
    %v1419 = vadd.f32 %v1417, %v1418
    %v1420 = vrot.slane %v1419, 1
    %v1421 = vadd.f32 %v1419, %v1420
    %v1422 = vrcp.pop 512.0
    %v1423 = vmul.f32 512.0, %v1422
    %v1424 = vsub.f32 1.0, %v1423
    %v1425 = vmul.f32 %v1422, %v1424
    %v1426 = vadd.f32 %v1422, %v1425
    %vm1427 = vweird.f32 %v1422
    %v1428 = vsel %vm1427, %v1422, %v1426
    %v1429 = vmul.f32 %v1421, %v1428
    %v1430 = vsub.f32 %v770, %v1429
    %v1431 = vsub.f32 %v772, %v1429
    %v1432 = vsub.f32 %v775, %v1429
    %v1433 = vsub.f32 %v777, %v1429
    %v1434 = vsub.f32 %v780, %v1429
    %v1435 = vsub.f32 %v782, %v1429
    %v1436 = vsub.f32 %v785, %v1429
    %v1437 = vsub.f32 %v787, %v1429
    %v1438 = vsub.f32 %v790, %v1429
    %v1439 = vsub.f32 %v792, %v1429
    %v1440 = vsub.f32 %v795, %v1429
    %v1441 = vsub.f32 %v797, %v1429
    %v1442 = vsub.f32 %v800, %v1429
    %v1443 = vsub.f32 %v802, %v1429
    %v1444 = vsub.f32 %v805, %v1429
    %v1445 = vsub.f32 %v807, %v1429
    %v1446 = vsub.f32 %v810, %v1429
    %v1447 = vsub.f32 %v812, %v1429
    %v1448 = vsub.f32 %v815, %v1429
    %v1449 = vsub.f32 %v817, %v1429
    %v1450 = vsub.f32 %v820, %v1429
    %v1451 = vsub.f32 %v822, %v1429
    %v1452 = vsub.f32 %v825, %v1429
    %v1453 = vsub.f32 %v827, %v1429
    %v1454 = vsub.f32 %v830, %v1429
    %v1455 = vsub.f32 %v832, %v1429
    %v1456 = vsub.f32 %v835, %v1429
    %v1457 = vsub.f32 %v837, %v1429
    %v1458 = vsub.f32 %v840, %v1429
    %v1459 = vsub.f32 %v842, %v1429
    %v1460 = vsub.f32 %v845, %v1429
    %v1461 = vsub.f32 %v847, %v1429
    %v1462 = vsub.f32 %v850, %v1429
    %v1463 = vsub.f32 %v852, %v1429
    %v1464 = vsub.f32 %v855, %v1429
    %v1465 = vsub.f32 %v857, %v1429
    %v1466 = vsub.f32 %v860, %v1429
    %v1467 = vsub.f32 %v862, %v1429
    %v1468 = vsub.f32 %v865, %v1429
    %v1469 = vsub.f32 %v867, %v1429
    %v1470 = vsub.f32 %v870, %v1429
    %v1471 = vsub.f32 %v872, %v1429
    %v1472 = vsub.f32 %v875, %v1429
    %v1473 = vsub.f32 %v877, %v1429
    %v1474 = vsub.f32 %v880, %v1429
    %v1475 = vsub.f32 %v882, %v1429
    %v1476 = vsub.f32 %v885, %v1429
    %v1477 = vsub.f32 %v887, %v1429
    %v1478 = vsub.f32 %v890, %v1429
    %v1479 = vsub.f32 %v892, %v1429
    %v1480 = vsub.f32 %v895, %v1429
    %v1481 = vsub.f32 %v897, %v1429
    %v1482 = vsub.f32 %v900, %v1429
    %v1483 = vsub.f32 %v902, %v1429
    %v1484 = vsub.f32 %v905, %v1429
    %v1485 = vsub.f32 %v907, %v1429
    %v1486 = vsub.f32 %v910, %v1429
    %v1487 = vsub.f32 %v912, %v1429
    %v1488 = vsub.f32 %v915, %v1429
    %v1489 = vsub.f32 %v917, %v1429
    %v1490 = vsub.f32 %v920, %v1429
    %v1491 = vsub.f32 %v922, %v1429
    %v1492 = vsub.f32 %v925, %v1429
    %v1493 = vsub.f32 %v927, %v1429
    %v1494 = vsub.f32 %v930, %v1429
    %v1495 = vsub.f32 %v932, %v1429
    %v1496 = vsub.f32 %v935, %v1429
    %v1497 = vsub.f32 %v937, %v1429
    %v1498 = vsub.f32 %v940, %v1429
    %v1499 = vsub.f32 %v942, %v1429
    %v1500 = vsub.f32 %v945, %v1429
    %v1501 = vsub.f32 %v947, %v1429
    %v1502 = vsub.f32 %v950, %v1429
    %v1503 = vsub.f32 %v952, %v1429
    %v1504 = vsub.f32 %v955, %v1429
    %v1505 = vsub.f32 %v957, %v1429
    %v1506 = vsub.f32 %v960, %v1429
    %v1507 = vsub.f32 %v962, %v1429
    %v1508 = vsub.f32 %v965, %v1429
    %v1509 = vsub.f32 %v967, %v1429
    %v1510 = vsub.f32 %v970, %v1429
    %v1511 = vsub.f32 %v972, %v1429
    %v1512 = vsub.f32 %v975, %v1429
    %v1513 = vsub.f32 %v977, %v1429
    %v1514 = vsub.f32 %v980, %v1429
    %v1515 = vsub.f32 %v982, %v1429
    %v1516 = vsub.f32 %v985, %v1429
    %v1517 = vsub.f32 %v987, %v1429
    %v1518 = vsub.f32 %v990, %v1429
    %v1519 = vsub.f32 %v992, %v1429
    %v1520 = vsub.f32 %v995, %v1429
    %v1521 = vsub.f32 %v997, %v1429
    %v1522 = vsub.f32 %v1000, %v1429
    %v1523 = vsub.f32 %v1002, %v1429
    %v1524 = vsub.f32 %v1005, %v1429
    %v1525 = vsub.f32 %v1007, %v1429
    %v1526 = vsub.f32 %v1010, %v1429
    %v1527 = vsub.f32 %v1012, %v1429
    %v1528 = vsub.f32 %v1015, %v1429
    %v1529 = vsub.f32 %v1017, %v1429
    %v1530 = vsub.f32 %v1020, %v1429
    %v1531 = vsub.f32 %v1022, %v1429
    %v1532 = vsub.f32 %v1025, %v1429
    %v1533 = vsub.f32 %v1027, %v1429
    %v1534 = vsub.f32 %v1030, %v1429
    %v1535 = vsub.f32 %v1032, %v1429
    %v1536 = vsub.f32 %v1035, %v1429
    %v1537 = vsub.f32 %v1037, %v1429
    %v1538 = vsub.f32 %v1040, %v1429
    %v1539 = vsub.f32 %v1042, %v1429
    %v1540 = vsub.f32 %v1045, %v1429
    %v1541 = vsub.f32 %v1047, %v1429
    %v1542 = vsub.f32 %v1050, %v1429
    %v1543 = vsub.f32 %v1052, %v1429
    %v1544 = vsub.f32 %v1055, %v1429
    %v1545 = vsub.f32 %v1057, %v1429
    %v1546 = vsub.f32 %v1060, %v1429
    %v1547 = vsub.f32 %v1062, %v1429
    %v1548 = vsub.f32 %v1065, %v1429
    %v1549 = vsub.f32 %v1067, %v1429
    %v1550 = vsub.f32 %v1070, %v1429
    %v1551 = vsub.f32 %v1072, %v1429
    %v1552 = vsub.f32 %v1075, %v1429
    %v1553 = vsub.f32 %v1077, %v1429
    %v1554 = vsub.f32 %v1080, %v1429
    %v1555 = vsub.f32 %v1082, %v1429
    %v1556 = vsub.f32 %v1085, %v1429
    %v1557 = vsub.f32 %v1087, %v1429
    %v1558 = vsub.f32 %v1090, %v1429
    %v1559 = vsub.f32 %v1092, %v1429
    %v1560 = vsub.f32 %v1095, %v1429
    %v1561 = vsub.f32 %v1097, %v1429
    %v1562 = vsub.f32 %v1100, %v1429
    %v1563 = vsub.f32 %v1102, %v1429
    %v1564 = vsub.f32 %v1105, %v1429
    %v1565 = vsub.f32 %v1107, %v1429
    %v1566 = vsub.f32 %v1110, %v1429
    %v1567 = vsub.f32 %v1112, %v1429
    %v1568 = vsub.f32 %v1115, %v1429
    %v1569 = vsub.f32 %v1117, %v1429
    %v1570 = vsub.f32 %v1120, %v1429
    %v1571 = vsub.f32 %v1122, %v1429
    %v1572 = vsub.f32 %v1125, %v1429
    %v1573 = vsub.f32 %v1127, %v1429
    %1575 = vset.pattern.permute.xlu0 0
    %1576 = vperm.xlu0 %1575, %v1129
    %v1577 = vpop.permute.xlu0 %1576
    %1580 = vset.pattern.permute.xlu0 0
    %1581 = vperm.xlu0 %1580, %v1130
    %v1582 = vpop.permute.xlu0 %1581
    %1585 = vset.pattern.permute.xlu0 0
    %1586 = vperm.xlu0 %1585, %v1131
    %v1587 = vpop.permute.xlu0 %1586
    %1590 = vset.pattern.permute.xlu0 0
    %1591 = vperm.xlu0 %1590, %v1132
    %v1592 = vpop.permute.xlu0 %1591
    %1595 = vset.pattern.permute.xlu0 0
    %1596 = vperm.xlu0 %1595, %v1133
    %v1597 = vpop.permute.xlu0 %1596
    %1600 = vset.pattern.permute.xlu0 0
    %1601 = vperm.xlu0 %1600, %v1134
    %v1602 = vpop.permute.xlu0 %1601
    %1605 = vset.pattern.permute.xlu0 0
    %1606 = vperm.xlu0 %1605, %v1135
    %v1607 = vpop.permute.xlu0 %1606
    %1610 = vset.pattern.permute.xlu0 0
    %1611 = vperm.xlu0 %1610, %v1136
    %v1612 = vpop.permute.xlu0 %1611
    %1615 = vset.pattern.permute.xlu0 0
    %1616 = vperm.xlu0 %1615, %v1137
    %v1617 = vpop.permute.xlu0 %1616
    %1620 = vset.pattern.permute.xlu0 0
    %1621 = vperm.xlu0 %1620, %v1138
    %v1622 = vpop.permute.xlu0 %1621
    %1625 = vset.pattern.permute.xlu0 0
    %1626 = vperm.xlu0 %1625, %v1139
    %v1627 = vpop.permute.xlu0 %1626
    %1630 = vset.pattern.permute.xlu0 0
    %1631 = vperm.xlu0 %1630, %v1140
    %v1632 = vpop.permute.xlu0 %1631
    %1635 = vset.pattern.permute.xlu0 0
    %1636 = vperm.xlu0 %1635, %v1141
    %v1637 = vpop.permute.xlu0 %1636
    %1640 = vset.pattern.permute.xlu0 0
    %1641 = vperm.xlu0 %1640, %v1142
    %v1642 = vpop.permute.xlu0 %1641
    %1645 = vset.pattern.permute.xlu0 0
    %1646 = vperm.xlu0 %1645, %v1143
    %v1647 = vpop.permute.xlu0 %1646
    %1650 = vset.pattern.permute.xlu0 0
    %1651 = vperm.xlu0 %1650, %v1144
    %v1652 = vpop.permute.xlu0 %1651
    %1655 = vset.pattern.permute.xlu0 0
    %1656 = vperm.xlu0 %1655, %v1145
    %v1657 = vpop.permute.xlu0 %1656
    %1660 = vset.pattern.permute.xlu0 0
    %1661 = vperm.xlu0 %1660, %v1146
    %v1662 = vpop.permute.xlu0 %1661
    %1665 = vset.pattern.permute.xlu0 0
    %1666 = vperm.xlu0 %1665, %v1147
    %v1667 = vpop.permute.xlu0 %1666
    %1670 = vset.pattern.permute.xlu0 0
    %1671 = vperm.xlu0 %1670, %v1148
    %v1672 = vpop.permute.xlu0 %1671
    %1675 = vset.pattern.permute.xlu0 0
    %1676 = vperm.xlu0 %1675, %v1149
    %v1677 = vpop.permute.xlu0 %1676
    %1680 = vset.pattern.permute.xlu0 0
    %1681 = vperm.xlu0 %1680, %v1150
    %v1682 = vpop.permute.xlu0 %1681
    %1685 = vset.pattern.permute.xlu0 0
    %1686 = vperm.xlu0 %1685, %v1151
    %v1687 = vpop.permute.xlu0 %1686
    %1690 = vset.pattern.permute.xlu0 0
    %1691 = vperm.xlu0 %1690, %v1152
    %v1692 = vpop.permute.xlu0 %1691
    %1695 = vset.pattern.permute.xlu0 0
    %1696 = vperm.xlu0 %1695, %v1153
    %v1697 = vpop.permute.xlu0 %1696
    %1700 = vset.pattern.permute.xlu0 0
    %1701 = vperm.xlu0 %1700, %v1154
    %v1702 = vpop.permute.xlu0 %1701
    %1705 = vset.pattern.permute.xlu0 0
    %1706 = vperm.xlu0 %1705, %v1155
    %v1707 = vpop.permute.xlu0 %1706
    %1710 = vset.pattern.permute.xlu0 0
    %1711 = vperm.xlu0 %1710, %v1156
    %v1712 = vpop.permute.xlu0 %1711
    %1715 = vset.pattern.permute.xlu0 0
    %1716 = vperm.xlu0 %1715, %v1157
    %v1717 = vpop.permute.xlu0 %1716
    %1720 = vset.pattern.permute.xlu0 0
    %1721 = vperm.xlu0 %1720, %v1158
    %v1722 = vpop.permute.xlu0 %1721
    %1725 = vset.pattern.permute.xlu0 0
    %1726 = vperm.xlu0 %1725, %v1159
    %v1727 = vpop.permute.xlu0 %1726
    %1730 = vset.pattern.permute.xlu0 0
    %1731 = vperm.xlu0 %1730, %v1160
    %v1732 = vpop.permute.xlu0 %1731
    %1735 = vset.pattern.permute.xlu0 0
    %1736 = vperm.xlu0 %1735, %v1161
    %v1737 = vpop.permute.xlu0 %1736
    %1740 = vset.pattern.permute.xlu0 0
    %1741 = vperm.xlu0 %1740, %v1162
    %v1742 = vpop.permute.xlu0 %1741
    %1745 = vset.pattern.permute.xlu0 0
    %1746 = vperm.xlu0 %1745, %v1163
    %v1747 = vpop.permute.xlu0 %1746
    %1750 = vset.pattern.permute.xlu0 0
    %1751 = vperm.xlu0 %1750, %v1164
    %v1752 = vpop.permute.xlu0 %1751
    %1755 = vset.pattern.permute.xlu0 0
    %1756 = vperm.xlu0 %1755, %v1165
    %v1757 = vpop.permute.xlu0 %1756
    %1760 = vset.pattern.permute.xlu0 0
    %1761 = vperm.xlu0 %1760, %v1166
    %v1762 = vpop.permute.xlu0 %1761
    %1765 = vset.pattern.permute.xlu0 0
    %1766 = vperm.xlu0 %1765, %v1167
    %v1767 = vpop.permute.xlu0 %1766
    %1770 = vset.pattern.permute.xlu0 0
    %1771 = vperm.xlu0 %1770, %v1168
    %v1772 = vpop.permute.xlu0 %1771
    %1775 = vset.pattern.permute.xlu0 0
    %1776 = vperm.xlu0 %1775, %v1169
    %v1777 = vpop.permute.xlu0 %1776
    %1780 = vset.pattern.permute.xlu0 0
    %1781 = vperm.xlu0 %1780, %v1170
    %v1782 = vpop.permute.xlu0 %1781
    %1785 = vset.pattern.permute.xlu0 0
    %1786 = vperm.xlu0 %1785, %v1171
    %v1787 = vpop.permute.xlu0 %1786
    %1790 = vset.pattern.permute.xlu0 0
    %1791 = vperm.xlu0 %1790, %v1172
    %v1792 = vpop.permute.xlu0 %1791
    %1795 = vset.pattern.permute.xlu0 0
    %1796 = vperm.xlu0 %1795, %v1173
    %v1797 = vpop.permute.xlu0 %1796
    %1800 = vset.pattern.permute.xlu0 0
    %1801 = vperm.xlu0 %1800, %v1174
    %v1802 = vpop.permute.xlu0 %1801
    %1805 = vset.pattern.permute.xlu0 0
    %1806 = vperm.xlu0 %1805, %v1175
    %v1807 = vpop.permute.xlu0 %1806
    %1810 = vset.pattern.permute.xlu0 0
    %1811 = vperm.xlu0 %1810, %v1176
    %v1812 = vpop.permute.xlu0 %1811
    %1815 = vset.pattern.permute.xlu0 0
    %1816 = vperm.xlu0 %1815, %v1177
    %v1817 = vpop.permute.xlu0 %1816
    %1820 = vset.pattern.permute.xlu0 0
    %1821 = vperm.xlu0 %1820, %v1178
    %v1822 = vpop.permute.xlu0 %1821
    %1825 = vset.pattern.permute.xlu0 0
    %1826 = vperm.xlu0 %1825, %v1179
    %v1827 = vpop.permute.xlu0 %1826
    %1830 = vset.pattern.permute.xlu0 0
    %1831 = vperm.xlu0 %1830, %v1180
    %v1832 = vpop.permute.xlu0 %1831
    %1835 = vset.pattern.permute.xlu0 0
    %1836 = vperm.xlu0 %1835, %v1181
    %v1837 = vpop.permute.xlu0 %1836
    %1840 = vset.pattern.permute.xlu0 0
    %1841 = vperm.xlu0 %1840, %v1182
    %v1842 = vpop.permute.xlu0 %1841
    %1845 = vset.pattern.permute.xlu0 0
    %1846 = vperm.xlu0 %1845, %v1183
    %v1847 = vpop.permute.xlu0 %1846
    %1850 = vset.pattern.permute.xlu0 0
    %1851 = vperm.xlu0 %1850, %v1184
    %v1852 = vpop.permute.xlu0 %1851
    %1855 = vset.pattern.permute.xlu0 0
    %1856 = vperm.xlu0 %1855, %v1185
    %v1857 = vpop.permute.xlu0 %1856
    %1860 = vset.pattern.permute.xlu0 0
    %1861 = vperm.xlu0 %1860, %v1186
    %v1862 = vpop.permute.xlu0 %1861
    %1865 = vset.pattern.permute.xlu0 0
    %1866 = vperm.xlu0 %1865, %v1187
    %v1867 = vpop.permute.xlu0 %1866
    %1870 = vset.pattern.permute.xlu0 0
    %1871 = vperm.xlu0 %1870, %v1188
    %v1872 = vpop.permute.xlu0 %1871
    %1875 = vset.pattern.permute.xlu0 0
    %1876 = vperm.xlu0 %1875, %v1189
    %v1877 = vpop.permute.xlu0 %1876
    %1880 = vset.pattern.permute.xlu0 0
    %1881 = vperm.xlu0 %1880, %v1190
    %v1882 = vpop.permute.xlu0 %1881
    %1885 = vset.pattern.permute.xlu0 0
    %1886 = vperm.xlu0 %1885, %v1191
    %v1887 = vpop.permute.xlu0 %1886
    %1890 = vset.pattern.permute.xlu0 0
    %1891 = vperm.xlu0 %1890, %v1192
    %v1892 = vpop.permute.xlu0 %1891
    %1895 = vset.pattern.permute.xlu0 0
    %1896 = vperm.xlu0 %1895, %v1193
    %v1897 = vpop.permute.xlu0 %1896
    %1900 = vset.pattern.permute.xlu0 0
    %1901 = vperm.xlu0 %1900, %v1194
    %v1902 = vpop.permute.xlu0 %1901
    %1905 = vset.pattern.permute.xlu0 0
    %1906 = vperm.xlu0 %1905, %v1195
    %v1907 = vpop.permute.xlu0 %1906
    %1910 = vset.pattern.permute.xlu0 0
    %1911 = vperm.xlu0 %1910, %v1196
    %v1912 = vpop.permute.xlu0 %1911
    %1915 = vset.pattern.permute.xlu0 0
    %1916 = vperm.xlu0 %1915, %v1197
    %v1917 = vpop.permute.xlu0 %1916
    %1920 = vset.pattern.permute.xlu0 0
    %1921 = vperm.xlu0 %1920, %v1198
    %v1922 = vpop.permute.xlu0 %1921
    %1925 = vset.pattern.permute.xlu0 0
    %1926 = vperm.xlu0 %1925, %v1199
    %v1927 = vpop.permute.xlu0 %1926
    %1930 = vset.pattern.permute.xlu0 0
    %1931 = vperm.xlu0 %1930, %v1200
    %v1932 = vpop.permute.xlu0 %1931
    %1935 = vset.pattern.permute.xlu0 0
    %1936 = vperm.xlu0 %1935, %v1201
    %v1937 = vpop.permute.xlu0 %1936
    %1940 = vset.pattern.permute.xlu0 0
    %1941 = vperm.xlu0 %1940, %v1202
    %v1942 = vpop.permute.xlu0 %1941
    %1945 = vset.pattern.permute.xlu0 0
    %1946 = vperm.xlu0 %1945, %v1203
    %v1947 = vpop.permute.xlu0 %1946
    %1950 = vset.pattern.permute.xlu0 0
    %1951 = vperm.xlu0 %1950, %v1204
    %v1952 = vpop.permute.xlu0 %1951
    %1955 = vset.pattern.permute.xlu0 0
    %1956 = vperm.xlu0 %1955, %v1205
    %v1957 = vpop.permute.xlu0 %1956
    %1960 = vset.pattern.permute.xlu0 0
    %1961 = vperm.xlu0 %1960, %v1206
    %v1962 = vpop.permute.xlu0 %1961
    %1965 = vset.pattern.permute.xlu0 0
    %1966 = vperm.xlu0 %1965, %v1207
    %v1967 = vpop.permute.xlu0 %1966
    %1970 = vset.pattern.permute.xlu0 0
    %1971 = vperm.xlu0 %1970, %v1208
    %v1972 = vpop.permute.xlu0 %1971
    %1975 = vset.pattern.permute.xlu0 0
    %1976 = vperm.xlu0 %1975, %v1209
    %v1977 = vpop.permute.xlu0 %1976
    %1980 = vset.pattern.permute.xlu0 0
    %1981 = vperm.xlu0 %1980, %v1210
    %v1982 = vpop.permute.xlu0 %1981
    %1985 = vset.pattern.permute.xlu0 0
    %1986 = vperm.xlu0 %1985, %v1211
    %v1987 = vpop.permute.xlu0 %1986
    %1990 = vset.pattern.permute.xlu0 0
    %1991 = vperm.xlu0 %1990, %v1212
    %v1992 = vpop.permute.xlu0 %1991
    %1995 = vset.pattern.permute.xlu0 0
    %1996 = vperm.xlu0 %1995, %v1213
    %v1997 = vpop.permute.xlu0 %1996
    %2000 = vset.pattern.permute.xlu0 0
    %2001 = vperm.xlu0 %2000, %v1214
    %v2002 = vpop.permute.xlu0 %2001
    %2005 = vset.pattern.permute.xlu0 0
    %2006 = vperm.xlu0 %2005, %v1215
    %v2007 = vpop.permute.xlu0 %2006
    %2010 = vset.pattern.permute.xlu0 0
    %2011 = vperm.xlu0 %2010, %v1216
    %v2012 = vpop.permute.xlu0 %2011
    %2015 = vset.pattern.permute.xlu0 0
    %2016 = vperm.xlu0 %2015, %v1217
    %v2017 = vpop.permute.xlu0 %2016
    %2020 = vset.pattern.permute.xlu0 0
    %2021 = vperm.xlu0 %2020, %v1218
    %v2022 = vpop.permute.xlu0 %2021
    %2025 = vset.pattern.permute.xlu0 0
    %2026 = vperm.xlu0 %2025, %v1219
    %v2027 = vpop.permute.xlu0 %2026
    %2030 = vset.pattern.permute.xlu0 0
    %2031 = vperm.xlu0 %2030, %v1220
    %v2032 = vpop.permute.xlu0 %2031
    %2035 = vset.pattern.permute.xlu0 0
    %2036 = vperm.xlu0 %2035, %v1221
    %v2037 = vpop.permute.xlu0 %2036
    %2040 = vset.pattern.permute.xlu0 0
    %2041 = vperm.xlu0 %2040, %v1222
    %v2042 = vpop.permute.xlu0 %2041
    %2045 = vset.pattern.permute.xlu0 0
    %2046 = vperm.xlu0 %2045, %v1223
    %v2047 = vpop.permute.xlu0 %2046
    %2050 = vset.pattern.permute.xlu0 0
    %2051 = vperm.xlu0 %2050, %v1224
    %v2052 = vpop.permute.xlu0 %2051
    %2055 = vset.pattern.permute.xlu0 0
    %2056 = vperm.xlu0 %2055, %v1225
    %v2057 = vpop.permute.xlu0 %2056
    %2060 = vset.pattern.permute.xlu0 0
    %2061 = vperm.xlu0 %2060, %v1226
    %v2062 = vpop.permute.xlu0 %2061
    %2065 = vset.pattern.permute.xlu0 0
    %2066 = vperm.xlu0 %2065, %v1227
    %v2067 = vpop.permute.xlu0 %2066
    %2070 = vset.pattern.permute.xlu0 0
    %2071 = vperm.xlu0 %2070, %v1228
    %v2072 = vpop.permute.xlu0 %2071
    %2075 = vset.pattern.permute.xlu0 0
    %2076 = vperm.xlu0 %2075, %v1229
    %v2077 = vpop.permute.xlu0 %2076
    %2080 = vset.pattern.permute.xlu0 0
    %2081 = vperm.xlu0 %2080, %v1230
    %v2082 = vpop.permute.xlu0 %2081
    %2085 = vset.pattern.permute.xlu0 0
    %2086 = vperm.xlu0 %2085, %v1231
    %v2087 = vpop.permute.xlu0 %2086
    %2090 = vset.pattern.permute.xlu0 0
    %2091 = vperm.xlu0 %2090, %v1232
    %v2092 = vpop.permute.xlu0 %2091
    %2095 = vset.pattern.permute.xlu0 0
    %2096 = vperm.xlu0 %2095, %v1233
    %v2097 = vpop.permute.xlu0 %2096
    %2100 = vset.pattern.permute.xlu0 0
    %2101 = vperm.xlu0 %2100, %v1234
    %v2102 = vpop.permute.xlu0 %2101
    %2105 = vset.pattern.permute.xlu0 0
    %2106 = vperm.xlu0 %2105, %v1235
    %v2107 = vpop.permute.xlu0 %2106
    %2110 = vset.pattern.permute.xlu0 0
    %2111 = vperm.xlu0 %2110, %v1236
    %v2112 = vpop.permute.xlu0 %2111
    %2115 = vset.pattern.permute.xlu0 0
    %2116 = vperm.xlu0 %2115, %v1237
    %v2117 = vpop.permute.xlu0 %2116
    %2120 = vset.pattern.permute.xlu0 0
    %2121 = vperm.xlu0 %2120, %v1238
    %v2122 = vpop.permute.xlu0 %2121
    %2125 = vset.pattern.permute.xlu0 0
    %2126 = vperm.xlu0 %2125, %v1239
    %v2127 = vpop.permute.xlu0 %2126
    %2130 = vset.pattern.permute.xlu0 0
    %2131 = vperm.xlu0 %2130, %v1240
    %v2132 = vpop.permute.xlu0 %2131
    %2135 = vset.pattern.permute.xlu0 0
    %2136 = vperm.xlu0 %2135, %v1241
    %v2137 = vpop.permute.xlu0 %2136
    %2140 = vset.pattern.permute.xlu0 0
    %2141 = vperm.xlu0 %2140, %v1242
    %v2142 = vpop.permute.xlu0 %2141
    %2145 = vset.pattern.permute.xlu0 0
    %2146 = vperm.xlu0 %2145, %v1243
    %v2147 = vpop.permute.xlu0 %2146
    %2150 = vset.pattern.permute.xlu0 0
    %2151 = vperm.xlu0 %2150, %v1244
    %v2152 = vpop.permute.xlu0 %2151
    %2155 = vset.pattern.permute.xlu0 0
    %2156 = vperm.xlu0 %2155, %v1245
    %v2157 = vpop.permute.xlu0 %2156
    %2160 = vset.pattern.permute.xlu0 0
    %2161 = vperm.xlu0 %2160, %v1246
    %v2162 = vpop.permute.xlu0 %2161
    %2165 = vset.pattern.permute.xlu0 0
    %2166 = vperm.xlu0 %2165, %v1247
    %v2167 = vpop.permute.xlu0 %2166
    %2170 = vset.pattern.permute.xlu0 0
    %2171 = vperm.xlu0 %2170, %v1248
    %v2172 = vpop.permute.xlu0 %2171
    %2175 = vset.pattern.permute.xlu0 0
    %2176 = vperm.xlu0 %2175, %v1249
    %v2177 = vpop.permute.xlu0 %2176
    %2180 = vset.pattern.permute.xlu0 0
    %2181 = vperm.xlu0 %2180, %v1250
    %v2182 = vpop.permute.xlu0 %2181
    %2185 = vset.pattern.permute.xlu0 0
    %2186 = vperm.xlu0 %2185, %v1251
    %v2187 = vpop.permute.xlu0 %2186
    %2190 = vset.pattern.permute.xlu0 0
    %2191 = vperm.xlu0 %2190, %v1252
    %v2192 = vpop.permute.xlu0 %2191
    %2195 = vset.pattern.permute.xlu0 0
    %2196 = vperm.xlu0 %2195, %v1253
    %v2197 = vpop.permute.xlu0 %2196
    %2200 = vset.pattern.permute.xlu0 0
    %2201 = vperm.xlu0 %2200, %v1254
    %v2202 = vpop.permute.xlu0 %2201
    %2205 = vset.pattern.permute.xlu0 0
    %2206 = vperm.xlu0 %2205, %v1255
    %v2207 = vpop.permute.xlu0 %2206
    %2210 = vset.pattern.permute.xlu0 0
    %2211 = vperm.xlu0 %2210, %v1256
    %v2212 = vpop.permute.xlu0 %2211
    %2215 = vset.pattern.permute.xlu0 0
    %2216 = vperm.xlu0 %2215, %v1257
    %v2217 = vpop.permute.xlu0 %2216
    %2220 = vset.pattern.permute.xlu0 0
    %2221 = vperm.xlu0 %2220, %v1258
    %v2222 = vpop.permute.xlu0 %2221
    %2225 = vset.pattern.permute.xlu0 0
    %2226 = vperm.xlu0 %2225, %v1259
    %v2227 = vpop.permute.xlu0 %2226
    %2230 = vset.pattern.permute.xlu0 0
    %2231 = vperm.xlu0 %2230, %v1260
    %v2232 = vpop.permute.xlu0 %2231
    %2235 = vset.pattern.permute.xlu0 0
    %2236 = vperm.xlu0 %2235, %v1261
    %v2237 = vpop.permute.xlu0 %2236
    %2240 = vset.pattern.permute.xlu0 0
    %2241 = vperm.xlu0 %2240, %v1262
    %v2242 = vpop.permute.xlu0 %2241
    %2245 = vset.pattern.permute.xlu0 0
    %2246 = vperm.xlu0 %2245, %v1263
    %v2247 = vpop.permute.xlu0 %2246
    %2250 = vset.pattern.permute.xlu0 0
    %2251 = vperm.xlu0 %2250, %v1264
    %v2252 = vpop.permute.xlu0 %2251
    %2255 = vset.pattern.permute.xlu0 0
    %2256 = vperm.xlu0 %2255, %v1265
    %v2257 = vpop.permute.xlu0 %2256
    %2260 = vset.pattern.permute.xlu0 0
    %2261 = vperm.xlu0 %2260, %v1266
    %v2262 = vpop.permute.xlu0 %2261
    %2265 = vset.pattern.permute.xlu0 0
    %2266 = vperm.xlu0 %2265, %v1267
    %v2267 = vpop.permute.xlu0 %2266
    %2270 = vset.pattern.permute.xlu0 0
    %2271 = vperm.xlu0 %2270, %v1268
    %v2272 = vpop.permute.xlu0 %2271
    %2275 = vset.pattern.permute.xlu0 0
    %2276 = vperm.xlu0 %2275, %v1269
    %v2277 = vpop.permute.xlu0 %2276
    %2280 = vset.pattern.permute.xlu0 0
    %2281 = vperm.xlu0 %2280, %v1270
    %v2282 = vpop.permute.xlu0 %2281
    %2285 = vset.pattern.permute.xlu0 0
    %2286 = vperm.xlu0 %2285, %v1271
    %v2287 = vpop.permute.xlu0 %2286
    %2290 = vset.pattern.permute.xlu0 0
    %2291 = vperm.xlu0 %2290, %v1272
    %v2292 = vpop.permute.xlu0 %2291
    %v2294 = vmul.f32 %v1430, %v1577
    %v2295 = vmul.f32 %v1431, %v1582
    %v2296 = vmul.f32 %v1432, %v1587
    %v2297 = vmul.f32 %v1433, %v1592
    %v2298 = vmul.f32 %v1434, %v1597
    %v2299 = vmul.f32 %v1435, %v1602
    %v2300 = vmul.f32 %v1436, %v1607
    %v2301 = vmul.f32 %v1437, %v1612
    %v2302 = vmul.f32 %v1438, %v1617
    %v2303 = vmul.f32 %v1439, %v1622
    %v2304 = vmul.f32 %v1440, %v1627
    %v2305 = vmul.f32 %v1441, %v1632
    %v2306 = vmul.f32 %v1442, %v1637
    %v2307 = vmul.f32 %v1443, %v1642
    %v2308 = vmul.f32 %v1444, %v1647
    %v2309 = vmul.f32 %v1445, %v1652
    %v2310 = vmul.f32 %v1446, %v1657
    %v2311 = vmul.f32 %v1447, %v1662
    %v2312 = vmul.f32 %v1448, %v1667
    %v2313 = vmul.f32 %v1449, %v1672
    %v2314 = vmul.f32 %v1450, %v1677
    %v2315 = vmul.f32 %v1451, %v1682
    %v2316 = vmul.f32 %v1452, %v1687
    %v2317 = vmul.f32 %v1453, %v1692
    %v2318 = vmul.f32 %v1454, %v1697
    %v2319 = vmul.f32 %v1455, %v1702
    %v2320 = vmul.f32 %v1456, %v1707
    %v2321 = vmul.f32 %v1457, %v1712
    %v2322 = vmul.f32 %v1458, %v1717
    %v2323 = vmul.f32 %v1459, %v1722
    %v2324 = vmul.f32 %v1460, %v1727
    %v2325 = vmul.f32 %v1461, %v1732
    %v2326 = vmul.f32 %v1462, %v1737
    %v2327 = vmul.f32 %v1463, %v1742
    %v2328 = vmul.f32 %v1464, %v1747
    %v2329 = vmul.f32 %v1465, %v1752
    %v2330 = vmul.f32 %v1466, %v1757
    %v2331 = vmul.f32 %v1467, %v1762
    %v2332 = vmul.f32 %v1468, %v1767
    %v2333 = vmul.f32 %v1469, %v1772
    %v2334 = vmul.f32 %v1470, %v1777
    %v2335 = vmul.f32 %v1471, %v1782
    %v2336 = vmul.f32 %v1472, %v1787
    %v2337 = vmul.f32 %v1473, %v1792
    %v2338 = vmul.f32 %v1474, %v1797
    %v2339 = vmul.f32 %v1475, %v1802
    %v2340 = vmul.f32 %v1476, %v1807
    %v2341 = vmul.f32 %v1477, %v1812
    %v2342 = vmul.f32 %v1478, %v1817
    %v2343 = vmul.f32 %v1479, %v1822
    %v2344 = vmul.f32 %v1480, %v1827
    %v2345 = vmul.f32 %v1481, %v1832
    %v2346 = vmul.f32 %v1482, %v1837
    %v2347 = vmul.f32 %v1483, %v1842
    %v2348 = vmul.f32 %v1484, %v1847
    %v2349 = vmul.f32 %v1485, %v1852
    %v2350 = vmul.f32 %v1486, %v1857
    %v2351 = vmul.f32 %v1487, %v1862
    %v2352 = vmul.f32 %v1488, %v1867
    %v2353 = vmul.f32 %v1489, %v1872
    %v2354 = vmul.f32 %v1490, %v1877
    %v2355 = vmul.f32 %v1491, %v1882
    %v2356 = vmul.f32 %v1492, %v1887
    %v2357 = vmul.f32 %v1493, %v1892
    %v2358 = vmul.f32 %v1494, %v1897
    %v2359 = vmul.f32 %v1495, %v1902
    %v2360 = vmul.f32 %v1496, %v1907
    %v2361 = vmul.f32 %v1497, %v1912
    %v2362 = vmul.f32 %v1498, %v1917
    %v2363 = vmul.f32 %v1499, %v1922
    %v2364 = vmul.f32 %v1500, %v1927
    %v2365 = vmul.f32 %v1501, %v1932
    %v2366 = vmul.f32 %v1502, %v1937
    %v2367 = vmul.f32 %v1503, %v1942
    %v2368 = vmul.f32 %v1504, %v1947
    %v2369 = vmul.f32 %v1505, %v1952
    %v2370 = vmul.f32 %v1506, %v1957
    %v2371 = vmul.f32 %v1507, %v1962
    %v2372 = vmul.f32 %v1508, %v1967
    %v2373 = vmul.f32 %v1509, %v1972
    %v2374 = vmul.f32 %v1510, %v1977
    %v2375 = vmul.f32 %v1511, %v1982
    %v2376 = vmul.f32 %v1512, %v1987
    %v2377 = vmul.f32 %v1513, %v1992
    %v2378 = vmul.f32 %v1514, %v1997
    %v2379 = vmul.f32 %v1515, %v2002
    %v2380 = vmul.f32 %v1516, %v2007
    %v2381 = vmul.f32 %v1517, %v2012
    %v2382 = vmul.f32 %v1518, %v2017
    %v2383 = vmul.f32 %v1519, %v2022
    %v2384 = vmul.f32 %v1520, %v2027
    %v2385 = vmul.f32 %v1521, %v2032
    %v2386 = vmul.f32 %v1522, %v2037
    %v2387 = vmul.f32 %v1523, %v2042
    %v2388 = vmul.f32 %v1524, %v2047
    %v2389 = vmul.f32 %v1525, %v2052
    %v2390 = vmul.f32 %v1526, %v2057
    %v2391 = vmul.f32 %v1527, %v2062
    %v2392 = vmul.f32 %v1528, %v2067
    %v2393 = vmul.f32 %v1529, %v2072
    %v2394 = vmul.f32 %v1530, %v2077
    %v2395 = vmul.f32 %v1531, %v2082
    %v2396 = vmul.f32 %v1532, %v2087
    %v2397 = vmul.f32 %v1533, %v2092
    %v2398 = vmul.f32 %v1534, %v2097
    %v2399 = vmul.f32 %v1535, %v2102
    %v2400 = vmul.f32 %v1536, %v2107
    %v2401 = vmul.f32 %v1537, %v2112
    %v2402 = vmul.f32 %v1538, %v2117
    %v2403 = vmul.f32 %v1539, %v2122
    %v2404 = vmul.f32 %v1540, %v2127
    %v2405 = vmul.f32 %v1541, %v2132
    %v2406 = vmul.f32 %v1542, %v2137
    %v2407 = vmul.f32 %v1543, %v2142
    %v2408 = vmul.f32 %v1544, %v2147
    %v2409 = vmul.f32 %v1545, %v2152
    %v2410 = vmul.f32 %v1546, %v2157
    %v2411 = vmul.f32 %v1547, %v2162
    %v2412 = vmul.f32 %v1548, %v2167
    %v2413 = vmul.f32 %v1549, %v2172
    %v2414 = vmul.f32 %v1550, %v2177
    %v2415 = vmul.f32 %v1551, %v2182
    %v2416 = vmul.f32 %v1552, %v2187
    %v2417 = vmul.f32 %v1553, %v2192
    %v2418 = vmul.f32 %v1554, %v2197
    %v2419 = vmul.f32 %v1555, %v2202
    %v2420 = vmul.f32 %v1556, %v2207
    %v2421 = vmul.f32 %v1557, %v2212
    %v2422 = vmul.f32 %v1558, %v2217
    %v2423 = vmul.f32 %v1559, %v2222
    %v2424 = vmul.f32 %v1560, %v2227
    %v2425 = vmul.f32 %v1561, %v2232
    %v2426 = vmul.f32 %v1562, %v2237
    %v2427 = vmul.f32 %v1563, %v2242
    %v2428 = vmul.f32 %v1564, %v2247
    %v2429 = vmul.f32 %v1565, %v2252
    %v2430 = vmul.f32 %v1566, %v2257
    %v2431 = vmul.f32 %v1567, %v2262
    %v2432 = vmul.f32 %v1568, %v2267
    %v2433 = vmul.f32 %v1569, %v2272
    %v2434 = vmul.f32 %v1570, %v2277
    %v2435 = vmul.f32 %v1571, %v2282
    %v2436 = vmul.f32 %v1572, %v2287
    %v2437 = vmul.f32 %v1573, %v2292
    %v2438 = vmul.f32 %v2294, %v2294
    %v2439 = vmul.f32 %v2295, %v2295
    %v2440 = vmul.f32 %v2296, %v2296
    %v2441 = vmul.f32 %v2297, %v2297
    %v2442 = vmul.f32 %v2298, %v2298
    %v2443 = vmul.f32 %v2299, %v2299
    %v2444 = vmul.f32 %v2300, %v2300
    %v2445 = vmul.f32 %v2301, %v2301
    %v2446 = vmul.f32 %v2302, %v2302
    %v2447 = vmul.f32 %v2303, %v2303
    %v2448 = vmul.f32 %v2304, %v2304
    %v2449 = vmul.f32 %v2305, %v2305
    %v2450 = vmul.f32 %v2306, %v2306
    %v2451 = vmul.f32 %v2307, %v2307
    %v2452 = vmul.f32 %v2308, %v2308
    %v2453 = vmul.f32 %v2309, %v2309
    %v2454 = vmul.f32 %v2310, %v2310
    %v2455 = vmul.f32 %v2311, %v2311
    %v2456 = vmul.f32 %v2312, %v2312
    %v2457 = vmul.f32 %v2313, %v2313
    %v2458 = vmul.f32 %v2314, %v2314
    %v2459 = vmul.f32 %v2315, %v2315
    %v2460 = vmul.f32 %v2316, %v2316
    %v2461 = vmul.f32 %v2317, %v2317
    %v2462 = vmul.f32 %v2318, %v2318
    %v2463 = vmul.f32 %v2319, %v2319
    %v2464 = vmul.f32 %v2320, %v2320
    %v2465 = vmul.f32 %v2321, %v2321
    %v2466 = vmul.f32 %v2322, %v2322
    %v2467 = vmul.f32 %v2323, %v2323
    %v2468 = vmul.f32 %v2324, %v2324
    %v2469 = vmul.f32 %v2325, %v2325
    %v2470 = vmul.f32 %v2326, %v2326
    %v2471 = vmul.f32 %v2327, %v2327
    %v2472 = vmul.f32 %v2328, %v2328
    %v2473 = vmul.f32 %v2329, %v2329
    %v2474 = vmul.f32 %v2330, %v2330
    %v2475 = vmul.f32 %v2331, %v2331
    %v2476 = vmul.f32 %v2332, %v2332
    %v2477 = vmul.f32 %v2333, %v2333
    %v2478 = vmul.f32 %v2334, %v2334
    %v2479 = vmul.f32 %v2335, %v2335
    %v2480 = vmul.f32 %v2336, %v2336
    %v2481 = vmul.f32 %v2337, %v2337
    %v2482 = vmul.f32 %v2338, %v2338
    %v2483 = vmul.f32 %v2339, %v2339
    %v2484 = vmul.f32 %v2340, %v2340
    %v2485 = vmul.f32 %v2341, %v2341
    %v2486 = vmul.f32 %v2342, %v2342
    %v2487 = vmul.f32 %v2343, %v2343
    %v2488 = vmul.f32 %v2344, %v2344
    %v2489 = vmul.f32 %v2345, %v2345
    %v2490 = vmul.f32 %v2346, %v2346
    %v2491 = vmul.f32 %v2347, %v2347
    %v2492 = vmul.f32 %v2348, %v2348
    %v2493 = vmul.f32 %v2349, %v2349
    %v2494 = vmul.f32 %v2350, %v2350
    %v2495 = vmul.f32 %v2351, %v2351
    %v2496 = vmul.f32 %v2352, %v2352
    %v2497 = vmul.f32 %v2353, %v2353
    %v2498 = vmul.f32 %v2354, %v2354
    %v2499 = vmul.f32 %v2355, %v2355
    %v2500 = vmul.f32 %v2356, %v2356
    %v2501 = vmul.f32 %v2357, %v2357
    %v2502 = vmul.f32 %v2358, %v2358
    %v2503 = vmul.f32 %v2359, %v2359
    %v2504 = vmul.f32 %v2360, %v2360
    %v2505 = vmul.f32 %v2361, %v2361
    %v2506 = vmul.f32 %v2362, %v2362
    %v2507 = vmul.f32 %v2363, %v2363
    %v2508 = vmul.f32 %v2364, %v2364
    %v2509 = vmul.f32 %v2365, %v2365
    %v2510 = vmul.f32 %v2366, %v2366
    %v2511 = vmul.f32 %v2367, %v2367
    %v2512 = vmul.f32 %v2368, %v2368
    %v2513 = vmul.f32 %v2369, %v2369
    %v2514 = vmul.f32 %v2370, %v2370
    %v2515 = vmul.f32 %v2371, %v2371
    %v2516 = vmul.f32 %v2372, %v2372
    %v2517 = vmul.f32 %v2373, %v2373
    %v2518 = vmul.f32 %v2374, %v2374
    %v2519 = vmul.f32 %v2375, %v2375
    %v2520 = vmul.f32 %v2376, %v2376
    %v2521 = vmul.f32 %v2377, %v2377
    %v2522 = vmul.f32 %v2378, %v2378
    %v2523 = vmul.f32 %v2379, %v2379
    %v2524 = vmul.f32 %v2380, %v2380
    %v2525 = vmul.f32 %v2381, %v2381
    %v2526 = vmul.f32 %v2382, %v2382
    %v2527 = vmul.f32 %v2383, %v2383
    %v2528 = vmul.f32 %v2384, %v2384
    %v2529 = vmul.f32 %v2385, %v2385
    %v2530 = vmul.f32 %v2386, %v2386
    %v2531 = vmul.f32 %v2387, %v2387
    %v2532 = vmul.f32 %v2388, %v2388
    %v2533 = vmul.f32 %v2389, %v2389
    %v2534 = vmul.f32 %v2390, %v2390
    %v2535 = vmul.f32 %v2391, %v2391
    %v2536 = vmul.f32 %v2392, %v2392
    %v2537 = vmul.f32 %v2393, %v2393
    %v2538 = vmul.f32 %v2394, %v2394
    %v2539 = vmul.f32 %v2395, %v2395
    %v2540 = vmul.f32 %v2396, %v2396
    %v2541 = vmul.f32 %v2397, %v2397
    %v2542 = vmul.f32 %v2398, %v2398
    %v2543 = vmul.f32 %v2399, %v2399
    %v2544 = vmul.f32 %v2400, %v2400
    %v2545 = vmul.f32 %v2401, %v2401
    %v2546 = vmul.f32 %v2402, %v2402
    %v2547 = vmul.f32 %v2403, %v2403
    %v2548 = vmul.f32 %v2404, %v2404
    %v2549 = vmul.f32 %v2405, %v2405
    %v2550 = vmul.f32 %v2406, %v2406
    %v2551 = vmul.f32 %v2407, %v2407
    %v2552 = vmul.f32 %v2408, %v2408
    %v2553 = vmul.f32 %v2409, %v2409
    %v2554 = vmul.f32 %v2410, %v2410
    %v2555 = vmul.f32 %v2411, %v2411
    %v2556 = vmul.f32 %v2412, %v2412
    %v2557 = vmul.f32 %v2413, %v2413
    %v2558 = vmul.f32 %v2414, %v2414
    %v2559 = vmul.f32 %v2415, %v2415
    %v2560 = vmul.f32 %v2416, %v2416
    %v2561 = vmul.f32 %v2417, %v2417
    %v2562 = vmul.f32 %v2418, %v2418
    %v2563 = vmul.f32 %v2419, %v2419
    %v2564 = vmul.f32 %v2420, %v2420
    %v2565 = vmul.f32 %v2421, %v2421
    %v2566 = vmul.f32 %v2422, %v2422
    %v2567 = vmul.f32 %v2423, %v2423
    %v2568 = vmul.f32 %v2424, %v2424
    %v2569 = vmul.f32 %v2425, %v2425
    %v2570 = vmul.f32 %v2426, %v2426
    %v2571 = vmul.f32 %v2427, %v2427
    %v2572 = vmul.f32 %v2428, %v2428
    %v2573 = vmul.f32 %v2429, %v2429
    %v2574 = vmul.f32 %v2430, %v2430
    %v2575 = vmul.f32 %v2431, %v2431
    %v2576 = vmul.f32 %v2432, %v2432
    %v2577 = vmul.f32 %v2433, %v2433
    %v2578 = vmul.f32 %v2434, %v2434
    %v2579 = vmul.f32 %v2435, %v2435
    %v2580 = vmul.f32 %v2436, %v2436
    %v2581 = vmul.f32 %v2437, %v2437
    %v2582 = vadd.f32 %v2438, %v2439
    %v2583 = vadd.f32 %v2582, %v2440
    %v2584 = vadd.f32 %v2583, %v2441
    %v2585 = vadd.f32 %v2584, %v2442
    %v2586 = vadd.f32 %v2585, %v2443
    %v2587 = vadd.f32 %v2586, %v2444
    %v2588 = vadd.f32 %v2587, %v2445
    %v2589 = vadd.f32 %v2588, %v2446
    %v2590 = vadd.f32 %v2589, %v2447
    %v2591 = vadd.f32 %v2590, %v2448
    %v2592 = vadd.f32 %v2591, %v2449
    %v2593 = vadd.f32 %v2592, %v2450
    %v2594 = vadd.f32 %v2593, %v2451
    %v2595 = vadd.f32 %v2594, %v2452
    %v2596 = vadd.f32 %v2595, %v2453
    %v2597 = vadd.f32 %v2596, %v2454
    %v2598 = vadd.f32 %v2597, %v2455
    %v2599 = vadd.f32 %v2598, %v2456
    %v2600 = vadd.f32 %v2599, %v2457
    %v2601 = vadd.f32 %v2600, %v2458
    %v2602 = vadd.f32 %v2601, %v2459
    %v2603 = vadd.f32 %v2602, %v2460
    %v2604 = vadd.f32 %v2603, %v2461
    %v2605 = vadd.f32 %v2604, %v2462
    %v2606 = vadd.f32 %v2605, %v2463
    %v2607 = vadd.f32 %v2606, %v2464
    %v2608 = vadd.f32 %v2607, %v2465
    %v2609 = vadd.f32 %v2608, %v2466
    %v2610 = vadd.f32 %v2609, %v2467
    %v2611 = vadd.f32 %v2610, %v2468
    %v2612 = vadd.f32 %v2611, %v2469
    %v2613 = vadd.f32 %v2612, %v2470
    %v2614 = vadd.f32 %v2613, %v2471
    %v2615 = vadd.f32 %v2614, %v2472
    %v2616 = vadd.f32 %v2615, %v2473
    %v2617 = vadd.f32 %v2616, %v2474
    %v2618 = vadd.f32 %v2617, %v2475
    %v2619 = vadd.f32 %v2618, %v2476
    %v2620 = vadd.f32 %v2619, %v2477
    %v2621 = vadd.f32 %v2620, %v2478
    %v2622 = vadd.f32 %v2621, %v2479
    %v2623 = vadd.f32 %v2622, %v2480
    %v2624 = vadd.f32 %v2623, %v2481
    %v2625 = vadd.f32 %v2624, %v2482
    %v2626 = vadd.f32 %v2625, %v2483
    %v2627 = vadd.f32 %v2626, %v2484
    %v2628 = vadd.f32 %v2627, %v2485
    %v2629 = vadd.f32 %v2628, %v2486
    %v2630 = vadd.f32 %v2629, %v2487
    %v2631 = vadd.f32 %v2630, %v2488
    %v2632 = vadd.f32 %v2631, %v2489
    %v2633 = vadd.f32 %v2632, %v2490
    %v2634 = vadd.f32 %v2633, %v2491
    %v2635 = vadd.f32 %v2634, %v2492
    %v2636 = vadd.f32 %v2635, %v2493
    %v2637 = vadd.f32 %v2636, %v2494
    %v2638 = vadd.f32 %v2637, %v2495
    %v2639 = vadd.f32 %v2638, %v2496
    %v2640 = vadd.f32 %v2639, %v2497
    %v2641 = vadd.f32 %v2640, %v2498
    %v2642 = vadd.f32 %v2641, %v2499
    %v2643 = vadd.f32 %v2642, %v2500
    %v2644 = vadd.f32 %v2643, %v2501
    %v2645 = vadd.f32 %v2644, %v2502
    %v2646 = vadd.f32 %v2645, %v2503
    %v2647 = vadd.f32 %v2646, %v2504
    %v2648 = vadd.f32 %v2647, %v2505
    %v2649 = vadd.f32 %v2648, %v2506
    %v2650 = vadd.f32 %v2649, %v2507
    %v2651 = vadd.f32 %v2650, %v2508
    %v2652 = vadd.f32 %v2651, %v2509
    %v2653 = vadd.f32 %v2652, %v2510
    %v2654 = vadd.f32 %v2653, %v2511
    %v2655 = vadd.f32 %v2654, %v2512
    %v2656 = vadd.f32 %v2655, %v2513
    %v2657 = vadd.f32 %v2656, %v2514
    %v2658 = vadd.f32 %v2657, %v2515
    %v2659 = vadd.f32 %v2658, %v2516
    %v2660 = vadd.f32 %v2659, %v2517
    %v2661 = vadd.f32 %v2660, %v2518
    %v2662 = vadd.f32 %v2661, %v2519
    %v2663 = vadd.f32 %v2662, %v2520
    %v2664 = vadd.f32 %v2663, %v2521
    %v2665 = vadd.f32 %v2664, %v2522
    %v2666 = vadd.f32 %v2665, %v2523
    %v2667 = vadd.f32 %v2666, %v2524
    %v2668 = vadd.f32 %v2667, %v2525
    %v2669 = vadd.f32 %v2668, %v2526
    %v2670 = vadd.f32 %v2669, %v2527
    %v2671 = vadd.f32 %v2670, %v2528
    %v2672 = vadd.f32 %v2671, %v2529
    %v2673 = vadd.f32 %v2672, %v2530
    %v2674 = vadd.f32 %v2673, %v2531
    %v2675 = vadd.f32 %v2674, %v2532
    %v2676 = vadd.f32 %v2675, %v2533
    %v2677 = vadd.f32 %v2676, %v2534
    %v2678 = vadd.f32 %v2677, %v2535
    %v2679 = vadd.f32 %v2678, %v2536
    %v2680 = vadd.f32 %v2679, %v2537
    %v2681 = vadd.f32 %v2680, %v2538
    %v2682 = vadd.f32 %v2681, %v2539
    %v2683 = vadd.f32 %v2682, %v2540
    %v2684 = vadd.f32 %v2683, %v2541
    %v2685 = vadd.f32 %v2684, %v2542
    %v2686 = vadd.f32 %v2685, %v2543
    %v2687 = vadd.f32 %v2686, %v2544
    %v2688 = vadd.f32 %v2687, %v2545
    %v2689 = vadd.f32 %v2688, %v2546
    %v2690 = vadd.f32 %v2689, %v2547
    %v2691 = vadd.f32 %v2690, %v2548
    %v2692 = vadd.f32 %v2691, %v2549
    %v2693 = vadd.f32 %v2692, %v2550
    %v2694 = vadd.f32 %v2693, %v2551
    %v2695 = vadd.f32 %v2694, %v2552
    %v2696 = vadd.f32 %v2695, %v2553
    %v2697 = vadd.f32 %v2696, %v2554
    %v2698 = vadd.f32 %v2697, %v2555
    %v2699 = vadd.f32 %v2698, %v2556
    %v2700 = vadd.f32 %v2699, %v2557
    %v2701 = vadd.f32 %v2700, %v2558
    %v2702 = vadd.f32 %v2701, %v2559
    %v2703 = vadd.f32 %v2702, %v2560
    %v2704 = vadd.f32 %v2703, %v2561
    %v2705 = vadd.f32 %v2704, %v2562
    %v2706 = vadd.f32 %v2705, %v2563
    %v2707 = vadd.f32 %v2706, %v2564
    %v2708 = vadd.f32 %v2707, %v2565
    %v2709 = vadd.f32 %v2708, %v2566
    %v2710 = vadd.f32 %v2709, %v2567
    %v2711 = vadd.f32 %v2710, %v2568
    %v2712 = vadd.f32 %v2711, %v2569
    %v2713 = vadd.f32 %v2712, %v2570
    %v2714 = vadd.f32 %v2713, %v2571
    %v2715 = vadd.f32 %v2714, %v2572
    %v2716 = vadd.f32 %v2715, %v2573
    %v2717 = vadd.f32 %v2716, %v2574
    %v2718 = vadd.f32 %v2717, %v2575
    %v2719 = vadd.f32 %v2718, %v2576
    %v2720 = vadd.f32 %v2719, %v2577
    %v2721 = vadd.f32 %v2720, %v2578
    %v2722 = vadd.f32 %v2721, %v2579
    %v2723 = vadd.f32 %v2722, %v2580
    %v2724 = vadd.f32 %v2723, %v2581
    %v2725 = vrot.slane %v2724, 4
    %v2726 = vadd.f32 %v2724, %v2725
    %v2727 = vrot.slane %v2726, 2
    %v2728 = vadd.f32 %v2726, %v2727
    %v2729 = vrot.slane %v2728, 1
    %v2730 = vadd.f32 %v2728, %v2729
    %v2731 = vmul.f32 %v2730, %v1428
    %v2732 = vld [vmem:[%s4] sm:$0x1]
    %v2733 = vadd.f32 %v2731, 0.001
    %v2734 = vrsqrt.pop %v2733
    %v2735 = vmul.f32 %v2734, %v2733
    %v2736 = vmul.f32 %v2735, %v2734
    %v2737 = vmul.f32 0.5, %v2736
    %v2738 = vsub.f32 1.5, %v2737
    %v2739 = vmul.f32 %v2734, %v2738
    %vm2740 = vweird.f32 %v2733
    %vm2741 = vweird.f32 %v2734
    %vm2742 = vmor %vm2740, %vm2741
    %v2743 = vsel %vm2742, %v2734, %v2739
    %v2744 = vmul.f32 %v2732, %v2743
    %v2745 = vld [vmem:[%s5] sm:$0x1]
    %v2746 = vmul.f32 %v1429, %v2744
    %v2747 = vsub.f32 %v2745, %v2746
    %v2749 = vperm.slane %v2744, 0
    %v2751 = vmul.f32 %v770, %v2749
    %v2752 = vmul.f32 %v772, %v2749
    %v2753 = vmul.f32 %v775, %v2749
    %v2754 = vmul.f32 %v777, %v2749
    %v2755 = vmul.f32 %v780, %v2749
    %v2756 = vmul.f32 %v782, %v2749
    %v2757 = vmul.f32 %v785, %v2749
    %v2758 = vmul.f32 %v787, %v2749
    %v2759 = vmul.f32 %v790, %v2749
    %v2760 = vmul.f32 %v792, %v2749
    %v2761 = vmul.f32 %v795, %v2749
    %v2762 = vmul.f32 %v797, %v2749
    %v2763 = vmul.f32 %v800, %v2749
    %v2764 = vmul.f32 %v802, %v2749
    %v2765 = vmul.f32 %v805, %v2749
    %v2766 = vmul.f32 %v807, %v2749
    %v2767 = vmul.f32 %v810, %v2749
    %v2768 = vmul.f32 %v812, %v2749
    %v2769 = vmul.f32 %v815, %v2749
    %v2770 = vmul.f32 %v817, %v2749
    %v2771 = vmul.f32 %v820, %v2749
    %v2772 = vmul.f32 %v822, %v2749
    %v2773 = vmul.f32 %v825, %v2749
    %v2774 = vmul.f32 %v827, %v2749
    %v2775 = vmul.f32 %v830, %v2749
    %v2776 = vmul.f32 %v832, %v2749
    %v2777 = vmul.f32 %v835, %v2749
    %v2778 = vmul.f32 %v837, %v2749
    %v2779 = vmul.f32 %v840, %v2749
    %v2780 = vmul.f32 %v842, %v2749
    %v2781 = vmul.f32 %v845, %v2749
    %v2782 = vmul.f32 %v847, %v2749
    %v2783 = vmul.f32 %v850, %v2749
    %v2784 = vmul.f32 %v852, %v2749
    %v2785 = vmul.f32 %v855, %v2749
    %v2786 = vmul.f32 %v857, %v2749
    %v2787 = vmul.f32 %v860, %v2749
    %v2788 = vmul.f32 %v865, %v2749
    %v2789 = vmul.f32 %v870, %v2749
    %v2790 = vmul.f32 %v875, %v2749
    %v2791 = vmul.f32 %v880, %v2749
    %v2792 = vmul.f32 %v885, %v2749
    %v2793 = vmul.f32 %v890, %v2749
    %v2794 = vmul.f32 %v895, %v2749
    %v2795 = vmul.f32 %v900, %v2749
    %v2796 = vmul.f32 %v905, %v2749
    %v2797 = vmul.f32 %v910, %v2749
    %v2798 = vmul.f32 %v915, %v2749
    %v2799 = vmul.f32 %v920, %v2749
    %v2800 = vmul.f32 %v925, %v2749
    %v2801 = vmul.f32 %v930, %v2749
    %v2802 = vmul.f32 %v935, %v2749
    %v2803 = vmul.f32 %v940, %v2749
    %v2804 = vmul.f32 %v945, %v2749
    %v2805 = vmul.f32 %v950, %v2749
    %v2806 = vmul.f32 %v952, %v2749
    %v2807 = vmul.f32 %v955, %v2749
    %v2808 = vmul.f32 %v957, %v2749
    %v2809 = vmul.f32 %v960, %v2749
    %v2810 = vmul.f32 %v962, %v2749
    %v2811 = vmul.f32 %v965, %v2749
    %v2812 = vmul.f32 %v967, %v2749
    %v2813 = vmul.f32 %v970, %v2749
    %v2814 = vmul.f32 %v972, %v2749
    %v2815 = vmul.f32 %v975, %v2749
    %v2816 = vmul.f32 %v977, %v2749
    %v2817 = vmul.f32 %v980, %v2749
    %v2818 = vmul.f32 %v982, %v2749
    %v2819 = vmul.f32 %v985, %v2749
    %v2820 = vmul.f32 %v987, %v2749
    %v2821 = vmul.f32 %v995, %v2749
    %v2822 = vmul.f32 %v997, %v2749
    %v2823 = vmul.f32 %v1000, %v2749
    %v2824 = vmul.f32 %v1002, %v2749
    %v2825 = vmul.f32 %v1005, %v2749
    %v2826 = vmul.f32 %v1007, %v2749
    %v2827 = vmul.f32 %v1010, %v2749
    %v2828 = vmul.f32 %v1012, %v2749
    %v2829 = vmul.f32 %v1015, %v2749
    %v2830 = vmul.f32 %v1017, %v2749
    %v2831 = vmul.f32 %v1020, %v2749
    %v2832 = vmul.f32 %v1022, %v2749
    %v2833 = vmul.f32 %v1025, %v2749
    %v2834 = vmul.f32 %v1027, %v2749
    %v2835 = vmul.f32 %v1030, %v2749
    %v2836 = vmul.f32 %v1032, %v2749
    %v2837 = vmul.f32 %v1040, %v2749
    %v2838 = vmul.f32 %v1045, %v2749
    %v2839 = vmul.f32 %v1050, %v2749
    %v2840 = vmul.f32 %v1055, %v2749
    %v2841 = vmul.f32 %v1060, %v2749
    %v2842 = vmul.f32 %v1065, %v2749
    %v2843 = vmul.f32 %v1070, %v2749
    %v2844 = vmul.f32 %v1075, %v2749
    %v2845 = vmul.f32 %v1085, %v2749
    %v2846 = vmul.f32 %v1090, %v2749
    %v2847 = vmul.f32 %v1095, %v2749
    %v2848 = vmul.f32 %v1100, %v2749
    %v2849 = vmul.f32 %v1105, %v2749
    %v2850 = vmul.f32 %v1110, %v2749
    %v2851 = vmul.f32 %v1115, %v2749
    %v2852 = vmul.f32 %v1120, %v2749
    %v2854 = vperm.slane %v2747, 0
    %v2856 = vadd.f32 %v2751, %v2854
    %v2857 = vadd.f32 %v2752, %v2854
    %v2858 = vadd.f32 %v2753, %v2854
    %v2859 = vadd.f32 %v2754, %v2854
    %v2860 = vadd.f32 %v2755, %v2854
    %v2861 = vadd.f32 %v2756, %v2854
    %v2862 = vadd.f32 %v2757, %v2854
    %v2863 = vadd.f32 %v2758, %v2854
    %v2864 = vadd.f32 %v2759, %v2854
    %v2865 = vadd.f32 %v2760, %v2854
    %v2866 = vadd.f32 %v2761, %v2854
    %v2867 = vadd.f32 %v2762, %v2854
    %v2868 = vadd.f32 %v2763, %v2854
    %v2869 = vadd.f32 %v2764, %v2854
    %v2870 = vadd.f32 %v2765, %v2854
    %v2871 = vadd.f32 %v2766, %v2854
    %v2872 = vadd.f32 %v2767, %v2854
    %v2873 = vadd.f32 %v2768, %v2854
    %v2874 = vadd.f32 %v2769, %v2854
    %v2875 = vadd.f32 %v2770, %v2854
    %v2876 = vadd.f32 %v2771, %v2854
    %v2877 = vadd.f32 %v2772, %v2854
    %v2878 = vadd.f32 %v2773, %v2854
    %v2879 = vadd.f32 %v2774, %v2854
    %v2880 = vadd.f32 %v2775, %v2854
    %v2881 = vadd.f32 %v2776, %v2854
    %v2882 = vadd.f32 %v2777, %v2854
    %v2883 = vadd.f32 %v2778, %v2854
    %v2884 = vadd.f32 %v2779, %v2854
    %v2885 = vadd.f32 %v2780, %v2854
    %v2886 = vadd.f32 %v2781, %v2854
    %v2887 = vadd.f32 %v2782, %v2854
    %v2888 = vadd.f32 %v2783, %v2854
    %v2889 = vadd.f32 %v2784, %v2854
    %v2890 = vadd.f32 %v2785, %v2854
    %v2891 = vadd.f32 %v2786, %v2854
    %v2892 = vadd.f32 %v2787, %v2854
    %v2893 = vadd.f32 %v2788, %v2854
    %v2894 = vadd.f32 %v2789, %v2854
    %v2895 = vadd.f32 %v2790, %v2854
    %v2896 = vadd.f32 %v2791, %v2854
    %v2897 = vadd.f32 %v2792, %v2854
    %v2898 = vadd.f32 %v2793, %v2854
    %v2899 = vadd.f32 %v2794, %v2854
    %v2900 = vadd.f32 %v2795, %v2854
    %v2901 = vadd.f32 %v2796, %v2854
    %v2902 = vadd.f32 %v2797, %v2854
    %v2903 = vadd.f32 %v2798, %v2854
    %v2904 = vadd.f32 %v2799, %v2854
    %v2905 = vadd.f32 %v2800, %v2854
    %v2906 = vadd.f32 %v2801, %v2854
    %v2907 = vadd.f32 %v2802, %v2854
    %v2908 = vadd.f32 %v2803, %v2854
    %v2909 = vadd.f32 %v2804, %v2854
    %v2910 = vadd.f32 %v2805, %v2854
    %v2911 = vadd.f32 %v2806, %v2854
    %v2912 = vadd.f32 %v2807, %v2854
    %v2913 = vadd.f32 %v2808, %v2854
    %v2914 = vadd.f32 %v2809, %v2854
    %v2915 = vadd.f32 %v2810, %v2854
    %v2916 = vadd.f32 %v2811, %v2854
    %v2917 = vadd.f32 %v2812, %v2854
    %v2918 = vadd.f32 %v2813, %v2854
    %v2919 = vadd.f32 %v2814, %v2854
    %v2920 = vadd.f32 %v2815, %v2854
    %v2921 = vadd.f32 %v2816, %v2854
    %v2922 = vadd.f32 %v2817, %v2854
    %v2923 = vadd.f32 %v2818, %v2854
    %v2924 = vadd.f32 %v2819, %v2854
    %v2925 = vadd.f32 %v2820, %v2854
    %v2926 = vadd.f32 %v2821, %v2854
    %v2927 = vadd.f32 %v2822, %v2854
    %v2928 = vadd.f32 %v2823, %v2854
    %v2929 = vadd.f32 %v2824, %v2854
    %v2930 = vadd.f32 %v2825, %v2854
    %v2931 = vadd.f32 %v2826, %v2854
    %v2932 = vadd.f32 %v2827, %v2854
    %v2933 = vadd.f32 %v2828, %v2854
    %v2934 = vadd.f32 %v2829, %v2854
    %v2935 = vadd.f32 %v2830, %v2854
    %v2936 = vadd.f32 %v2831, %v2854
    %v2937 = vadd.f32 %v2832, %v2854
    %v2938 = vadd.f32 %v2833, %v2854
    %v2939 = vadd.f32 %v2834, %v2854
    %v2940 = vadd.f32 %v2835, %v2854
    %v2941 = vadd.f32 %v2836, %v2854
    %v2942 = vadd.f32 %v2837, %v2854
    %v2943 = vadd.f32 %v2838, %v2854
    %v2944 = vadd.f32 %v2839, %v2854
    %v2945 = vadd.f32 %v2840, %v2854
    %v2946 = vadd.f32 %v2841, %v2854
    %v2947 = vadd.f32 %v2842, %v2854
    %v2948 = vadd.f32 %v2843, %v2854
    %v2949 = vadd.f32 %v2844, %v2854
    %v2950 = vadd.f32 %v2845, %v2854
    %v2951 = vadd.f32 %v2846, %v2854
    %v2952 = vadd.f32 %v2847, %v2854
    %v2953 = vadd.f32 %v2848, %v2854
    %v2954 = vadd.f32 %v2849, %v2854
    %v2955 = vadd.f32 %v2850, %v2854
    %v2956 = vadd.f32 %v2851, %v2854
    %v2957 = vadd.f32 %v2852, %v2854
    %v2958 = vmax.f32 %v2856, 0.0
    %v2959 = vmax.f32 %v2857, 0.0
    %v2960 = vmax.f32 %v2858, 0.0
    %v2961 = vmax.f32 %v2859, 0.0
    %v2962 = vmax.f32 %v2860, 0.0
    %v2963 = vmax.f32 %v2861, 0.0
    %v2964 = vmax.f32 %v2862, 0.0
    %v2965 = vmax.f32 %v2863, 0.0
    %v2966 = vmax.f32 %v2864, 0.0
    %v2967 = vmax.f32 %v2865, 0.0
    %v2968 = vmax.f32 %v2866, 0.0
    %v2969 = vmax.f32 %v2867, 0.0
    %v2970 = vmax.f32 %v2868, 0.0
    %v2971 = vmax.f32 %v2869, 0.0
    %v2972 = vmax.f32 %v2870, 0.0
    %v2973 = vmax.f32 %v2871, 0.0
    %v2974 = vmax.f32 %v2872, 0.0
    %v2975 = vmax.f32 %v2873, 0.0
    %v2976 = vmax.f32 %v2874, 0.0
    %v2977 = vmax.f32 %v2875, 0.0
    %v2978 = vmax.f32 %v2876, 0.0
    %v2979 = vmax.f32 %v2877, 0.0
    %v2980 = vmax.f32 %v2878, 0.0
    %v2981 = vmax.f32 %v2879, 0.0
    %v2982 = vmax.f32 %v2880, 0.0
    %v2983 = vmax.f32 %v2881, 0.0
    %v2984 = vmax.f32 %v2882, 0.0
    %v2985 = vmax.f32 %v2883, 0.0
    %v2986 = vmax.f32 %v2884, 0.0
    %v2987 = vmax.f32 %v2885, 0.0
    %v2988 = vmax.f32 %v2886, 0.0
    %v2989 = vmax.f32 %v2887, 0.0
    %v2990 = vmax.f32 %v2888, 0.0
    %v2991 = vmax.f32 %v2889, 0.0
    %v2992 = vmax.f32 %v2890, 0.0
    %v2993 = vmax.f32 %v2891, 0.0
    %v2994 = vmax.f32 %v2892, 0.0
    %v2995 = vmax.f32 %v2893, 0.0
    %v2996 = vmax.f32 %v2894, 0.0
    %v2997 = vmax.f32 %v2895, 0.0
    %v2998 = vmax.f32 %v2896, 0.0
    %v2999 = vmax.f32 %v2897, 0.0
    %v3000 = vmax.f32 %v2898, 0.0
    %v3001 = vmax.f32 %v2899, 0.0
    %v3002 = vmax.f32 %v2900, 0.0
    %v3003 = vmax.f32 %v2901, 0.0
    %v3004 = vmax.f32 %v2902, 0.0
    %v3005 = vmax.f32 %v2903, 0.0
    %v3006 = vmax.f32 %v2904, 0.0
    %v3007 = vmax.f32 %v2905, 0.0
    %v3008 = vmax.f32 %v2906, 0.0
    %v3009 = vmax.f32 %v2907, 0.0
    %v3010 = vmax.f32 %v2908, 0.0
    %v3011 = vmax.f32 %v2909, 0.0
    %v3012 = vmax.f32 %v2910, 0.0
    %v3013 = vmax.f32 %v2911, 0.0
    %v3014 = vmax.f32 %v2912, 0.0
    %v3015 = vmax.f32 %v2913, 0.0
    %v3016 = vmax.f32 %v2914, 0.0
    %v3017 = vmax.f32 %v2915, 0.0
    %v3018 = vmax.f32 %v2916, 0.0
    %v3019 = vmax.f32 %v2917, 0.0
    %v3020 = vmax.f32 %v2918, 0.0
    %v3021 = vmax.f32 %v2919, 0.0
    %v3022 = vmax.f32 %v2920, 0.0
    %v3023 = vmax.f32 %v2921, 0.0
    %v3024 = vmax.f32 %v2922, 0.0
    %v3025 = vmax.f32 %v2923, 0.0
    %v3026 = vmax.f32 %v2924, 0.0
    %v3027 = vmax.f32 %v2925, 0.0
    %v3028 = vmax.f32 %v2926, 0.0
    %v3029 = vmax.f32 %v2927, 0.0
    %v3030 = vmax.f32 %v2928, 0.0
    %v3031 = vmax.f32 %v2929, 0.0
    %v3032 = vmax.f32 %v2930, 0.0
    %v3033 = vmax.f32 %v2931, 0.0
    %v3034 = vmax.f32 %v2932, 0.0
    %v3035 = vmax.f32 %v2933, 0.0
    %v3036 = vmax.f32 %v2934, 0.0
    %v3037 = vmax.f32 %v2935, 0.0
    %v3038 = vmax.f32 %v2936, 0.0
    %v3039 = vmax.f32 %v2937, 0.0
    %v3040 = vmax.f32 %v2938, 0.0
    %v3041 = vmax.f32 %v2939, 0.0
    %v3042 = vmax.f32 %v2940, 0.0
    %v3043 = vmax.f32 %v2941, 0.0
    %v3044 = vmax.f32 %v2942, 0.0
    %v3045 = vmax.f32 %v2943, 0.0
    %v3046 = vmax.f32 %v2944, 0.0
    %v3047 = vmax.f32 %v2945, 0.0
    %v3048 = vmax.f32 %v2946, 0.0
    %v3049 = vmax.f32 %v2947, 0.0
    %v3050 = vmax.f32 %v2948, 0.0
    %v3051 = vmax.f32 %v2949, 0.0
    %v3052 = vmax.f32 %v2950, 0.0
    %v3053 = vmax.f32 %v2951, 0.0
    %v3054 = vmax.f32 %v2952, 0.0
    %v3055 = vmax.f32 %v2953, 0.0
    %v3056 = vmax.f32 %v2954, 0.0
    %v3057 = vmax.f32 %v2955, 0.0
    %v3058 = vmax.f32 %v2956, 0.0
    %v3059 = vmax.f32 %v2957, 0.0
    %v3060 = vmul.f32 %v2958, %v1577
    %v3061 = vmul.f32 %v2959, %v1582
    %v3062 = vmul.f32 %v2960, %v1587
    %v3063 = vmul.f32 %v2961, %v1592
    %v3064 = vmul.f32 %v2962, %v1597
    %v3065 = vmul.f32 %v2963, %v1602
    %v3066 = vmul.f32 %v2964, %v1607
    %v3067 = vmul.f32 %v2965, %v1612
    %v3068 = vmul.f32 %v2966, %v1617
    %v3069 = vmul.f32 %v2967, %v1622
    %v3070 = vmul.f32 %v2968, %v1627
    %v3071 = vmul.f32 %v2969, %v1632
    %v3072 = vmul.f32 %v2970, %v1637
    %v3073 = vmul.f32 %v2971, %v1642
    %v3074 = vmul.f32 %v2972, %v1647
    %v3075 = vmul.f32 %v2973, %v1652
    %v3076 = vmul.f32 %v2974, %v1657
    %v3077 = vmul.f32 %v2975, %v1662
    %v3078 = vmul.f32 %v2976, %v1667
    %v3079 = vmul.f32 %v2977, %v1672
    %v3080 = vmul.f32 %v2978, %v1677
    %v3081 = vmul.f32 %v2979, %v1682
    %v3082 = vmul.f32 %v2980, %v1687
    %v3083 = vmul.f32 %v2981, %v1692
    %v3084 = vmul.f32 %v2982, %v1697
    %v3085 = vmul.f32 %v2983, %v1702
    %v3086 = vmul.f32 %v2984, %v1707
    %v3087 = vmul.f32 %v2985, %v1712
    %v3088 = vmul.f32 %v2986, %v1717
    %v3089 = vmul.f32 %v2987, %v1722
    %v3090 = vmul.f32 %v2988, %v1727
    %v3091 = vmul.f32 %v2989, %v1732
    %v3092 = vmul.f32 %v2990, %v1737
    %v3093 = vmul.f32 %v2991, %v1742
    %v3094 = vmul.f32 %v2992, %v1747
    %v3095 = vmul.f32 %v2993, %v1752
    %v3096 = vmul.f32 %v2994, %v1757
    %v3097 = vmul.f32 %v2995, %v1767
    %v3098 = vmul.f32 %v2996, %v1777
    %v3099 = vmul.f32 %v2997, %v1787
    %v3100 = vmul.f32 %v2998, %v1797
    %v3101 = vmul.f32 %v2999, %v1807
    %v3102 = vmul.f32 %v3000, %v1817
    %v3103 = vmul.f32 %v3001, %v1827
    %v3104 = vmul.f32 %v3002, %v1837
    %v3105 = vmul.f32 %v3003, %v1847
    %v3106 = vmul.f32 %v3004, %v1857
    %v3107 = vmul.f32 %v3005, %v1867
    %v3108 = vmul.f32 %v3006, %v1877
    %v3109 = vmul.f32 %v3007, %v1887
    %v3110 = vmul.f32 %v3008, %v1897
    %v3111 = vmul.f32 %v3009, %v1907
    %v3112 = vmul.f32 %v3010, %v1917
    %v3113 = vmul.f32 %v3011, %v1927
    %v3114 = vmul.f32 %v3012, %v1937
    %v3115 = vmul.f32 %v3013, %v1942
    %v3116 = vmul.f32 %v3014, %v1947
    %v3117 = vmul.f32 %v3015, %v1952
    %v3118 = vmul.f32 %v3016, %v1957
    %v3119 = vmul.f32 %v3017, %v1962
    %v3120 = vmul.f32 %v3018, %v1967
    %v3121 = vmul.f32 %v3019, %v1972
    %v3122 = vmul.f32 %v3020, %v1977
    %v3123 = vmul.f32 %v3021, %v1982
    %v3124 = vmul.f32 %v3022, %v1987
    %v3125 = vmul.f32 %v3023, %v1992
    %v3126 = vmul.f32 %v3024, %v1997
    %v3127 = vmul.f32 %v3025, %v2002
    %v3128 = vmul.f32 %v3026, %v2007
    %v3129 = vmul.f32 %v3027, %v2012
    %v3130 = vmul.f32 %v3028, %v2027
    %v3131 = vmul.f32 %v3029, %v2032
    %v3132 = vmul.f32 %v3030, %v2037
    %v3133 = vmul.f32 %v3031, %v2042
    %v3134 = vmul.f32 %v3032, %v2047
    %v3135 = vmul.f32 %v3033, %v2052
    %v3136 = vmul.f32 %v3034, %v2057
    %v3137 = vmul.f32 %v3035, %v2062
    %v3138 = vmul.f32 %v3036, %v2067
    %v3139 = vmul.f32 %v3037, %v2072
    %v3140 = vmul.f32 %v3038, %v2077
    %v3141 = vmul.f32 %v3039, %v2082
    %v3142 = vmul.f32 %v3040, %v2087
    %v3143 = vmul.f32 %v3041, %v2092
    %v3144 = vmul.f32 %v3042, %v2097
    %v3145 = vmul.f32 %v3043, %v2102
    %v3146 = vmul.f32 %v3044, %v2117
    %v3147 = vmul.f32 %v3045, %v2127
    %v3148 = vmul.f32 %v3046, %v2137
    %v3149 = vmul.f32 %v3047, %v2147
    %v3150 = vmul.f32 %v3048, %v2157
    %v3151 = vmul.f32 %v3049, %v2167
    %v3152 = vmul.f32 %v3050, %v2177
    %v3153 = vmul.f32 %v3051, %v2187
    %v3154 = vmul.f32 %v3052, %v2207
    %v3155 = vmul.f32 %v3053, %v2217
    %v3156 = vmul.f32 %v3054, %v2227
    %v3157 = vmul.f32 %v3055, %v2237
    %v3158 = vmul.f32 %v3056, %v2247
    %v3159 = vmul.f32 %v3057, %v2257
    %v3160 = vmul.f32 %v3058, %v2267
    %v3161 = vmul.f32 %v3059, %v2277
    %v3162 = vld [vmem:[%s3] sm:$0x7]
    %v3163 = vld [vmem:[%s3 + $0x4] sm:$0x7]
    %v3164 = vld [vmem:[%s3 + $0x8] sm:$0x7]
    %v3165 = vperm.slane %v3162, 0
    %v3166 = vmul.f32 %v3060, %v3165
    %v3167 = vmul.f32 %v3062, %v3165
    %v3168 = vmul.f32 %v3064, %v3165
    %v3169 = vmul.f32 %v3066, %v3165
    %v3170 = vmul.f32 %v3068, %v3165
    %v3171 = vmul.f32 %v3070, %v3165
    %v3172 = vmul.f32 %v3072, %v3165
    %v3173 = vmul.f32 %v3074, %v3165
    %v3174 = vmul.f32 %v3078, %v3165
    %v3175 = vmul.f32 %v3080, %v3165
    %v3176 = vmul.f32 %v3082, %v3165
    %v3177 = vmul.f32 %v3084, %v3165
    %v3178 = vmul.f32 %v3086, %v3165
    %v3179 = vmul.f32 %v3088, %v3165
    %v3180 = vmul.f32 %v3090, %v3165
    %v3181 = vmul.f32 %v3092, %v3165
    %v3182 = vadd.f32 %v3166, 0.0
    %v3183 = vadd.f32 %v3167, 0.0
    %v3184 = vadd.f32 %v3168, 0.0
    %v3185 = vadd.f32 %v3169, 0.0
    %v3186 = vadd.f32 %v3170, 0.0
    %v3187 = vadd.f32 %v3171, 0.0
    %v3188 = vadd.f32 %v3172, 0.0
    %v3189 = vadd.f32 %v3173, 0.0
    %v3190 = vadd.f32 %v3174, 0.0
    %v3191 = vadd.f32 %v3175, 0.0
    %v3192 = vadd.f32 %v3176, 0.0
    %v3193 = vadd.f32 %v3177, 0.0
    %v3194 = vadd.f32 %v3178, 0.0
    %v3195 = vadd.f32 %v3179, 0.0
    %v3196 = vadd.f32 %v3180, 0.0
    %v3197 = vadd.f32 %v3181, 0.0
    %v3198 = vperm.slane %v3162, 1
    %v3199 = vmul.f32 %v3096, %v3198
    %v3200 = vmul.f32 %v3097, %v3198
    %v3201 = vmul.f32 %v3098, %v3198
    %v3202 = vmul.f32 %v3099, %v3198
    %v3203 = vmul.f32 %v3100, %v3198
    %v3204 = vmul.f32 %v3101, %v3198
    %v3205 = vmul.f32 %v3102, %v3198
    %v3206 = vmul.f32 %v3103, %v3198
    %v3207 = vmul.f32 %v3105, %v3198
    %v3208 = vmul.f32 %v3106, %v3198
    %v3209 = vmul.f32 %v3107, %v3198
    %v3210 = vmul.f32 %v3108, %v3198
    %v3211 = vmul.f32 %v3109, %v3198
    %v3212 = vmul.f32 %v3110, %v3198
    %v3213 = vmul.f32 %v3111, %v3198
    %v3214 = vmul.f32 %v3112, %v3198
    %v3215 = vadd.f32 %v3182, %v3199
    %v3216 = vadd.f32 %v3183, %v3200
    %v3217 = vadd.f32 %v3184, %v3201
    %v3218 = vadd.f32 %v3185, %v3202
    %v3219 = vadd.f32 %v3186, %v3203
    %v3220 = vadd.f32 %v3187, %v3204
    %v3221 = vadd.f32 %v3188, %v3205
    %v3222 = vadd.f32 %v3189, %v3206
    %v3223 = vadd.f32 %v3190, %v3207
    %v3224 = vadd.f32 %v3191, %v3208
    %v3225 = vadd.f32 %v3192, %v3209
    %v3226 = vadd.f32 %v3193, %v3210
    %v3227 = vadd.f32 %v3194, %v3211
    %v3228 = vadd.f32 %v3195, %v3212
    %v3229 = vadd.f32 %v3196, %v3213
    %v3230 = vadd.f32 %v3197, %v3214
    %v3231 = vperm.slane %v3162, 2
    %v3232 = vmul.f32 %v3060, %v3231
    %v3233 = vmul.f32 %v3061, %v3231
    %v3234 = vmul.f32 %v3062, %v3231
    %v3235 = vmul.f32 %v3063, %v3231
    %v3236 = vmul.f32 %v3064, %v3231
    %v3237 = vmul.f32 %v3065, %v3231
    %v3238 = vmul.f32 %v3066, %v3231
    %v3239 = vmul.f32 %v3067, %v3231
    %v3240 = vmul.f32 %v3068, %v3231
    %v3241 = vmul.f32 %v3069, %v3231
    %v3242 = vmul.f32 %v3070, %v3231
    %v3243 = vmul.f32 %v3071, %v3231
    %v3244 = vmul.f32 %v3072, %v3231
    %v3245 = vmul.f32 %v3073, %v3231
    %v3246 = vmul.f32 %v3074, %v3231
    %v3247 = vmul.f32 %v3075, %v3231
    %v3248 = vmul.f32 %v3078, %v3231
    %v3249 = vmul.f32 %v3079, %v3231
    %v3250 = vmul.f32 %v3080, %v3231
    %v3251 = vmul.f32 %v3081, %v3231
    %v3252 = vmul.f32 %v3082, %v3231
    %v3253 = vmul.f32 %v3083, %v3231
    %v3254 = vmul.f32 %v3084, %v3231
    %v3255 = vmul.f32 %v3085, %v3231
    %v3256 = vmul.f32 %v3086, %v3231
    %v3257 = vmul.f32 %v3087, %v3231
    %v3258 = vmul.f32 %v3088, %v3231
    %v3259 = vmul.f32 %v3089, %v3231
    %v3260 = vmul.f32 %v3090, %v3231
    %v3261 = vmul.f32 %v3091, %v3231
    %v3262 = vmul.f32 %v3092, %v3231
    %v3263 = vmul.f32 %v3093, %v3231
    %vm3296 = vcmask 1046528
    %v3297 = vrot.slane %v3232, 1
    %v3298 = vrot.slane %v3233, 1
    %v3299 = vsel %vm3296, %v3297, %v3298
    %v3300 = vrot.slane %v3234, 1
    %v3301 = vrot.slane %v3235, 1
    %v3302 = vsel %vm3296, %v3300, %v3301
    %v3303 = vrot.slane %v3236, 1
    %v3304 = vrot.slane %v3237, 1
    %v3305 = vsel %vm3296, %v3303, %v3304
    %v3306 = vrot.slane %v3238, 1
    %v3307 = vrot.slane %v3239, 1
    %v3308 = vsel %vm3296, %v3306, %v3307
    %v3309 = vrot.slane %v3240, 1
    %v3310 = vrot.slane %v3241, 1
    %v3311 = vsel %vm3296, %v3309, %v3310
    %v3312 = vrot.slane %v3242, 1
    %v3313 = vrot.slane %v3243, 1
    %v3314 = vsel %vm3296, %v3312, %v3313
    %v3315 = vrot.slane %v3244, 1
    %v3316 = vrot.slane %v3245, 1
    %v3317 = vsel %vm3296, %v3315, %v3316
    %v3318 = vrot.slane %v3246, 1
    %v3319 = vrot.slane %v3247, 1
    %v3320 = vsel %vm3296, %v3318, %v3319
    %v3321 = vrot.slane %v3248, 1
    %v3322 = vrot.slane %v3249, 1
    %v3323 = vsel %vm3296, %v3321, %v3322
    %v3324 = vrot.slane %v3250, 1
    %v3325 = vrot.slane %v3251, 1
    %v3326 = vsel %vm3296, %v3324, %v3325
    %v3327 = vrot.slane %v3252, 1
    %v3328 = vrot.slane %v3253, 1
    %v3329 = vsel %vm3296, %v3327, %v3328
    %v3330 = vrot.slane %v3254, 1
    %v3331 = vrot.slane %v3255, 1
    %v3332 = vsel %vm3296, %v3330, %v3331
    %v3333 = vrot.slane %v3256, 1
    %v3334 = vrot.slane %v3257, 1
    %v3335 = vsel %vm3296, %v3333, %v3334
    %v3336 = vrot.slane %v3258, 1
    %v3337 = vrot.slane %v3259, 1
    %v3338 = vsel %vm3296, %v3336, %v3337
    %v3339 = vrot.slane %v3260, 1
    %v3340 = vrot.slane %v3261, 1
    %v3341 = vsel %vm3296, %v3339, %v3340
    %v3342 = vrot.slane %v3262, 1
    %v3343 = vrot.slane %v3263, 1
    %v3344 = vsel %vm3296, %v3342, %v3343
    %v3361 = vadd.f32 %v3215, %v3299
    %v3362 = vadd.f32 %v3216, %v3302
    %v3363 = vadd.f32 %v3217, %v3305
    %v3364 = vadd.f32 %v3218, %v3308
    %v3365 = vadd.f32 %v3219, %v3311
    %v3366 = vadd.f32 %v3220, %v3314
    %v3367 = vadd.f32 %v3221, %v3317
    %v3368 = vadd.f32 %v3222, %v3320
    %v3369 = vadd.f32 %v3223, %v3323
    %v3370 = vadd.f32 %v3224, %v3326
    %v3371 = vadd.f32 %v3225, %v3329
    %v3372 = vadd.f32 %v3226, %v3332
    %v3373 = vadd.f32 %v3227, %v3335
    %v3374 = vadd.f32 %v3228, %v3338
    %v3375 = vadd.f32 %v3229, %v3341
    %v3376 = vadd.f32 %v3230, %v3344
    %v3377 = vperm.slane %v3163, 0
    %v3378 = vmul.f32 %v3114, %v3377
    %v3379 = vmul.f32 %v3116, %v3377
    %v3380 = vmul.f32 %v3118, %v3377
    %v3381 = vmul.f32 %v3120, %v3377
    %v3382 = vmul.f32 %v3122, %v3377
    %v3383 = vmul.f32 %v3124, %v3377
    %v3384 = vmul.f32 %v3126, %v3377
    %v3385 = vmul.f32 %v3128, %v3377
    %v3386 = vmul.f32 %v3130, %v3377
    %v3387 = vmul.f32 %v3132, %v3377
    %v3388 = vmul.f32 %v3134, %v3377
    %v3389 = vmul.f32 %v3136, %v3377
    %v3390 = vmul.f32 %v3138, %v3377
    %v3391 = vmul.f32 %v3140, %v3377
    %v3392 = vmul.f32 %v3142, %v3377
    %v3393 = vmul.f32 %v3144, %v3377
    %v3394 = vadd.f32 %v3361, %v3378
    %v3395 = vadd.f32 %v3362, %v3379
    %v3396 = vadd.f32 %v3363, %v3380
    %v3397 = vadd.f32 %v3364, %v3381
    %v3398 = vadd.f32 %v3365, %v3382
    %v3399 = vadd.f32 %v3366, %v3383
    %v3400 = vadd.f32 %v3367, %v3384
    %v3401 = vadd.f32 %v3368, %v3385
    %v3402 = vadd.f32 %v3369, %v3386
    %v3403 = vadd.f32 %v3370, %v3387
    %v3404 = vadd.f32 %v3371, %v3388
    %v3405 = vadd.f32 %v3372, %v3389
    %v3406 = vadd.f32 %v3373, %v3390
    %v3407 = vadd.f32 %v3374, %v3391
    %v3408 = vadd.f32 %v3375, %v3392
    %v3409 = vadd.f32 %v3376, %v3393
    %v3410 = vperm.slane %v3163, 1
    %v3411 = vmul.f32 %v3146, %v3410
    %v3412 = vmul.f32 %v3147, %v3410
    %v3413 = vmul.f32 %v3148, %v3410
    %v3414 = vmul.f32 %v3149, %v3410
    %v3415 = vmul.f32 %v3150, %v3410
    %v3416 = vmul.f32 %v3151, %v3410
    %v3417 = vmul.f32 %v3152, %v3410
    %v3418 = vmul.f32 %v3153, %v3410
    %v3419 = vmul.f32 %v3154, %v3410
    %v3420 = vmul.f32 %v3155, %v3410
    %v3421 = vmul.f32 %v3156, %v3410
    %v3422 = vmul.f32 %v3157, %v3410
    %v3423 = vmul.f32 %v3158, %v3410
    %v3424 = vmul.f32 %v3159, %v3410
    %v3425 = vmul.f32 %v3160, %v3410
    %v3426 = vmul.f32 %v3161, %v3410
    %v3427 = vadd.f32 %v3394, %v3411
    %v3428 = vadd.f32 %v3395, %v3412
    %v3429 = vadd.f32 %v3396, %v3413
    %v3430 = vadd.f32 %v3397, %v3414
    %v3431 = vadd.f32 %v3398, %v3415
    %v3432 = vadd.f32 %v3399, %v3416
    %v3433 = vadd.f32 %v3400, %v3417
    %v3434 = vadd.f32 %v3401, %v3418
    %v3435 = vadd.f32 %v3402, %v3419
    %v3436 = vadd.f32 %v3403, %v3420
    %v3437 = vadd.f32 %v3404, %v3421
    %v3438 = vadd.f32 %v3405, %v3422
    %v3439 = vadd.f32 %v3406, %v3423
    %v3440 = vadd.f32 %v3407, %v3424
    %v3441 = vadd.f32 %v3408, %v3425
    %v3442 = vadd.f32 %v3409, %v3426
    %v3443 = vperm.slane %v3163, 2
    %v3444 = vmul.f32 %v3114, %v3443
    %v3445 = vmul.f32 %v3115, %v3443
    %v3446 = vmul.f32 %v3116, %v3443
    %v3447 = vmul.f32 %v3117, %v3443
    %v3448 = vmul.f32 %v3118, %v3443
    %v3449 = vmul.f32 %v3119, %v3443
    %v3450 = vmul.f32 %v3120, %v3443
    %v3451 = vmul.f32 %v3121, %v3443
    %v3452 = vmul.f32 %v3122, %v3443
    %v3453 = vmul.f32 %v3123, %v3443
    %v3454 = vmul.f32 %v3124, %v3443
    %v3455 = vmul.f32 %v3125, %v3443
    %v3456 = vmul.f32 %v3126, %v3443
    %v3457 = vmul.f32 %v3127, %v3443
    %v3458 = vmul.f32 %v3128, %v3443
    %v3459 = vmul.f32 %v3129, %v3443
    %v3460 = vmul.f32 %v3130, %v3443
    %v3461 = vmul.f32 %v3131, %v3443
    %v3462 = vmul.f32 %v3132, %v3443
    %v3463 = vmul.f32 %v3133, %v3443
    %v3464 = vmul.f32 %v3134, %v3443
    %v3465 = vmul.f32 %v3135, %v3443
    %v3466 = vmul.f32 %v3136, %v3443
    %v3467 = vmul.f32 %v3137, %v3443
    %v3468 = vmul.f32 %v3138, %v3443
    %v3469 = vmul.f32 %v3139, %v3443
    %v3470 = vmul.f32 %v3140, %v3443
    %v3471 = vmul.f32 %v3141, %v3443
    %v3472 = vmul.f32 %v3142, %v3443
    %v3473 = vmul.f32 %v3143, %v3443
    %v3474 = vmul.f32 %v3144, %v3443
    %v3475 = vmul.f32 %v3145, %v3443
    %v3508 = vrot.slane %v3444, 1
    %v3509 = vrot.slane %v3445, 1
    %v3510 = vsel %vm3296, %v3508, %v3509
    %v3511 = vrot.slane %v3446, 1
    %v3512 = vrot.slane %v3447, 1
    %v3513 = vsel %vm3296, %v3511, %v3512
    %v3514 = vrot.slane %v3448, 1
    %v3515 = vrot.slane %v3449, 1
    %v3516 = vsel %vm3296, %v3514, %v3515
    %v3517 = vrot.slane %v3450, 1
    %v3518 = vrot.slane %v3451, 1
    %v3519 = vsel %vm3296, %v3517, %v3518
    %v3520 = vrot.slane %v3452, 1
    %v3521 = vrot.slane %v3453, 1
    %v3522 = vsel %vm3296, %v3520, %v3521
    %v3523 = vrot.slane %v3454, 1
    %v3524 = vrot.slane %v3455, 1
    %v3525 = vsel %vm3296, %v3523, %v3524
    %v3526 = vrot.slane %v3456, 1
    %v3527 = vrot.slane %v3457, 1
    %v3528 = vsel %vm3296, %v3526, %v3527
    %v3529 = vrot.slane %v3458, 1
    %v3530 = vrot.slane %v3459, 1
    %v3531 = vsel %vm3296, %v3529, %v3530
    %v3532 = vrot.slane %v3460, 1
    %v3533 = vrot.slane %v3461, 1
    %v3534 = vsel %vm3296, %v3532, %v3533
    %v3535 = vrot.slane %v3462, 1
    %v3536 = vrot.slane %v3463, 1
    %v3537 = vsel %vm3296, %v3535, %v3536
    %v3538 = vrot.slane %v3464, 1
    %v3539 = vrot.slane %v3465, 1
    %v3540 = vsel %vm3296, %v3538, %v3539
    %v3541 = vrot.slane %v3466, 1
    %v3542 = vrot.slane %v3467, 1
    %v3543 = vsel %vm3296, %v3541, %v3542
    %v3544 = vrot.slane %v3468, 1
    %v3545 = vrot.slane %v3469, 1
    %v3546 = vsel %vm3296, %v3544, %v3545
    %v3547 = vrot.slane %v3470, 1
    %v3548 = vrot.slane %v3471, 1
    %v3549 = vsel %vm3296, %v3547, %v3548
    %v3550 = vrot.slane %v3472, 1
    %v3551 = vrot.slane %v3473, 1
    %v3552 = vsel %vm3296, %v3550, %v3551
    %v3553 = vrot.slane %v3474, 1
    %v3554 = vrot.slane %v3475, 1
    %v3555 = vsel %vm3296, %v3553, %v3554
    %v3572 = vadd.f32 %v3427, %v3510
    %v3573 = vadd.f32 %v3428, %v3513
    %v3574 = vadd.f32 %v3429, %v3516
    %v3575 = vadd.f32 %v3430, %v3519
    %v3576 = vadd.f32 %v3431, %v3522
    %v3577 = vadd.f32 %v3432, %v3525
    %v3578 = vadd.f32 %v3433, %v3528
    %v3579 = vadd.f32 %v3434, %v3531
    %v3580 = vadd.f32 %v3435, %v3534
    %v3581 = vadd.f32 %v3436, %v3537
    %v3582 = vadd.f32 %v3437, %v3540
    %v3583 = vadd.f32 %v3438, %v3543
    %v3584 = vadd.f32 %v3439, %v3546
    %v3585 = vadd.f32 %v3440, %v3549
    %v3586 = vadd.f32 %v3441, %v3552
    %v3587 = vadd.f32 %v3442, %v3555
    %v3588 = vperm.slane %v3164, 0
    %v3589 = vmul.f32 %v3062, %v3588
    %v3590 = vmul.f32 %v3064, %v3588
    %v3591 = vmul.f32 %v3066, %v3588
    %v3592 = vmul.f32 %v3068, %v3588
    %v3593 = vmul.f32 %v3070, %v3588
    %v3594 = vmul.f32 %v3072, %v3588
    %v3595 = vmul.f32 %v3074, %v3588
    %v3596 = vmul.f32 %v3076, %v3588
    %v3597 = vmul.f32 %v3080, %v3588
    %v3598 = vmul.f32 %v3082, %v3588
    %v3599 = vmul.f32 %v3084, %v3588
    %v3600 = vmul.f32 %v3086, %v3588
    %v3601 = vmul.f32 %v3088, %v3588
    %v3602 = vmul.f32 %v3090, %v3588
    %v3603 = vmul.f32 %v3092, %v3588
    %v3604 = vmul.f32 %v3094, %v3588
    %v3605 = vadd.f32 %v3572, %v3589
    %v3606 = vadd.f32 %v3573, %v3590
    %v3607 = vadd.f32 %v3574, %v3591
    %v3608 = vadd.f32 %v3575, %v3592
    %v3609 = vadd.f32 %v3576, %v3593
    %v3610 = vadd.f32 %v3577, %v3594
    %v3611 = vadd.f32 %v3578, %v3595
    %v3612 = vadd.f32 %v3579, %v3596
    %v3613 = vadd.f32 %v3580, %v3597
    %v3614 = vadd.f32 %v3581, %v3598
    %v3615 = vadd.f32 %v3582, %v3599
    %v3616 = vadd.f32 %v3583, %v3600
    %v3617 = vadd.f32 %v3584, %v3601
    %v3618 = vadd.f32 %v3585, %v3602
    %v3619 = vadd.f32 %v3586, %v3603
    %v3620 = vadd.f32 %v3587, %v3604
    %v3621 = vperm.slane %v3164, 1
    %v3622 = vmul.f32 %v3097, %v3621
    %v3623 = vmul.f32 %v3098, %v3621
    %v3624 = vmul.f32 %v3099, %v3621
    %v3625 = vmul.f32 %v3100, %v3621
    %v3626 = vmul.f32 %v3101, %v3621
    %v3627 = vmul.f32 %v3102, %v3621
    %v3628 = vmul.f32 %v3103, %v3621
    %v3629 = vmul.f32 %v3104, %v3621
    %v3630 = vmul.f32 %v3106, %v3621
    %v3631 = vmul.f32 %v3107, %v3621
    %v3632 = vmul.f32 %v3108, %v3621
    %v3633 = vmul.f32 %v3109, %v3621
    %v3634 = vmul.f32 %v3110, %v3621
    %v3635 = vmul.f32 %v3111, %v3621
    %v3636 = vmul.f32 %v3112, %v3621
    %v3637 = vmul.f32 %v3113, %v3621
    %v3638 = vadd.f32 %v3605, %v3622
    %v3639 = vadd.f32 %v3606, %v3623
    %v3640 = vadd.f32 %v3607, %v3624
    %v3641 = vadd.f32 %v3608, %v3625
    %v3642 = vadd.f32 %v3609, %v3626
    %v3643 = vadd.f32 %v3610, %v3627
    %v3644 = vadd.f32 %v3611, %v3628
    %v3645 = vadd.f32 %v3612, %v3629
    %v3646 = vadd.f32 %v3613, %v3630
    %v3647 = vadd.f32 %v3614, %v3631
    %v3648 = vadd.f32 %v3615, %v3632
    %v3649 = vadd.f32 %v3616, %v3633
    %v3650 = vadd.f32 %v3617, %v3634
    %v3651 = vadd.f32 %v3618, %v3635
    %v3652 = vadd.f32 %v3619, %v3636
    %v3653 = vadd.f32 %v3620, %v3637
    %v3654 = vperm.slane %v3164, 2
    %v3655 = vmul.f32 %v3062, %v3654
    %v3656 = vmul.f32 %v3063, %v3654
    %v3657 = vmul.f32 %v3064, %v3654
    %v3658 = vmul.f32 %v3065, %v3654
    %v3659 = vmul.f32 %v3066, %v3654
    %v3660 = vmul.f32 %v3067, %v3654
    %v3661 = vmul.f32 %v3068, %v3654
    %v3662 = vmul.f32 %v3069, %v3654
    %v3663 = vmul.f32 %v3070, %v3654
    %v3664 = vmul.f32 %v3071, %v3654
    %v3665 = vmul.f32 %v3072, %v3654
    %v3666 = vmul.f32 %v3073, %v3654
    %v3667 = vmul.f32 %v3074, %v3654
    %v3668 = vmul.f32 %v3075, %v3654
    %v3669 = vmul.f32 %v3076, %v3654
    %v3670 = vmul.f32 %v3077, %v3654
    %v3671 = vmul.f32 %v3080, %v3654
    %v3672 = vmul.f32 %v3081, %v3654
    %v3673 = vmul.f32 %v3082, %v3654
    %v3674 = vmul.f32 %v3083, %v3654
    %v3675 = vmul.f32 %v3084, %v3654
    %v3676 = vmul.f32 %v3085, %v3654
    %v3677 = vmul.f32 %v3086, %v3654
    %v3678 = vmul.f32 %v3087, %v3654
    %v3679 = vmul.f32 %v3088, %v3654
    %v3680 = vmul.f32 %v3089, %v3654
    %v3681 = vmul.f32 %v3090, %v3654
    %v3682 = vmul.f32 %v3091, %v3654
    %v3683 = vmul.f32 %v3092, %v3654
    %v3684 = vmul.f32 %v3093, %v3654
    %v3685 = vmul.f32 %v3094, %v3654
    %v3686 = vmul.f32 %v3095, %v3654
    %v3719 = vrot.slane %v3655, 1
    %v3720 = vrot.slane %v3656, 1
    %v3721 = vsel %vm3296, %v3719, %v3720
    %v3722 = vrot.slane %v3657, 1
    %v3723 = vrot.slane %v3658, 1
    %v3724 = vsel %vm3296, %v3722, %v3723
    %v3725 = vrot.slane %v3659, 1
    %v3726 = vrot.slane %v3660, 1
    %v3727 = vsel %vm3296, %v3725, %v3726
    %v3728 = vrot.slane %v3661, 1
    %v3729 = vrot.slane %v3662, 1
    %v3730 = vsel %vm3296, %v3728, %v3729
    %v3731 = vrot.slane %v3663, 1
    %v3732 = vrot.slane %v3664, 1
    %v3733 = vsel %vm3296, %v3731, %v3732
    %v3734 = vrot.slane %v3665, 1
    %v3735 = vrot.slane %v3666, 1
    %v3736 = vsel %vm3296, %v3734, %v3735
    %v3737 = vrot.slane %v3667, 1
    %v3738 = vrot.slane %v3668, 1
    %v3739 = vsel %vm3296, %v3737, %v3738
    %v3740 = vrot.slane %v3669, 1
    %v3741 = vrot.slane %v3670, 1
    %v3742 = vsel %vm3296, %v3740, %v3741
    %v3743 = vrot.slane %v3671, 1
    %v3744 = vrot.slane %v3672, 1
    %v3745 = vsel %vm3296, %v3743, %v3744
    %v3746 = vrot.slane %v3673, 1
    %v3747 = vrot.slane %v3674, 1
    %v3748 = vsel %vm3296, %v3746, %v3747
    %v3749 = vrot.slane %v3675, 1
    %v3750 = vrot.slane %v3676, 1
    %v3751 = vsel %vm3296, %v3749, %v3750
    %v3752 = vrot.slane %v3677, 1
    %v3753 = vrot.slane %v3678, 1
    %v3754 = vsel %vm3296, %v3752, %v3753
    %v3755 = vrot.slane %v3679, 1
    %v3756 = vrot.slane %v3680, 1
    %v3757 = vsel %vm3296, %v3755, %v3756
    %v3758 = vrot.slane %v3681, 1
    %v3759 = vrot.slane %v3682, 1
    %v3760 = vsel %vm3296, %v3758, %v3759
    %v3761 = vrot.slane %v3683, 1
    %v3762 = vrot.slane %v3684, 1
    %v3763 = vsel %vm3296, %v3761, %v3762
    %v3764 = vrot.slane %v3685, 1
    %v3765 = vrot.slane %v3686, 1
    %v3766 = vsel %vm3296, %v3764, %v3765
    %v3783 = vadd.f32 %v3638, %v3721
    %v3784 = vadd.f32 %v3639, %v3724
    %v3785 = vadd.f32 %v3640, %v3727
    %v3786 = vadd.f32 %v3641, %v3730
    %v3787 = vadd.f32 %v3642, %v3733
    %v3788 = vadd.f32 %v3643, %v3736
    %v3789 = vadd.f32 %v3644, %v3739
    %v3790 = vadd.f32 %v3645, %v3742
    %v3791 = vadd.f32 %v3646, %v3745
    %v3792 = vadd.f32 %v3647, %v3748
    %v3793 = vadd.f32 %v3648, %v3751
    %v3794 = vadd.f32 %v3649, %v3754
    %v3795 = vadd.f32 %v3650, %v3757
    %v3796 = vadd.f32 %v3651, %v3760
    %v3797 = vadd.f32 %v3652, %v3763
    %v3798 = vadd.f32 %v3653, %v3766
    %v3799 = vadd.f32 %v3783, %v3784
    %v3800 = vadd.f32 %v3799, %v3785
    %v3801 = vadd.f32 %v3800, %v3786
    %v3802 = vadd.f32 %v3801, %v3787
    %v3803 = vadd.f32 %v3802, %v3788
    %v3804 = vadd.f32 %v3803, %v3789
    %v3805 = vadd.f32 %v3804, %v3790
    %v3806 = vadd.f32 %v3805, %v3791
    %v3807 = vadd.f32 %v3806, %v3792
    %v3808 = vadd.f32 %v3807, %v3793
    %v3809 = vadd.f32 %v3808, %v3794
    %v3810 = vadd.f32 %v3809, %v3795
    %v3811 = vadd.f32 %v3810, %v3796
    %v3812 = vadd.f32 %v3811, %v3797
    %v3813 = vadd.f32 %v3812, %v3798
    %v3814 = vrot.slane %v3813, 4
    %v3815 = vadd.f32 %v3813, %v3814
    %v3816 = vrot.slane %v3815, 2
    %v3817 = vadd.f32 %v3815, %v3816
    %v3818 = vrot.slane %v3817, 1
    %v3819 = vadd.f32 %v3817, %v3818
    %v3820 = vrcp.pop 128.0
    %v3821 = vmul.f32 128.0, %v3820
    %v3822 = vsub.f32 1.0, %v3821
    %v3823 = vmul.f32 %v3820, %v3822
    %v3824 = vadd.f32 %v3820, %v3823
    %vm3825 = vweird.f32 %v3820
    %v3826 = vsel %vm3825, %v3820, %v3824
    %v3827 = vmul.f32 %v3819, %v3826
    %v3828 = vsub.f32 %v3783, %v3827
    %v3829 = vsub.f32 %v3784, %v3827
    %v3830 = vsub.f32 %v3785, %v3827
    %v3831 = vsub.f32 %v3786, %v3827
    %v3832 = vsub.f32 %v3787, %v3827
    %v3833 = vsub.f32 %v3788, %v3827
    %v3834 = vsub.f32 %v3789, %v3827
    %v3835 = vsub.f32 %v3790, %v3827
    %v3836 = vsub.f32 %v3791, %v3827
    %v3837 = vsub.f32 %v3792, %v3827
    %v3838 = vsub.f32 %v3793, %v3827
    %v3839 = vsub.f32 %v3794, %v3827
    %v3840 = vsub.f32 %v3795, %v3827
    %v3841 = vsub.f32 %v3796, %v3827
    %v3842 = vsub.f32 %v3797, %v3827
    %v3843 = vsub.f32 %v3798, %v3827
    %v3844 = vmul.f32 %v3828, %v3828
    %v3845 = vmul.f32 %v3829, %v3829
    %v3846 = vmul.f32 %v3830, %v3830
    %v3847 = vmul.f32 %v3831, %v3831
    %v3848 = vmul.f32 %v3832, %v3832
    %v3849 = vmul.f32 %v3833, %v3833
    %v3850 = vmul.f32 %v3834, %v3834
    %v3851 = vmul.f32 %v3835, %v3835
    %v3852 = vmul.f32 %v3836, %v3836
    %v3853 = vmul.f32 %v3837, %v3837
    %v3854 = vmul.f32 %v3838, %v3838
    %v3855 = vmul.f32 %v3839, %v3839
    %v3856 = vmul.f32 %v3840, %v3840
    %v3857 = vmul.f32 %v3841, %v3841
    %v3858 = vmul.f32 %v3842, %v3842
    %v3859 = vmul.f32 %v3843, %v3843
    %v3860 = vadd.f32 %v3844, %v3845
    %v3861 = vadd.f32 %v3860, %v3846
    %v3862 = vadd.f32 %v3861, %v3847
    %v3863 = vadd.f32 %v3862, %v3848
    %v3864 = vadd.f32 %v3863, %v3849
    %v3865 = vadd.f32 %v3864, %v3850
    %v3866 = vadd.f32 %v3865, %v3851
    %v3867 = vadd.f32 %v3866, %v3852
    %v3868 = vadd.f32 %v3867, %v3853
    %v3869 = vadd.f32 %v3868, %v3854
    %v3870 = vadd.f32 %v3869, %v3855
    %v3871 = vadd.f32 %v3870, %v3856
    %v3872 = vadd.f32 %v3871, %v3857
    %v3873 = vadd.f32 %v3872, %v3858
    %v3874 = vadd.f32 %v3873, %v3859
    %v3875 = vrot.slane %v3874, 4
    %v3876 = vadd.f32 %v3874, %v3875
    %v3877 = vrot.slane %v3876, 2
    %v3878 = vadd.f32 %v3876, %v3877
    %v3879 = vrot.slane %v3878, 1
    %v3880 = vadd.f32 %v3878, %v3879
    %v3881 = vmul.f32 %v3880, %v3826
    %v3882 = vld [vmem:[%s6] sm:$0x1]
    %v3883 = vadd.f32 %v3881, 0.001
    %v3884 = vrsqrt.pop %v3883
    %v3885 = vmul.f32 %v3884, %v3883
    %v3886 = vmul.f32 %v3885, %v3884
    %v3887 = vmul.f32 0.5, %v3886
    %v3888 = vsub.f32 1.5, %v3887
    %v3889 = vmul.f32 %v3884, %v3888
    %vm3890 = vweird.f32 %v3883
    %vm3891 = vweird.f32 %v3884
    %vm3892 = vmor %vm3890, %vm3891
    %v3893 = vsel %vm3892, %v3884, %v3889
    %v3894 = vmul.f32 %v3882, %v3893
    %v3895 = vld [vmem:[%s7] sm:$0x1]
    %v3896 = vmul.f32 %v3827, %v3894
    %v3897 = vsub.f32 %v3895, %v3896
    %v3899 = vperm.slane %v3894, 0
    %v3901 = vmul.f32 %v3783, %v3899
    %v3902 = vmul.f32 %v3784, %v3899
    %v3903 = vmul.f32 %v3785, %v3899
    %v3904 = vmul.f32 %v3786, %v3899
    %v3905 = vmul.f32 %v3787, %v3899
    %v3906 = vmul.f32 %v3788, %v3899
    %v3907 = vmul.f32 %v3789, %v3899
    %v3908 = vmul.f32 %v3790, %v3899
    %v3909 = vmul.f32 %v3791, %v3899
    %v3910 = vmul.f32 %v3792, %v3899
    %v3911 = vmul.f32 %v3793, %v3899
    %v3912 = vmul.f32 %v3794, %v3899
    %v3913 = vmul.f32 %v3795, %v3899
    %v3914 = vmul.f32 %v3796, %v3899
    %v3915 = vmul.f32 %v3797, %v3899
    %v3916 = vmul.f32 %v3798, %v3899
    %v3918 = vperm.slane %v3897, 0
    %v3920 = vadd.f32 %v3901, %v3918
    %v3921 = vadd.f32 %v3902, %v3918
    %v3922 = vadd.f32 %v3903, %v3918
    %v3923 = vadd.f32 %v3904, %v3918
    %v3924 = vadd.f32 %v3905, %v3918
    %v3925 = vadd.f32 %v3906, %v3918
    %v3926 = vadd.f32 %v3907, %v3918
    %v3927 = vadd.f32 %v3908, %v3918
    %v3928 = vadd.f32 %v3909, %v3918
    %v3929 = vadd.f32 %v3910, %v3918
    %v3930 = vadd.f32 %v3911, %v3918
    %v3931 = vadd.f32 %v3912, %v3918
    %v3932 = vadd.f32 %v3913, %v3918
    %v3933 = vadd.f32 %v3914, %v3918
    %v3934 = vadd.f32 %v3915, %v3918
    %v3935 = vadd.f32 %v3916, %v3918
    %v3936 = vmax.f32 %v3920, 0.0
    %v3937 = vmax.f32 %v3921, 0.0
    %v3938 = vmax.f32 %v3922, 0.0
    %v3939 = vmax.f32 %v3923, 0.0
    %v3940 = vmax.f32 %v3924, 0.0
    %v3941 = vmax.f32 %v3925, 0.0
    %v3942 = vmax.f32 %v3926, 0.0
    %v3943 = vmax.f32 %v3927, 0.0
    %v3944 = vmax.f32 %v3928, 0.0
    %v3945 = vmax.f32 %v3929, 0.0
    %v3946 = vmax.f32 %v3930, 0.0
    %v3947 = vmax.f32 %v3931, 0.0
    %v3948 = vmax.f32 %v3932, 0.0
    %v3949 = vmax.f32 %v3933, 0.0
    %v3950 = vmax.f32 %v3934, 0.0
    %v3951 = vmax.f32 %v3935, 0.0
    %3952 = vst [vmem:[#allocation2] sm:$0xff] %v3936
    %3953 = vst [vmem:[#allocation2 + $0x8] sm:$0xff] %v3937
    %3954 = vst [vmem:[#allocation2 + $0x10] sm:$0xff] %v3938
    %3955 = vst [vmem:[#allocation2 + $0x18] sm:$0xff] %v3939
    %3956 = vst [vmem:[#allocation2 + $0x20] sm:$0xff] %v3940
    %3957 = vst [vmem:[#allocation2 + $0x28] sm:$0xff] %v3941
    %3958 = vst [vmem:[#allocation2 + $0x30] sm:$0xff] %v3942
    %3959 = vst [vmem:[#allocation2 + $0x38] sm:$0xff] %v3943
    %3960 = vst [vmem:[#allocation2 + $0x40] sm:$0xff] %v3944
    %3961 = vst [vmem:[#allocation2 + $0x48] sm:$0xff] %v3945
    %3962 = vst [vmem:[#allocation2 + $0x50] sm:$0xff] %v3946
    %3963 = vst [vmem:[#allocation2 + $0x58] sm:$0xff] %v3947
    %3964 = vst [vmem:[#allocation2 + $0x60] sm:$0xff] %v3948
    %3965 = vst [vmem:[#allocation2 + $0x68] sm:$0xff] %v3949
    %3966 = vst [vmem:[#allocation2 + $0x70] sm:$0xff] %v3950
    %3967 = vst [vmem:[#allocation2 + $0x78] sm:$0xff] %v3951
    // Predicated region
    $region34: #{forward.1} parent=1 // pred_check
      _
    $region35: #{forward.1} parent=1 // pred_check_branch
      %3969 = sbr.rel (0) target = $region37
    $region36: #{forward.1} parent=1 // pred_region
      %3971 = vsyncadd [#allocation3], 0
      %s3972 = sshll.u32 [#allocation2], 4
      %s3973 = int_to_ptr.vmem [resolvable:$true] %s3972
      %s3974 = sshll.u32 %s8, 4
      %s3975 = int_to_ptr.hbm [resolvable:$true] %s3974
      %3980 = dma.vmem_to_hbm [thread:$0]  %s3973, 2048, %s3975, [#allocation3], 128, 128, 8
    $region37: #{forward.1} parent=1 // pred_fallthru
      _
    // Predicated region
    $region38: #{forward.1} parent=1 // pred_check
      _
    $region39: #{forward.1} parent=1 // pred_check_branch
      %3982 = sbr.rel (0) target = $region41
    $region40: #{forward.1} parent=1 // pred_region
      %3984 = dma.done [#allocation3], 2048
    $region41: #{forward.1} parent=1 // pred_fallthru
      _
    %3985 = vsyncpa [#allocation3], 1

</llo_original>
